<compile_context>
chip_gen: v5e
topology: v5e:2x2
jax: 0.10.0
libtpu: 0.0.40
codegen_flags: <defaults>
</compile_context>

<pallas_src>
import jax
import jax.numpy as jnp
from jax.experimental import pallas as pl


# ----------------------------------------------------------------------------
# One fused kernel: MLPs + teacher-forcing shift + 2x LSTMCell + proj + log_softmax
# ----------------------------------------------------------------------------
def codear_fused_kernel(
    emb_shift_ref,   # (T*B, H)  embedding of shifted codes, time-major rows (t*B+b)
    labels_ref,      # (B, L)
    sos_ref,         # (1, H)
    mask_in_ref,     # (T*B, H)  dropout keep-mask (0.0 / 2.0) for LSTM1 input
    mask_h1_ref,     # (T*B, H)  dropout keep-mask (0.0 / 2.0) for h1
    xw1_ref, xb1_ref, xw2_ref, xb2_ref, xw3_ref,      # x_linear MLP
    lw1_ref, lb1_ref, lw2_ref, lb2_ref, lw3_ref,      # label_linear MLP
    wih1_ref, whh1_ref, b1_ref,                        # LSTMCell 1 (b = b_ih + b_hh)
    wih2_ref, whh2_ref, b2_ref,                        # LSTMCell 2
    wproj_ref, bproj_ref,                              # proj
    out_ref,         # (T, B, n_codes) log-probs (time-major; wrapper transposes)
):
    TB, H = emb_shift_ref.shape
    T, B, _ = out_ref.shape
    f32 = jnp.float32

    def mlp3(x, w1, b1, w2, b2, w3):
        h = jnp.maximum(jnp.dot(x, w1, preferred_element_type=f32) + b1, 0.0)
        h = jnp.maximum(jnp.dot(h, w2, preferred_element_type=f32) + b2, 0.0)
        return jnp.dot(h, w3, preferred_element_type=f32)

    # ---- prologue: both MLPs fused into this single launch ----
    x_lin = mlp3(emb_shift_ref[...], xw1_ref[...], xb1_ref[...],
                 xw2_ref[...], xb2_ref[...], xw3_ref[...])           # (T*B, H)
    conds = mlp3(labels_ref[...], lw1_ref[...], lb1_ref[...],
                 lw2_ref[...], lb2_ref[...], lw3_ref[...])           # (B, H)

    # ---- teacher forcing: rows of timestep 0 take <sos> (bypasses x_linear) ----
    row = jax.lax.broadcasted_iota(jnp.int32, (TB, H), 0)
    x_shift = jnp.where(row < B, jnp.broadcast_to(sos_ref[...], (TB, H)), x_lin)

    # ---- replicate conds over time (time-major rows: batch index = row % B) ----
    conds_rep = jnp.zeros((TB, H), f32)
    for b in range(B):
        conds_rep = jnp.where(row % B == b,
                              jnp.broadcast_to(conds[b:b + 1, :], (TB, H)),
                              conds_rep)

    # ---- hoisted input->hidden half of LSTM1 for all T steps (one MXU push) ----
    inp_all = mask_in_ref[...] * (conds_rep + x_shift)                # (T*B, H)
    gates1_x = jnp.dot(inp_all, wih1_ref[...],
                       preferred_element_type=f32) + b1_ref[...]      # (T*B, 4H)

    whh1 = whh1_ref[...]
    wih2 = wih2_ref[...]
    whh2 = whh2_ref[...]
    b2 = b2_ref[...]
    wproj = wproj_ref[...]
    bproj = bproj_ref[...]
    mask_h1 = mask_h1_ref[...]

    def gate_split(g):  # PyTorch LSTMCell gate order: i, f, g, o
        i = jax.nn.sigmoid(g[:, 0 * H:1 * H])
        f = jax.nn.sigmoid(g[:, 1 * H:2 * H])
        c = jnp.tanh(g[:, 2 * H:3 * H])
        o = jax.nn.sigmoid(g[:, 3 * H:4 * H])
        return i, f, c, o

    h1 = jnp.zeros((B, H), f32)
    c1 = jnp.zeros((B, H), f32)
    h2 = jnp.zeros((B, H), f32)
    c2 = jnp.zeros((B, H), f32)

    # ---- fully unrolled recurrence (T static; only the h/c chains are serial) ----
    for t in range(T):
        g1 = gates1_x[t * B:(t + 1) * B, :] + jnp.dot(
            h1, whh1, preferred_element_type=f32)
        i1, f1, gg1, o1 = gate_split(g1)
        c1 = f1 * c1 + i1 * gg1
        h1 = o1 * jnp.tanh(c1)

        h1d = mask_h1[t * B:(t + 1) * B, :] * h1
        g2 = (jnp.dot(h1d, wih2, preferred_element_type=f32)
              + jnp.dot(h2, whh2, preferred_element_type=f32) + b2)
        i2, f2, gg2, o2 = gate_split(g2)
        c2 = f2 * c2 + i2 * gg2
        h2 = o2 * jnp.tanh(c2)

        logits = jnp.dot(h2, wproj, preferred_element_type=f32) + bproj
        m = jnp.max(logits, axis=-1, keepdims=True)
        s = logits - m
        lse = jnp.log(jnp.sum(jnp.exp(s), axis=-1, keepdims=True))
        out_ref[t] = s - lse                                          # log_softmax


# ----------------------------------------------------------------------------
# Full forward pass (embedding gather + dropout masks are tiny plain-JAX glue;
# everything else runs in the single fused Pallas kernel).
# ----------------------------------------------------------------------------
def codear_forward(x_codes, labels, params, *, dropout_key=None, train=True):
    B, T = x_codes.shape
    H = params["embedding"].shape[1]
    n_codes = params["proj_w"].shape[1]

    # Teacher-forcing shift done at the index level: the code feeding step t is
    # x_codes[:, t-1]; the t=0 column is a dummy (replaced by <sos> in-kernel,
    # which bypasses x_linear exactly as in the reference model).
    shifted_codes = jnp.concatenate([x_codes[:, :1], x_codes[:, :-1]], axis=1)  # (B, T)
    idx_tm = jnp.transpose(shifted_codes).reshape(-1)                           # (T*B,) time-major
    emb_shift = jnp.take(params["embedding"], idx_tm, axis=0)                   # (T*B, H)

    # Dropout keep-masks (p=0.5, training=True like the reference), pre-scaled 2x.
    if dropout_key is None:
        dropout_key = jax.random.PRNGKey(1234)
    k_in, k_h1 = jax.random.split(dropout_key)
    if train:
        mask_in = jax.random.bernoulli(k_in, 0.5, (T * B, H)).astype(jnp.float32) * 2.0
        mask_h1 = jax.random.bernoulli(k_h1, 0.5, (T * B, H)).astype(jnp.float32) * 2.0
    else:
        mask_in = jnp.ones((T * B, H), jnp.float32)
        mask_h1 = jnp.ones((T * B, H), jnp.float32)

    out_tbn = pl.pallas_call(
        codear_fused_kernel,
        out_shape=jax.ShapeDtypeStruct((T, B, n_codes), jnp.float32),
    )(emb_shift,
      labels.astype(jnp.float32),
      params["sos"].reshape(1, H),
      mask_in, mask_h1,
      params["xlin_w1"], params["xlin_b1"],
      params["xlin_w2"], params["xlin_b2"], params["xlin_w3"],
      params["llin_w1"], params["llin_b1"],
      params["llin_w2"], params["llin_b2"], params["llin_w3"],
      params["lstm1_wih"], params["lstm1_whh"], params["lstm1_b"],
      params["lstm2_wih"], params["lstm2_whh"], params["lstm2_b"],
      params["proj_w"], params["proj_b"])

    return jnp.transpose(out_tbn, (1, 0, 2))                          # (B, T, n_codes)


# ----------------------------------------------------------------------------
# Deterministic synthetic parameter init (weights stored (in, out) so kernels
# compute x @ W + b, equivalent to torch's x @ W.T with W:(out, in)).
# ----------------------------------------------------------------------------
def init_params(key, n_codes, hidden_dim, label_dim):
    H, L = hidden_dim, label_dim
    ks = jax.random.split(key, 20)
    s = 0.05

    def w(k, shape):
        return (s * jax.random.normal(k, shape)).astype(jnp.float32)

    return {
        "embedding": w(ks[0], (n_codes, H)),
        "sos":       w(ks[1], (1, 1, H)),
        # x_linear: Linear(H,H)+ReLU, Linear(H,H)+ReLU, Linear(H,H,bias=False)
        "xlin_w1": w(ks[2], (H, H)), "xlin_b1": w(ks[3], (1, H)),
        "xlin_w2": w(ks[4], (H, H)), "xlin_b2": w(ks[5], (1, H)),
        "xlin_w3": w(ks[6], (H, H)),
        # label_linear: Linear(L,H)+ReLU, Linear(H,H)+ReLU, Linear(H,H,bias=False)
        "llin_w1": w(ks[7], (L, H)), "llin_b1": w(ks[8], (1, H)),
        "llin_w2": w(ks[9], (H, H)), "llin_b2": w(ks[10], (1, H)),
        "llin_w3": w(ks[11], (H, H)),
        # LSTMCell 1/2: W_ih, W_hh stored (H, 4H); bias = b_ih + b_hh combined
        "lstm1_wih": w(ks[12], (H, 4 * H)), "lstm1_whh": w(ks[13], (H, 4 * H)),
        "lstm1_b":   w(ks[14], (1, 4 * H)),
        "lstm2_wih": w(ks[15], (H, 4 * H)), "lstm2_whh": w(ks[16], (H, 4 * H)),
        "lstm2_b":   w(ks[17], (1, 4 * H)),
        # proj: Linear(H, n_codes)
        "proj_w": w(ks[18], (H, n_codes)), "proj_b": w(ks[19], (1, n_codes)),
    }


if __name__ == "__main__":
    # hp: n_codes=32, hidden_dim=32, label_dim=8, fixed_len=16, stride=2 -> T=8
    n_codes, hidden_dim, label_dim = 32, 32, 8
    fixed_len, stride = 16, 2
    T = fixed_len // stride
    B = 2

    key = jax.random.PRNGKey(0)
    k_p, k_x, k_l, k_d = jax.random.split(key, 4)

    params = init_params(k_p, n_codes, hidden_dim, label_dim)
    x_codes = jax.random.randint(k_x, (B, T), 0, n_codes, dtype=jnp.int32)
    labels = jax.random.normal(k_l, (B, label_dim), dtype=jnp.float32)

    out = codear_forward(x_codes, labels, params, dropout_key=k_d, train=True)
    out = jax.block_until_ready(out)

    assert out.shape == (B, T, n_codes), out.shape
    assert bool(jnp.all(jnp.isfinite(out)))
    # each row of log-probs should (approximately) exponentiate-sum to 1
    probs_sum = jnp.sum(jnp.exp(out), axis=-1)
    assert bool(jnp.allclose(probs_sum, 1.0, atol=1e-4))

    # TODO(synk): inference()/top_p_nucleus_sampling_batch path not implemented
    # (forward pass only, matching the requested spec).
    print("KERNEL_OK")
</pallas_src>

<mosaic_0001>
module attributes {stable_mosaic.version = 11 : i64} {
  func.func @codear_fused_kernel(%arg0: memref<16x32xf32, #tpu.memory_space<vmem>>, %arg1: memref<2x8xf32, #tpu.memory_space<vmem>>, %arg2: memref<1x32xf32, #tpu.memory_space<vmem>>, %arg3: memref<16x32xf32, #tpu.memory_space<vmem>>, %arg4: memref<16x32xf32, #tpu.memory_space<vmem>>, %arg5: memref<32x32xf32, #tpu.memory_space<vmem>>, %arg6: memref<1x32xf32, #tpu.memory_space<vmem>>, %arg7: memref<32x32xf32, #tpu.memory_space<vmem>>, %arg8: memref<1x32xf32, #tpu.memory_space<vmem>>, %arg9: memref<32x32xf32, #tpu.memory_space<vmem>>, %arg10: memref<8x32xf32, #tpu.memory_space<vmem>>, %arg11: memref<1x32xf32, #tpu.memory_space<vmem>>, %arg12: memref<32x32xf32, #tpu.memory_space<vmem>>, %arg13: memref<1x32xf32, #tpu.memory_space<vmem>>, %arg14: memref<32x32xf32, #tpu.memory_space<vmem>>, %arg15: memref<32x128xf32, #tpu.memory_space<vmem>>, %arg16: memref<32x128xf32, #tpu.memory_space<vmem>>, %arg17: memref<1x128xf32, #tpu.memory_space<vmem>>, %arg18: memref<32x128xf32, #tpu.memory_space<vmem>>, %arg19: memref<32x128xf32, #tpu.memory_space<vmem>>, %arg20: memref<1x128xf32, #tpu.memory_space<vmem>>, %arg21: memref<32x32xf32, #tpu.memory_space<vmem>>, %arg22: memref<1x32xf32, #tpu.memory_space<vmem>>, %arg23: memref<8x2x32xf32, #tpu.memory_space<vmem>>) attributes {dimension_semantics = [], scalar_prefetch = 0 : i64, scratch_operands = 0 : i64, tpu.core_type = #tpu.core_type<tc>} {
    %c0 = arith.constant 0 : index
    %c0_0 = arith.constant 0 : index
    %0 = vector.load %arg0[%c0, %c0_0] : memref<16x32xf32, #tpu.memory_space<vmem>>, vector<16x32xf32>
    %c0_1 = arith.constant 0 : index
    %c0_2 = arith.constant 0 : index
    %1 = vector.load %arg5[%c0_1, %c0_2] : memref<32x32xf32, #tpu.memory_space<vmem>>, vector<32x32xf32>
    %c0_3 = arith.constant 0 : index
    %c0_4 = arith.constant 0 : index
    %2 = vector.load %arg6[%c0_3, %c0_4] : memref<1x32xf32, #tpu.memory_space<vmem>>, vector<1x32xf32>
    %c0_5 = arith.constant 0 : index
    %c0_6 = arith.constant 0 : index
    %3 = vector.load %arg7[%c0_5, %c0_6] : memref<32x32xf32, #tpu.memory_space<vmem>>, vector<32x32xf32>
    %c0_7 = arith.constant 0 : index
    %c0_8 = arith.constant 0 : index
    %4 = vector.load %arg8[%c0_7, %c0_8] : memref<1x32xf32, #tpu.memory_space<vmem>>, vector<1x32xf32>
    %c0_9 = arith.constant 0 : index
    %c0_10 = arith.constant 0 : index
    %5 = vector.load %arg9[%c0_9, %c0_10] : memref<32x32xf32, #tpu.memory_space<vmem>>, vector<32x32xf32>
    %cst = arith.constant dense<0.000000e+00> : vector<16x32xf32>
    %6 = tpu.matmul %0, %1, %cst {dimension_numbers = #tpu.dot_dimension_numbers<[1], [0], [0], [1], [0, 0, 1, 1], [], []>} : vector<16x32xf32>, vector<32x32xf32>, vector<16x32xf32> -> vector<16x32xf32>
    %7 = vector.broadcast %2 : vector<1x32xf32> to vector<16x32xf32>
    %8 = arith.addf %6, %7 : vector<16x32xf32>
    %cst_11 = arith.constant 0.000000e+00 : f32
    %9 = vector.broadcast %cst_11 : f32 to vector<16x32xf32>
    %10 = arith.maximumf %8, %9 : vector<16x32xf32>
    %cst_12 = arith.constant dense<0.000000e+00> : vector<16x32xf32>
    %11 = tpu.matmul %10, %3, %cst_12 {dimension_numbers = #tpu.dot_dimension_numbers<[1], [0], [0], [1], [0, 0, 1, 1], [], []>} : vector<16x32xf32>, vector<32x32xf32>, vector<16x32xf32> -> vector<16x32xf32>
    %12 = vector.broadcast %4 : vector<1x32xf32> to vector<16x32xf32>
    %13 = arith.addf %11, %12 : vector<16x32xf32>
    %cst_13 = arith.constant 0.000000e+00 : f32
    %14 = vector.broadcast %cst_13 : f32 to vector<16x32xf32>
    %15 = arith.maximumf %13, %14 : vector<16x32xf32>
    %cst_14 = arith.constant dense<0.000000e+00> : vector<16x32xf32>
    %16 = tpu.matmul %15, %5, %cst_14 {dimension_numbers = #tpu.dot_dimension_numbers<[1], [0], [0], [1], [0, 0, 1, 1], [], []>} : vector<16x32xf32>, vector<32x32xf32>, vector<16x32xf32> -> vector<16x32xf32>
    %c0_15 = arith.constant 0 : index
    %c0_16 = arith.constant 0 : index
    %17 = vector.load %arg1[%c0_15, %c0_16] : memref<2x8xf32, #tpu.memory_space<vmem>>, vector<2x8xf32>
    %c0_17 = arith.constant 0 : index
    %c0_18 = arith.constant 0 : index
    %18 = vector.load %arg10[%c0_17, %c0_18] : memref<8x32xf32, #tpu.memory_space<vmem>>, vector<8x32xf32>
    %c0_19 = arith.constant 0 : index
    %c0_20 = arith.constant 0 : index
    %19 = vector.load %arg11[%c0_19, %c0_20] : memref<1x32xf32, #tpu.memory_space<vmem>>, vector<1x32xf32>
    %c0_21 = arith.constant 0 : index
    %c0_22 = arith.constant 0 : index
    %20 = vector.load %arg12[%c0_21, %c0_22] : memref<32x32xf32, #tpu.memory_space<vmem>>, vector<32x32xf32>
    %c0_23 = arith.constant 0 : index
    %c0_24 = arith.constant 0 : index
    %21 = vector.load %arg13[%c0_23, %c0_24] : memref<1x32xf32, #tpu.memory_space<vmem>>, vector<1x32xf32>
    %c0_25 = arith.constant 0 : index
    %c0_26 = arith.constant 0 : index
    %22 = vector.load %arg14[%c0_25, %c0_26] : memref<32x32xf32, #tpu.memory_space<vmem>>, vector<32x32xf32>
    %cst_27 = arith.constant dense<0.000000e+00> : vector<2x32xf32>
    %23 = tpu.matmul %17, %18, %cst_27 {dimension_numbers = #tpu.dot_dimension_numbers<[1], [0], [0], [1], [0, 0, 1, 1], [], []>} : vector<2x8xf32>, vector<8x32xf32>, vector<2x32xf32> -> vector<2x32xf32>
    %24 = vector.broadcast %19 : vector<1x32xf32> to vector<2x32xf32>
    %25 = arith.addf %23, %24 : vector<2x32xf32>
    %cst_28 = arith.constant 0.000000e+00 : f32
    %26 = vector.broadcast %cst_28 : f32 to vector<2x32xf32>
    %27 = arith.maximumf %25, %26 : vector<2x32xf32>
    %cst_29 = arith.constant dense<0.000000e+00> : vector<2x32xf32>
    %28 = tpu.matmul %27, %20, %cst_29 {dimension_numbers = #tpu.dot_dimension_numbers<[1], [0], [0], [1], [0, 0, 1, 1], [], []>} : vector<2x32xf32>, vector<32x32xf32>, vector<2x32xf32> -> vector<2x32xf32>
    %29 = vector.broadcast %21 : vector<1x32xf32> to vector<2x32xf32>
    %30 = arith.addf %28, %29 : vector<2x32xf32>
    %cst_30 = arith.constant 0.000000e+00 : f32
    %31 = vector.broadcast %cst_30 : f32 to vector<2x32xf32>
    %32 = arith.maximumf %30, %31 : vector<2x32xf32>
    %cst_31 = arith.constant dense<0.000000e+00> : vector<2x32xf32>
    %33 = tpu.matmul %32, %22, %cst_31 {dimension_numbers = #tpu.dot_dimension_numbers<[1], [0], [0], [1], [0, 0, 1, 1], [], []>} : vector<2x32xf32>, vector<32x32xf32>, vector<2x32xf32> -> vector<2x32xf32>
    %34 = tpu.iota {dimensions = array<i32: 0>} : vector<16x32xi32>
    %c2_i32 = arith.constant 2 : i32
    %35 = vector.broadcast %c2_i32 : i32 to vector<16x32xi32>
    %36 = arith.cmpi slt, %34, %35 : vector<16x32xi32>
    %c0_32 = arith.constant 0 : index
    %c0_33 = arith.constant 0 : index
    %37 = vector.load %arg2[%c0_32, %c0_33] : memref<1x32xf32, #tpu.memory_space<vmem>>, vector<1x32xf32>
    %38 = vector.shape_cast %37 : vector<1x32xf32> to vector<1x32xf32>
    %39 = vector.broadcast %38 : vector<1x32xf32> to vector<16x32xf32>
    %40 = arith.select %36, %39, %16 : vector<16x32xi1>, vector<16x32xf32>
    %cst_34 = arith.constant 0.000000e+00 : f32
    %41 = vector.broadcast %cst_34 : f32 to vector<16x32xf32>
    %c2_i32_35 = arith.constant 2 : i32
    %c0_i32 = arith.constant 0 : i32
    %42 = arith.cmpi eq, %c2_i32_35, %c0_i32 : i32
    %c1_i32 = arith.constant 1 : i32
    %43 = arith.select %42, %c1_i32, %c2_i32_35 : i32
    %44 = vector.broadcast %43 : i32 to vector<16x32xi32>
    %45 = arith.remsi %34, %44 : vector<16x32xi32>
    %c0_i32_36 = arith.constant 0 : i32
    %46 = vector.broadcast %c0_i32_36 : i32 to vector<16x32xi32>
    %47 = arith.cmpi ne, %45, %46 : vector<16x32xi32>
    %c0_i32_37 = arith.constant 0 : i32
    %48 = vector.broadcast %c0_i32_37 : i32 to vector<16x32xi32>
    %49 = arith.cmpi slt, %45, %48 : vector<16x32xi32>
    %c0_i32_38 = arith.constant 0 : i32
    %50 = arith.cmpi slt, %43, %c0_i32_38 : i32
    %51 = vector.broadcast %50 : i1 to vector<16x32xi1>
    %52 = vector.broadcast %51 : vector<16x32xi1> to vector<16x32xi1>
    %53 = arith.xori %49, %52 : vector<16x32xi1>
    %54 = arith.andi %53, %47 : vector<16x32xi1>
    %55 = vector.broadcast %43 : i32 to vector<16x32xi32>
    %56 = arith.addi %45, %55 : vector<16x32xi32>
    %57 = arith.select %54, %56, %45 : vector<16x32xi1>, vector<16x32xi32>
    %c0_i32_39 = arith.constant 0 : i32
    %58 = vector.broadcast %c0_i32_39 : i32 to vector<16x32xi32>
    %59 = arith.cmpi eq, %57, %58 : vector<16x32xi32>
    %60 = vector.extract_strided_slice %33 {offsets = [0, 0], sizes = [1, 32], strides = [1, 1]} : vector<2x32xf32> to vector<1x32xf32>
    %61 = vector.shape_cast %60 : vector<1x32xf32> to vector<1x32xf32>
    %62 = vector.broadcast %61 : vector<1x32xf32> to vector<16x32xf32>
    %63 = arith.select %59, %62, %41 : vector<16x32xi1>, vector<16x32xf32>
    %c2_i32_40 = arith.constant 2 : i32
    %c0_i32_41 = arith.constant 0 : i32
    %64 = arith.cmpi eq, %c2_i32_40, %c0_i32_41 : i32
    %c1_i32_42 = arith.constant 1 : i32
    %65 = arith.select %64, %c1_i32_42, %c2_i32_40 : i32
    %66 = vector.broadcast %65 : i32 to vector<16x32xi32>
    %67 = arith.remsi %34, %66 : vector<16x32xi32>
    %c0_i32_43 = arith.constant 0 : i32
    %68 = vector.broadcast %c0_i32_43 : i32 to vector<16x32xi32>
    %69 = arith.cmpi ne, %67, %68 : vector<16x32xi32>
    %c0_i32_44 = arith.constant 0 : i32
    %70 = vector.broadcast %c0_i32_44 : i32 to vector<16x32xi32>
    %71 = arith.cmpi slt, %67, %70 : vector<16x32xi32>
    %c0_i32_45 = arith.constant 0 : i32
    %72 = arith.cmpi slt, %65, %c0_i32_45 : i32
    %73 = vector.broadcast %72 : i1 to vector<16x32xi1>
    %74 = vector.broadcast %73 : vector<16x32xi1> to vector<16x32xi1>
    %75 = arith.xori %71, %74 : vector<16x32xi1>
    %76 = arith.andi %75, %69 : vector<16x32xi1>
    %77 = vector.broadcast %65 : i32 to vector<16x32xi32>
    %78 = arith.addi %67, %77 : vector<16x32xi32>
    %79 = arith.select %76, %78, %67 : vector<16x32xi1>, vector<16x32xi32>
    %c1_i32_46 = arith.constant 1 : i32
    %80 = vector.broadcast %c1_i32_46 : i32 to vector<16x32xi32>
    %81 = arith.cmpi eq, %79, %80 : vector<16x32xi32>
    %82 = vector.extract_strided_slice %33 {offsets = [1, 0], sizes = [1, 32], strides = [1, 1]} : vector<2x32xf32> to vector<1x32xf32>
    %83 = vector.shape_cast %82 : vector<1x32xf32> to vector<1x32xf32>
    %84 = vector.broadcast %83 : vector<1x32xf32> to vector<16x32xf32>
    %85 = arith.select %81, %84, %63 : vector<16x32xi1>, vector<16x32xf32>
    %c0_47 = arith.constant 0 : index
    %c0_48 = arith.constant 0 : index
    %86 = vector.load %arg3[%c0_47, %c0_48] : memref<16x32xf32, #tpu.memory_space<vmem>>, vector<16x32xf32>
    %87 = arith.addf %85, %40 : vector<16x32xf32>
    %88 = arith.mulf %86, %87 : vector<16x32xf32>
    %c0_49 = arith.constant 0 : index
    %c0_50 = arith.constant 0 : index
    %89 = vector.load %arg15[%c0_49, %c0_50] : memref<32x128xf32, #tpu.memory_space<vmem>>, vector<32x128xf32>
    %cst_51 = arith.constant dense<0.000000e+00> : vector<16x128xf32>
    %90 = tpu.matmul %88, %89, %cst_51 {dimension_numbers = #tpu.dot_dimension_numbers<[1], [0], [0], [1], [0, 0, 1, 1], [], []>} : vector<16x32xf32>, vector<32x128xf32>, vector<16x128xf32> -> vector<16x128xf32>
    %c0_52 = arith.constant 0 : index
    %c0_53 = arith.constant 0 : index
    %91 = vector.load %arg17[%c0_52, %c0_53] : memref<1x128xf32, #tpu.memory_space<vmem>>, vector<1x128xf32>
    %92 = vector.broadcast %91 : vector<1x128xf32> to vector<16x128xf32>
    %93 = arith.addf %90, %92 : vector<16x128xf32>
    %c0_54 = arith.constant 0 : index
    %c0_55 = arith.constant 0 : index
    %94 = vector.load %arg16[%c0_54, %c0_55] : memref<32x128xf32, #tpu.memory_space<vmem>>, vector<32x128xf32>
    %c0_56 = arith.constant 0 : index
    %c0_57 = arith.constant 0 : index
    %95 = vector.load %arg18[%c0_56, %c0_57] : memref<32x128xf32, #tpu.memory_space<vmem>>, vector<32x128xf32>
    %c0_58 = arith.constant 0 : index
    %c0_59 = arith.constant 0 : index
    %96 = vector.load %arg19[%c0_58, %c0_59] : memref<32x128xf32, #tpu.memory_space<vmem>>, vector<32x128xf32>
    %c0_60 = arith.constant 0 : index
    %c0_61 = arith.constant 0 : index
    %97 = vector.load %arg20[%c0_60, %c0_61] : memref<1x128xf32, #tpu.memory_space<vmem>>, vector<1x128xf32>
    %c0_62 = arith.constant 0 : index
    %c0_63 = arith.constant 0 : index
    %98 = vector.load %arg21[%c0_62, %c0_63] : memref<32x32xf32, #tpu.memory_space<vmem>>, vector<32x32xf32>
    %c0_64 = arith.constant 0 : index
    %c0_65 = arith.constant 0 : index
    %99 = vector.load %arg22[%c0_64, %c0_65] : memref<1x32xf32, #tpu.memory_space<vmem>>, vector<1x32xf32>
    %c0_66 = arith.constant 0 : index
    %c0_67 = arith.constant 0 : index
    %100 = vector.load %arg4[%c0_66, %c0_67] : memref<16x32xf32, #tpu.memory_space<vmem>>, vector<16x32xf32>
    %cst_68 = arith.constant 0.000000e+00 : f32
    %101 = vector.broadcast %cst_68 : f32 to vector<2x32xf32>
    %cst_69 = arith.constant 0.000000e+00 : f32
    %102 = vector.broadcast %cst_69 : f32 to vector<2x32xf32>
    %cst_70 = arith.constant 0.000000e+00 : f32
    %103 = vector.broadcast %cst_70 : f32 to vector<2x32xf32>
    %cst_71 = arith.constant 0.000000e+00 : f32
    %104 = vector.broadcast %cst_71 : f32 to vector<2x32xf32>
    %105 = vector.extract_strided_slice %93 {offsets = [0, 0], sizes = [2, 128], strides = [1, 1]} : vector<16x128xf32> to vector<2x128xf32>
    %cst_72 = arith.constant dense<0.000000e+00> : vector<2x128xf32>
    %106 = tpu.matmul %101, %94, %cst_72 {dimension_numbers = #tpu.dot_dimension_numbers<[1], [0], [0], [1], [0, 0, 1, 1], [], []>} : vector<2x32xf32>, vector<32x128xf32>, vector<2x128xf32> -> vector<2x128xf32>
    %107 = arith.addf %105, %106 : vector<2x128xf32>
    %108 = vector.extract_strided_slice %107 {offsets = [0, 0], sizes = [2, 32], strides = [1, 1]} : vector<2x128xf32> to vector<2x32xf32>
    %109 = arith.negf %108 : vector<2x32xf32>
    %110 = math.exp %109 : vector<2x32xf32>
    %cst_73 = arith.constant 1.000000e+00 : f32
    %111 = vector.broadcast %cst_73 : f32 to vector<2x32xf32>
    %112 = arith.addf %111, %110 : vector<2x32xf32>
    %113 = arith.divf %111, %112 : vector<2x32xf32>
    %114 = vector.extract_strided_slice %107 {offsets = [0, 32], sizes = [2, 32], strides = [1, 1]} : vector<2x128xf32> to vector<2x32xf32>
    %115 = arith.negf %114 : vector<2x32xf32>
    %116 = math.exp %115 : vector<2x32xf32>
    %cst_74 = arith.constant 1.000000e+00 : f32
    %117 = vector.broadcast %cst_74 : f32 to vector<2x32xf32>
    %118 = arith.addf %117, %116 : vector<2x32xf32>
    %119 = arith.divf %117, %118 : vector<2x32xf32>
    %120 = vector.extract_strided_slice %107 {offsets = [0, 64], sizes = [2, 32], strides = [1, 1]} : vector<2x128xf32> to vector<2x32xf32>
    %121 = math.tanh %120 : vector<2x32xf32>
    %122 = vector.extract_strided_slice %107 {offsets = [0, 96], sizes = [2, 32], strides = [1, 1]} : vector<2x128xf32> to vector<2x32xf32>
    %123 = arith.negf %122 : vector<2x32xf32>
    %124 = math.exp %123 : vector<2x32xf32>
    %cst_75 = arith.constant 1.000000e+00 : f32
    %125 = vector.broadcast %cst_75 : f32 to vector<2x32xf32>
    %126 = arith.addf %125, %124 : vector<2x32xf32>
    %127 = arith.divf %125, %126 : vector<2x32xf32>
    %128 = arith.mulf %119, %102 : vector<2x32xf32>
    %129 = arith.mulf %113, %121 : vector<2x32xf32>
    %130 = arith.addf %128, %129 : vector<2x32xf32>
    %131 = math.tanh %130 : vector<2x32xf32>
    %132 = arith.mulf %127, %131 : vector<2x32xf32>
    %133 = vector.extract_strided_slice %100 {offsets = [0, 0], sizes = [2, 32], strides = [1, 1]} : vector<16x32xf32> to vector<2x32xf32>
    %134 = arith.mulf %133, %132 : vector<2x32xf32>
    %cst_76 = arith.constant dense<0.000000e+00> : vector<2x128xf32>
    %135 = tpu.matmul %134, %95, %cst_76 {dimension_numbers = #tpu.dot_dimension_numbers<[1], [0], [0], [1], [0, 0, 1, 1], [], []>} : vector<2x32xf32>, vector<32x128xf32>, vector<2x128xf32> -> vector<2x128xf32>
    %cst_77 = arith.constant dense<0.000000e+00> : vector<2x128xf32>
    %136 = tpu.matmul %103, %96, %cst_77 {dimension_numbers = #tpu.dot_dimension_numbers<[1], [0], [0], [1], [0, 0, 1, 1], [], []>} : vector<2x32xf32>, vector<32x128xf32>, vector<2x128xf32> -> vector<2x128xf32>
    %137 = arith.addf %135, %136 : vector<2x128xf32>
    %138 = vector.broadcast %97 : vector<1x128xf32> to vector<2x128xf32>
    %139 = arith.addf %137, %138 : vector<2x128xf32>
    %140 = vector.extract_strided_slice %139 {offsets = [0, 0], sizes = [2, 32], strides = [1, 1]} : vector<2x128xf32> to vector<2x32xf32>
    %141 = arith.negf %140 : vector<2x32xf32>
    %142 = math.exp %141 : vector<2x32xf32>
    %cst_78 = arith.constant 1.000000e+00 : f32
    %143 = vector.broadcast %cst_78 : f32 to vector<2x32xf32>
    %144 = arith.addf %143, %142 : vector<2x32xf32>
    %145 = arith.divf %143, %144 : vector<2x32xf32>
    %146 = vector.extract_strided_slice %139 {offsets = [0, 32], sizes = [2, 32], strides = [1, 1]} : vector<2x128xf32> to vector<2x32xf32>
    %147 = arith.negf %146 : vector<2x32xf32>
    %148 = math.exp %147 : vector<2x32xf32>
    %cst_79 = arith.constant 1.000000e+00 : f32
    %149 = vector.broadcast %cst_79 : f32 to vector<2x32xf32>
    %150 = arith.addf %149, %148 : vector<2x32xf32>
    %151 = arith.divf %149, %150 : vector<2x32xf32>
    %152 = vector.extract_strided_slice %139 {offsets = [0, 64], sizes = [2, 32], strides = [1, 1]} : vector<2x128xf32> to vector<2x32xf32>
    %153 = math.tanh %152 : vector<2x32xf32>
    %154 = vector.extract_strided_slice %139 {offsets = [0, 96], sizes = [2, 32], strides = [1, 1]} : vector<2x128xf32> to vector<2x32xf32>
    %155 = arith.negf %154 : vector<2x32xf32>
    %156 = math.exp %155 : vector<2x32xf32>
    %cst_80 = arith.constant 1.000000e+00 : f32
    %157 = vector.broadcast %cst_80 : f32 to vector<2x32xf32>
    %158 = arith.addf %157, %156 : vector<2x32xf32>
    %159 = arith.divf %157, %158 : vector<2x32xf32>
    %160 = arith.mulf %151, %104 : vector<2x32xf32>
    %161 = arith.mulf %145, %153 : vector<2x32xf32>
    %162 = arith.addf %160, %161 : vector<2x32xf32>
    %163 = math.tanh %162 : vector<2x32xf32>
    %164 = arith.mulf %159, %163 : vector<2x32xf32>
    %cst_81 = arith.constant dense<0.000000e+00> : vector<2x32xf32>
    %165 = tpu.matmul %164, %98, %cst_81 {dimension_numbers = #tpu.dot_dimension_numbers<[1], [0], [0], [1], [0, 0, 1, 1], [], []>} : vector<2x32xf32>, vector<32x32xf32>, vector<2x32xf32> -> vector<2x32xf32>
    %166 = vector.broadcast %99 : vector<1x32xf32> to vector<2x32xf32>
    %167 = arith.addf %165, %166 : vector<2x32xf32>
    %cst_82 = arith.constant dense<0xFF800000> : vector<2xf32>
    %168 = vector.multi_reduction <maximumf>, %167, %cst_82 [1] : vector<2x32xf32> to vector<2xf32>
    %169 = vector.shape_cast %168 : vector<2xf32> to vector<2x1xf32>
    %170 = vector.broadcast %169 : vector<2x1xf32> to vector<2x32xf32>
    %171 = arith.subf %167, %170 : vector<2x32xf32>
    %172 = math.exp %171 : vector<2x32xf32>
    %cst_83 = arith.constant dense<0.000000e+00> : vector<2xf32>
    %173 = vector.multi_reduction <add>, %172, %cst_83 [1] : vector<2x32xf32> to vector<2xf32>
    %174 = vector.shape_cast %173 : vector<2xf32> to vector<2x1xf32>
    %175 = math.log %174 : vector<2x1xf32>
    %176 = vector.broadcast %175 : vector<2x1xf32> to vector<2x32xf32>
    %177 = arith.subf %171, %176 : vector<2x32xf32>
    %c0_84 = arith.constant 0 : index
    %c0_85 = arith.constant 0 : index
    %c0_86 = arith.constant 0 : index
    %178 = vector.load %arg23[%c0_84, %c0_85, %c0_86] : memref<8x2x32xf32, #tpu.memory_space<vmem>>, vector<1x2x32xf32>
    %179 = vector.shape_cast %178 : vector<1x2x32xf32> to vector<2x32xf32>
    %180 = vector.shape_cast %177 : vector<2x32xf32> to vector<1x2x32xf32>
    tpu.vector_store %arg23[%c0_84, %c0_85, %c0_86], %180 {strides = array<i32>} : memref<8x2x32xf32, #tpu.memory_space<vmem>>, vector<1x2x32xf32>,
    %181 = vector.extract_strided_slice %93 {offsets = [2, 0], sizes = [2, 128], strides = [1, 1]} : vector<16x128xf32> to vector<2x128xf32>
    %cst_87 = arith.constant dense<0.000000e+00> : vector<2x128xf32>
    %182 = tpu.matmul %132, %94, %cst_87 {dimension_numbers = #tpu.dot_dimension_numbers<[1], [0], [0], [1], [0, 0, 1, 1], [], []>} : vector<2x32xf32>, vector<32x128xf32>, vector<2x128xf32> -> vector<2x128xf32>
    %183 = arith.addf %181, %182 : vector<2x128xf32>
    %184 = vector.extract_strided_slice %183 {offsets = [0, 0], sizes = [2, 32], strides = [1, 1]} : vector<2x128xf32> to vector<2x32xf32>
    %185 = arith.negf %184 : vector<2x32xf32>
    %186 = math.exp %185 : vector<2x32xf32>
    %cst_88 = arith.constant 1.000000e+00 : f32
    %187 = vector.broadcast %cst_88 : f32 to vector<2x32xf32>
    %188 = arith.addf %187, %186 : vector<2x32xf32>
    %189 = arith.divf %187, %188 : vector<2x32xf32>
    %190 = vector.extract_strided_slice %183 {offsets = [0, 32], sizes = [2, 32], strides = [1, 1]} : vector<2x128xf32> to vector<2x32xf32>
    %191 = arith.negf %190 : vector<2x32xf32>
    %192 = math.exp %191 : vector<2x32xf32>
    %cst_89 = arith.constant 1.000000e+00 : f32
    %193 = vector.broadcast %cst_89 : f32 to vector<2x32xf32>
    %194 = arith.addf %193, %192 : vector<2x32xf32>
    %195 = arith.divf %193, %194 : vector<2x32xf32>
    %196 = vector.extract_strided_slice %183 {offsets = [0, 64], sizes = [2, 32], strides = [1, 1]} : vector<2x128xf32> to vector<2x32xf32>
    %197 = math.tanh %196 : vector<2x32xf32>
    %198 = vector.extract_strided_slice %183 {offsets = [0, 96], sizes = [2, 32], strides = [1, 1]} : vector<2x128xf32> to vector<2x32xf32>
    %199 = arith.negf %198 : vector<2x32xf32>
    %200 = math.exp %199 : vector<2x32xf32>
    %cst_90 = arith.constant 1.000000e+00 : f32
    %201 = vector.broadcast %cst_90 : f32 to vector<2x32xf32>
    %202 = arith.addf %201, %200 : vector<2x32xf32>
    %203 = arith.divf %201, %202 : vector<2x32xf32>
    %204 = arith.mulf %195, %130 : vector<2x32xf32>
    %205 = arith.mulf %189, %197 : vector<2x32xf32>
    %206 = arith.addf %204, %205 : vector<2x32xf32>
    %207 = math.tanh %206 : vector<2x32xf32>
    %208 = arith.mulf %203, %207 : vector<2x32xf32>
    %209 = vector.extract_strided_slice %100 {offsets = [2, 0], sizes = [2, 32], strides = [1, 1]} : vector<16x32xf32> to vector<2x32xf32>
    %210 = arith.mulf %209, %208 : vector<2x32xf32>
    %cst_91 = arith.constant dense<0.000000e+00> : vector<2x128xf32>
    %211 = tpu.matmul %210, %95, %cst_91 {dimension_numbers = #tpu.dot_dimension_numbers<[1], [0], [0], [1], [0, 0, 1, 1], [], []>} : vector<2x32xf32>, vector<32x128xf32>, vector<2x128xf32> -> vector<2x128xf32>
    %cst_92 = arith.constant dense<0.000000e+00> : vector<2x128xf32>
    %212 = tpu.matmul %164, %96, %cst_92 {dimension_numbers = #tpu.dot_dimension_numbers<[1], [0], [0], [1], [0, 0, 1, 1], [], []>} : vector<2x32xf32>, vector<32x128xf32>, vector<2x128xf32> -> vector<2x128xf32>
    %213 = arith.addf %211, %212 : vector<2x128xf32>
    %214 = vector.broadcast %97 : vector<1x128xf32> to vector<2x128xf32>
    %215 = arith.addf %213, %214 : vector<2x128xf32>
    %216 = vector.extract_strided_slice %215 {offsets = [0, 0], sizes = [2, 32], strides = [1, 1]} : vector<2x128xf32> to vector<2x32xf32>
    %217 = arith.negf %216 : vector<2x32xf32>
    %218 = math.exp %217 : vector<2x32xf32>
    %cst_93 = arith.constant 1.000000e+00 : f32
    %219 = vector.broadcast %cst_93 : f32 to vector<2x32xf32>
    %220 = arith.addf %219, %218 : vector<2x32xf32>
    %221 = arith.divf %219, %220 : vector<2x32xf32>
    %222 = vector.extract_strided_slice %215 {offsets = [0, 32], sizes = [2, 32], strides = [1, 1]} : vector<2x128xf32> to vector<2x32xf32>
    %223 = arith.negf %222 : vector<2x32xf32>
    %224 = math.exp %223 : vector<2x32xf32>
    %cst_94 = arith.constant 1.000000e+00 : f32
    %225 = vector.broadcast %cst_94 : f32 to vector<2x32xf32>
    %226 = arith.addf %225, %224 : vector<2x32xf32>
    %227 = arith.divf %225, %226 : vector<2x32xf32>
    %228 = vector.extract_strided_slice %215 {offsets = [0, 64], sizes = [2, 32], strides = [1, 1]} : vector<2x128xf32> to vector<2x32xf32>
    %229 = math.tanh %228 : vector<2x32xf32>
    %230 = vector.extract_strided_slice %215 {offsets = [0, 96], sizes = [2, 32], strides = [1, 1]} : vector<2x128xf32> to vector<2x32xf32>
    %231 = arith.negf %230 : vector<2x32xf32>
    %232 = math.exp %231 : vector<2x32xf32>
    %cst_95 = arith.constant 1.000000e+00 : f32
    %233 = vector.broadcast %cst_95 : f32 to vector<2x32xf32>
    %234 = arith.addf %233, %232 : vector<2x32xf32>
    %235 = arith.divf %233, %234 : vector<2x32xf32>
    %236 = arith.mulf %227, %162 : vector<2x32xf32>
    %237 = arith.mulf %221, %229 : vector<2x32xf32>
    %238 = arith.addf %236, %237 : vector<2x32xf32>
    %239 = math.tanh %238 : vector<2x32xf32>
    %240 = arith.mulf %235, %239 : vector<2x32xf32>
    %cst_96 = arith.constant dense<0.000000e+00> : vector<2x32xf32>
    %241 = tpu.matmul %240, %98, %cst_96 {dimension_numbers = #tpu.dot_dimension_numbers<[1], [0], [0], [1], [0, 0, 1, 1], [], []>} : vector<2x32xf32>, vector<32x32xf32>, vector<2x32xf32> -> vector<2x32xf32>
    %242 = vector.broadcast %99 : vector<1x32xf32> to vector<2x32xf32>
    %243 = arith.addf %241, %242 : vector<2x32xf32>
    %cst_97 = arith.constant dense<0xFF800000> : vector<2xf32>
    %244 = vector.multi_reduction <maximumf>, %243, %cst_97 [1] : vector<2x32xf32> to vector<2xf32>
    %245 = vector.shape_cast %244 : vector<2xf32> to vector<2x1xf32>
    %246 = vector.broadcast %245 : vector<2x1xf32> to vector<2x32xf32>
    %247 = arith.subf %243, %246 : vector<2x32xf32>
    %248 = math.exp %247 : vector<2x32xf32>
    %cst_98 = arith.constant dense<0.000000e+00> : vector<2xf32>
    %249 = vector.multi_reduction <add>, %248, %cst_98 [1] : vector<2x32xf32> to vector<2xf32>
    %250 = vector.shape_cast %249 : vector<2xf32> to vector<2x1xf32>
    %251 = math.log %250 : vector<2x1xf32>
    %252 = vector.broadcast %251 : vector<2x1xf32> to vector<2x32xf32>
    %253 = arith.subf %247, %252 : vector<2x32xf32>
    %c1 = arith.constant 1 : index
    %c0_99 = arith.constant 0 : index
    %c0_100 = arith.constant 0 : index
    %254 = vector.load %arg23[%c1, %c0_99, %c0_100] : memref<8x2x32xf32, #tpu.memory_space<vmem>>, vector<1x2x32xf32>
    %255 = vector.shape_cast %254 : vector<1x2x32xf32> to vector<2x32xf32>
    %256 = vector.shape_cast %253 : vector<2x32xf32> to vector<1x2x32xf32>
    tpu.vector_store %arg23[%c1, %c0_99, %c0_100], %256 {strides = array<i32>} : memref<8x2x32xf32, #tpu.memory_space<vmem>>, vector<1x2x32xf32>,
    %257 = vector.extract_strided_slice %93 {offsets = [4, 0], sizes = [2, 128], strides = [1, 1]} : vector<16x128xf32> to vector<2x128xf32>
    %cst_101 = arith.constant dense<0.000000e+00> : vector<2x128xf32>
    %258 = tpu.matmul %208, %94, %cst_101 {dimension_numbers = #tpu.dot_dimension_numbers<[1], [0], [0], [1], [0, 0, 1, 1], [], []>} : vector<2x32xf32>, vector<32x128xf32>, vector<2x128xf32> -> vector<2x128xf32>
    %259 = arith.addf %257, %258 : vector<2x128xf32>
    %260 = vector.extract_strided_slice %259 {offsets = [0, 0], sizes = [2, 32], strides = [1, 1]} : vector<2x128xf32> to vector<2x32xf32>
    %261 = arith.negf %260 : vector<2x32xf32>
    %262 = math.exp %261 : vector<2x32xf32>
    %cst_102 = arith.constant 1.000000e+00 : f32
    %263 = vector.broadcast %cst_102 : f32 to vector<2x32xf32>
    %264 = arith.addf %263, %262 : vector<2x32xf32>
    %265 = arith.divf %263, %264 : vector<2x32xf32>
    %266 = vector.extract_strided_slice %259 {offsets = [0, 32], sizes = [2, 32], strides = [1, 1]} : vector<2x128xf32> to vector<2x32xf32>
    %267 = arith.negf %266 : vector<2x32xf32>
    %268 = math.exp %267 : vector<2x32xf32>
    %cst_103 = arith.constant 1.000000e+00 : f32
    %269 = vector.broadcast %cst_103 : f32 to vector<2x32xf32>
    %270 = arith.addf %269, %268 : vector<2x32xf32>
    %271 = arith.divf %269, %270 : vector<2x32xf32>
    %272 = vector.extract_strided_slice %259 {offsets = [0, 64], sizes = [2, 32], strides = [1, 1]} : vector<2x128xf32> to vector<2x32xf32>
    %273 = math.tanh %272 : vector<2x32xf32>
    %274 = vector.extract_strided_slice %259 {offsets = [0, 96], sizes = [2, 32], strides = [1, 1]} : vector<2x128xf32> to vector<2x32xf32>
    %275 = arith.negf %274 : vector<2x32xf32>
    %276 = math.exp %275 : vector<2x32xf32>
    %cst_104 = arith.constant 1.000000e+00 : f32
    %277 = vector.broadcast %cst_104 : f32 to vector<2x32xf32>
    %278 = arith.addf %277, %276 : vector<2x32xf32>
    %279 = arith.divf %277, %278 : vector<2x32xf32>
    %280 = arith.mulf %271, %206 : vector<2x32xf32>
    %281 = arith.mulf %265, %273 : vector<2x32xf32>
    %282 = arith.addf %280, %281 : vector<2x32xf32>
    %283 = math.tanh %282 : vector<2x32xf32>
    %284 = arith.mulf %279, %283 : vector<2x32xf32>
    %285 = vector.extract_strided_slice %100 {offsets = [4, 0], sizes = [2, 32], strides = [1, 1]} : vector<16x32xf32> to vector<2x32xf32>
    %286 = arith.mulf %285, %284 : vector<2x32xf32>
    %cst_105 = arith.constant dense<0.000000e+00> : vector<2x128xf32>
    %287 = tpu.matmul %286, %95, %cst_105 {dimension_numbers = #tpu.dot_dimension_numbers<[1], [0], [0], [1], [0, 0, 1, 1], [], []>} : vector<2x32xf32>, vector<32x128xf32>, vector<2x128xf32> -> vector<2x128xf32>
    %cst_106 = arith.constant dense<0.000000e+00> : vector<2x128xf32>
    %288 = tpu.matmul %240, %96, %cst_106 {dimension_numbers = #tpu.dot_dimension_numbers<[1], [0], [0], [1], [0, 0, 1, 1], [], []>} : vector<2x32xf32>, vector<32x128xf32>, vector<2x128xf32> -> vector<2x128xf32>
    %289 = arith.addf %287, %288 : vector<2x128xf32>
    %290 = vector.broadcast %97 : vector<1x128xf32> to vector<2x128xf32>
    %291 = arith.addf %289, %290 : vector<2x128xf32>
    %292 = vector.extract_strided_slice %291 {offsets = [0, 0], sizes = [2, 32], strides = [1, 1]} : vector<2x128xf32> to vector<2x32xf32>
    %293 = arith.negf %292 : vector<2x32xf32>
    %294 = math.exp %293 : vector<2x32xf32>
    %cst_107 = arith.constant 1.000000e+00 : f32
    %295 = vector.broadcast %cst_107 : f32 to vector<2x32xf32>
    %296 = arith.addf %295, %294 : vector<2x32xf32>
    %297 = arith.divf %295, %296 : vector<2x32xf32>
    %298 = vector.extract_strided_slice %291 {offsets = [0, 32], sizes = [2, 32], strides = [1, 1]} : vector<2x128xf32> to vector<2x32xf32>
    %299 = arith.negf %298 : vector<2x32xf32>
    %300 = math.exp %299 : vector<2x32xf32>
    %cst_108 = arith.constant 1.000000e+00 : f32
    %301 = vector.broadcast %cst_108 : f32 to vector<2x32xf32>
    %302 = arith.addf %301, %300 : vector<2x32xf32>
    %303 = arith.divf %301, %302 : vector<2x32xf32>
    %304 = vector.extract_strided_slice %291 {offsets = [0, 64], sizes = [2, 32], strides = [1, 1]} : vector<2x128xf32> to vector<2x32xf32>
    %305 = math.tanh %304 : vector<2x32xf32>
    %306 = vector.extract_strided_slice %291 {offsets = [0, 96], sizes = [2, 32], strides = [1, 1]} : vector<2x128xf32> to vector<2x32xf32>
    %307 = arith.negf %306 : vector<2x32xf32>
    %308 = math.exp %307 : vector<2x32xf32>
    %cst_109 = arith.constant 1.000000e+00 : f32
    %309 = vector.broadcast %cst_109 : f32 to vector<2x32xf32>
    %310 = arith.addf %309, %308 : vector<2x32xf32>
    %311 = arith.divf %309, %310 : vector<2x32xf32>
    %312 = arith.mulf %303, %238 : vector<2x32xf32>
    %313 = arith.mulf %297, %305 : vector<2x32xf32>
    %314 = arith.addf %312, %313 : vector<2x32xf32>
    %315 = math.tanh %314 : vector<2x32xf32>
    %316 = arith.mulf %311, %315 : vector<2x32xf32>
    %cst_110 = arith.constant dense<0.000000e+00> : vector<2x32xf32>
    %317 = tpu.matmul %316, %98, %cst_110 {dimension_numbers = #tpu.dot_dimension_numbers<[1], [0], [0], [1], [0, 0, 1, 1], [], []>} : vector<2x32xf32>, vector<32x32xf32>, vector<2x32xf32> -> vector<2x32xf32>
    %318 = vector.broadcast %99 : vector<1x32xf32> to vector<2x32xf32>
    %319 = arith.addf %317, %318 : vector<2x32xf32>
    %cst_111 = arith.constant dense<0xFF800000> : vector<2xf32>
    %320 = vector.multi_reduction <maximumf>, %319, %cst_111 [1] : vector<2x32xf32> to vector<2xf32>
    %321 = vector.shape_cast %320 : vector<2xf32> to vector<2x1xf32>
    %322 = vector.broadcast %321 : vector<2x1xf32> to vector<2x32xf32>
    %323 = arith.subf %319, %322 : vector<2x32xf32>
    %324 = math.exp %323 : vector<2x32xf32>
    %cst_112 = arith.constant dense<0.000000e+00> : vector<2xf32>
    %325 = vector.multi_reduction <add>, %324, %cst_112 [1] : vector<2x32xf32> to vector<2xf32>
    %326 = vector.shape_cast %325 : vector<2xf32> to vector<2x1xf32>
    %327 = math.log %326 : vector<2x1xf32>
    %328 = vector.broadcast %327 : vector<2x1xf32> to vector<2x32xf32>
    %329 = arith.subf %323, %328 : vector<2x32xf32>
    %c2 = arith.constant 2 : index
    %c0_113 = arith.constant 0 : index
    %c0_114 = arith.constant 0 : index
    %330 = vector.load %arg23[%c2, %c0_113, %c0_114] : memref<8x2x32xf32, #tpu.memory_space<vmem>>, vector<1x2x32xf32>
    %331 = vector.shape_cast %330 : vector<1x2x32xf32> to vector<2x32xf32>
    %332 = vector.shape_cast %329 : vector<2x32xf32> to vector<1x2x32xf32>
    tpu.vector_store %arg23[%c2, %c0_113, %c0_114], %332 {strides = array<i32>} : memref<8x2x32xf32, #tpu.memory_space<vmem>>, vector<1x2x32xf32>,
    %333 = vector.extract_strided_slice %93 {offsets = [6, 0], sizes = [2, 128], strides = [1, 1]} : vector<16x128xf32> to vector<2x128xf32>
    %cst_115 = arith.constant dense<0.000000e+00> : vector<2x128xf32>
    %334 = tpu.matmul %284, %94, %cst_115 {dimension_numbers = #tpu.dot_dimension_numbers<[1], [0], [0], [1], [0, 0, 1, 1], [], []>} : vector<2x32xf32>, vector<32x128xf32>, vector<2x128xf32> -> vector<2x128xf32>
    %335 = arith.addf %333, %334 : vector<2x128xf32>
    %336 = vector.extract_strided_slice %335 {offsets = [0, 0], sizes = [2, 32], strides = [1, 1]} : vector<2x128xf32> to vector<2x32xf32>
    %337 = arith.negf %336 : vector<2x32xf32>
    %338 = math.exp %337 : vector<2x32xf32>
    %cst_116 = arith.constant 1.000000e+00 : f32
    %339 = vector.broadcast %cst_116 : f32 to vector<2x32xf32>
    %340 = arith.addf %339, %338 : vector<2x32xf32>
    %341 = arith.divf %339, %340 : vector<2x32xf32>
    %342 = vector.extract_strided_slice %335 {offsets = [0, 32], sizes = [2, 32], strides = [1, 1]} : vector<2x128xf32> to vector<2x32xf32>
    %343 = arith.negf %342 : vector<2x32xf32>
    %344 = math.exp %343 : vector<2x32xf32>
    %cst_117 = arith.constant 1.000000e+00 : f32
    %345 = vector.broadcast %cst_117 : f32 to vector<2x32xf32>
    %346 = arith.addf %345, %344 : vector<2x32xf32>
    %347 = arith.divf %345, %346 : vector<2x32xf32>
    %348 = vector.extract_strided_slice %335 {offsets = [0, 64], sizes = [2, 32], strides = [1, 1]} : vector<2x128xf32> to vector<2x32xf32>
    %349 = math.tanh %348 : vector<2x32xf32>
    %350 = vector.extract_strided_slice %335 {offsets = [0, 96], sizes = [2, 32], strides = [1, 1]} : vector<2x128xf32> to vector<2x32xf32>
    %351 = arith.negf %350 : vector<2x32xf32>
    %352 = math.exp %351 : vector<2x32xf32>
    %cst_118 = arith.constant 1.000000e+00 : f32
    %353 = vector.broadcast %cst_118 : f32 to vector<2x32xf32>
    %354 = arith.addf %353, %352 : vector<2x32xf32>
    %355 = arith.divf %353, %354 : vector<2x32xf32>
    %356 = arith.mulf %347, %282 : vector<2x32xf32>
    %357 = arith.mulf %341, %349 : vector<2x32xf32>
    %358 = arith.addf %356, %357 : vector<2x32xf32>
    %359 = math.tanh %358 : vector<2x32xf32>
    %360 = arith.mulf %355, %359 : vector<2x32xf32>
    %361 = vector.extract_strided_slice %100 {offsets = [6, 0], sizes = [2, 32], strides = [1, 1]} : vector<16x32xf32> to vector<2x32xf32>
    %362 = arith.mulf %361, %360 : vector<2x32xf32>
    %cst_119 = arith.constant dense<0.000000e+00> : vector<2x128xf32>
    %363 = tpu.matmul %362, %95, %cst_119 {dimension_numbers = #tpu.dot_dimension_numbers<[1], [0], [0], [1], [0, 0, 1, 1], [], []>} : vector<2x32xf32>, vector<32x128xf32>, vector<2x128xf32> -> vector<2x128xf32>
    %cst_120 = arith.constant dense<0.000000e+00> : vector<2x128xf32>
    %364 = tpu.matmul %316, %96, %cst_120 {dimension_numbers = #tpu.dot_dimension_numbers<[1], [0], [0], [1], [0, 0, 1, 1], [], []>} : vector<2x32xf32>, vector<32x128xf32>, vector<2x128xf32> -> vector<2x128xf32>
    %365 = arith.addf %363, %364 : vector<2x128xf32>
    %366 = vector.broadcast %97 : vector<1x128xf32> to vector<2x128xf32>
    %367 = arith.addf %365, %366 : vector<2x128xf32>
    %368 = vector.extract_strided_slice %367 {offsets = [0, 0], sizes = [2, 32], strides = [1, 1]} : vector<2x128xf32> to vector<2x32xf32>
    %369 = arith.negf %368 : vector<2x32xf32>
    %370 = math.exp %369 : vector<2x32xf32>
    %cst_121 = arith.constant 1.000000e+00 : f32
    %371 = vector.broadcast %cst_121 : f32 to vector<2x32xf32>
    %372 = arith.addf %371, %370 : vector<2x32xf32>
    %373 = arith.divf %371, %372 : vector<2x32xf32>
    %374 = vector.extract_strided_slice %367 {offsets = [0, 32], sizes = [2, 32], strides = [1, 1]} : vector<2x128xf32> to vector<2x32xf32>
    %375 = arith.negf %374 : vector<2x32xf32>
    %376 = math.exp %375 : vector<2x32xf32>
    %cst_122 = arith.constant 1.000000e+00 : f32
    %377 = vector.broadcast %cst_122 : f32 to vector<2x32xf32>
    %378 = arith.addf %377, %376 : vector<2x32xf32>
    %379 = arith.divf %377, %378 : vector<2x32xf32>
    %380 = vector.extract_strided_slice %367 {offsets = [0, 64], sizes = [2, 32], strides = [1, 1]} : vector<2x128xf32> to vector<2x32xf32>
    %381 = math.tanh %380 : vector<2x32xf32>
    %382 = vector.extract_strided_slice %367 {offsets = [0, 96], sizes = [2, 32], strides = [1, 1]} : vector<2x128xf32> to vector<2x32xf32>
    %383 = arith.negf %382 : vector<2x32xf32>
    %384 = math.exp %383 : vector<2x32xf32>
    %cst_123 = arith.constant 1.000000e+00 : f32
    %385 = vector.broadcast %cst_123 : f32 to vector<2x32xf32>
    %386 = arith.addf %385, %384 : vector<2x32xf32>
    %387 = arith.divf %385, %386 : vector<2x32xf32>
    %388 = arith.mulf %379, %314 : vector<2x32xf32>
    %389 = arith.mulf %373, %381 : vector<2x32xf32>
    %390 = arith.addf %388, %389 : vector<2x32xf32>
    %391 = math.tanh %390 : vector<2x32xf32>
    %392 = arith.mulf %387, %391 : vector<2x32xf32>
    %cst_124 = arith.constant dense<0.000000e+00> : vector<2x32xf32>
    %393 = tpu.matmul %392, %98, %cst_124 {dimension_numbers = #tpu.dot_dimension_numbers<[1], [0], [0], [1], [0, 0, 1, 1], [], []>} : vector<2x32xf32>, vector<32x32xf32>, vector<2x32xf32> -> vector<2x32xf32>
    %394 = vector.broadcast %99 : vector<1x32xf32> to vector<2x32xf32>
    %395 = arith.addf %393, %394 : vector<2x32xf32>
    %cst_125 = arith.constant dense<0xFF800000> : vector<2xf32>
    %396 = vector.multi_reduction <maximumf>, %395, %cst_125 [1] : vector<2x32xf32> to vector<2xf32>
    %397 = vector.shape_cast %396 : vector<2xf32> to vector<2x1xf32>
    %398 = vector.broadcast %397 : vector<2x1xf32> to vector<2x32xf32>
    %399 = arith.subf %395, %398 : vector<2x32xf32>
    %400 = math.exp %399 : vector<2x32xf32>
    %cst_126 = arith.constant dense<0.000000e+00> : vector<2xf32>
    %401 = vector.multi_reduction <add>, %400, %cst_126 [1] : vector<2x32xf32> to vector<2xf32>
    %402 = vector.shape_cast %401 : vector<2xf32> to vector<2x1xf32>
    %403 = math.log %402 : vector<2x1xf32>
    %404 = vector.broadcast %403 : vector<2x1xf32> to vector<2x32xf32>
    %405 = arith.subf %399, %404 : vector<2x32xf32>
    %c3 = arith.constant 3 : index
    %c0_127 = arith.constant 0 : index
    %c0_128 = arith.constant 0 : index
    %406 = vector.load %arg23[%c3, %c0_127, %c0_128] : memref<8x2x32xf32, #tpu.memory_space<vmem>>, vector<1x2x32xf32>
    %407 = vector.shape_cast %406 : vector<1x2x32xf32> to vector<2x32xf32>
    %408 = vector.shape_cast %405 : vector<2x32xf32> to vector<1x2x32xf32>
    tpu.vector_store %arg23[%c3, %c0_127, %c0_128], %408 {strides = array<i32>} : memref<8x2x32xf32, #tpu.memory_space<vmem>>, vector<1x2x32xf32>,
    %409 = vector.extract_strided_slice %93 {offsets = [8, 0], sizes = [2, 128], strides = [1, 1]} : vector<16x128xf32> to vector<2x128xf32>
    %cst_129 = arith.constant dense<0.000000e+00> : vector<2x128xf32>
    %410 = tpu.matmul %360, %94, %cst_129 {dimension_numbers = #tpu.dot_dimension_numbers<[1], [0], [0], [1], [0, 0, 1, 1], [], []>} : vector<2x32xf32>, vector<32x128xf32>, vector<2x128xf32> -> vector<2x128xf32>
    %411 = arith.addf %409, %410 : vector<2x128xf32>
    %412 = vector.extract_strided_slice %411 {offsets = [0, 0], sizes = [2, 32], strides = [1, 1]} : vector<2x128xf32> to vector<2x32xf32>
    %413 = arith.negf %412 : vector<2x32xf32>
    %414 = math.exp %413 : vector<2x32xf32>
    %cst_130 = arith.constant 1.000000e+00 : f32
    %415 = vector.broadcast %cst_130 : f32 to vector<2x32xf32>
    %416 = arith.addf %415, %414 : vector<2x32xf32>
    %417 = arith.divf %415, %416 : vector<2x32xf32>
    %418 = vector.extract_strided_slice %411 {offsets = [0, 32], sizes = [2, 32], strides = [1, 1]} : vector<2x128xf32> to vector<2x32xf32>
    %419 = arith.negf %418 : vector<2x32xf32>
    %420 = math.exp %419 : vector<2x32xf32>
    %cst_131 = arith.constant 1.000000e+00 : f32
    %421 = vector.broadcast %cst_131 : f32 to vector<2x32xf32>
    %422 = arith.addf %421, %420 : vector<2x32xf32>
    %423 = arith.divf %421, %422 : vector<2x32xf32>
    %424 = vector.extract_strided_slice %411 {offsets = [0, 64], sizes = [2, 32], strides = [1, 1]} : vector<2x128xf32> to vector<2x32xf32>
    %425 = math.tanh %424 : vector<2x32xf32>
    %426 = vector.extract_strided_slice %411 {offsets = [0, 96], sizes = [2, 32], strides = [1, 1]} : vector<2x128xf32> to vector<2x32xf32>
    %427 = arith.negf %426 : vector<2x32xf32>
    %428 = math.exp %427 : vector<2x32xf32>
    %cst_132 = arith.constant 1.000000e+00 : f32
    %429 = vector.broadcast %cst_132 : f32 to vector<2x32xf32>
    %430 = arith.addf %429, %428 : vector<2x32xf32>
    %431 = arith.divf %429, %430 : vector<2x32xf32>
    %432 = arith.mulf %423, %358 : vector<2x32xf32>
    %433 = arith.mulf %417, %425 : vector<2x32xf32>
    %434 = arith.addf %432, %433 : vector<2x32xf32>
    %435 = math.tanh %434 : vector<2x32xf32>
    %436 = arith.mulf %431, %435 : vector<2x32xf32>
    %437 = vector.extract_strided_slice %100 {offsets = [8, 0], sizes = [2, 32], strides = [1, 1]} : vector<16x32xf32> to vector<2x32xf32>
    %438 = arith.mulf %437, %436 : vector<2x32xf32>
    %cst_133 = arith.constant dense<0.000000e+00> : vector<2x128xf32>
    %439 = tpu.matmul %438, %95, %cst_133 {dimension_numbers = #tpu.dot_dimension_numbers<[1], [0], [0], [1], [0, 0, 1, 1], [], []>} : vector<2x32xf32>, vector<32x128xf32>, vector<2x128xf32> -> vector<2x128xf32>
    %cst_134 = arith.constant dense<0.000000e+00> : vector<2x128xf32>
    %440 = tpu.matmul %392, %96, %cst_134 {dimension_numbers = #tpu.dot_dimension_numbers<[1], [0], [0], [1], [0, 0, 1, 1], [], []>} : vector<2x32xf32>, vector<32x128xf32>, vector<2x128xf32> -> vector<2x128xf32>
    %441 = arith.addf %439, %440 : vector<2x128xf32>
    %442 = vector.broadcast %97 : vector<1x128xf32> to vector<2x128xf32>
    %443 = arith.addf %441, %442 : vector<2x128xf32>
    %444 = vector.extract_strided_slice %443 {offsets = [0, 0], sizes = [2, 32], strides = [1, 1]} : vector<2x128xf32> to vector<2x32xf32>
    %445 = arith.negf %444 : vector<2x32xf32>
    %446 = math.exp %445 : vector<2x32xf32>
    %cst_135 = arith.constant 1.000000e+00 : f32
    %447 = vector.broadcast %cst_135 : f32 to vector<2x32xf32>
    %448 = arith.addf %447, %446 : vector<2x32xf32>
    %449 = arith.divf %447, %448 : vector<2x32xf32>
    %450 = vector.extract_strided_slice %443 {offsets = [0, 32], sizes = [2, 32], strides = [1, 1]} : vector<2x128xf32> to vector<2x32xf32>
    %451 = arith.negf %450 : vector<2x32xf32>
    %452 = math.exp %451 : vector<2x32xf32>
    %cst_136 = arith.constant 1.000000e+00 : f32
    %453 = vector.broadcast %cst_136 : f32 to vector<2x32xf32>
    %454 = arith.addf %453, %452 : vector<2x32xf32>
    %455 = arith.divf %453, %454 : vector<2x32xf32>
    %456 = vector.extract_strided_slice %443 {offsets = [0, 64], sizes = [2, 32], strides = [1, 1]} : vector<2x128xf32> to vector<2x32xf32>
    %457 = math.tanh %456 : vector<2x32xf32>
    %458 = vector.extract_strided_slice %443 {offsets = [0, 96], sizes = [2, 32], strides = [1, 1]} : vector<2x128xf32> to vector<2x32xf32>
    %459 = arith.negf %458 : vector<2x32xf32>
    %460 = math.exp %459 : vector<2x32xf32>
    %cst_137 = arith.constant 1.000000e+00 : f32
    %461 = vector.broadcast %cst_137 : f32 to vector<2x32xf32>
    %462 = arith.addf %461, %460 : vector<2x32xf32>
    %463 = arith.divf %461, %462 : vector<2x32xf32>
    %464 = arith.mulf %455, %390 : vector<2x32xf32>
    %465 = arith.mulf %449, %457 : vector<2x32xf32>
    %466 = arith.addf %464, %465 : vector<2x32xf32>
    %467 = math.tanh %466 : vector<2x32xf32>
    %468 = arith.mulf %463, %467 : vector<2x32xf32>
    %cst_138 = arith.constant dense<0.000000e+00> : vector<2x32xf32>
    %469 = tpu.matmul %468, %98, %cst_138 {dimension_numbers = #tpu.dot_dimension_numbers<[1], [0], [0], [1], [0, 0, 1, 1], [], []>} : vector<2x32xf32>, vector<32x32xf32>, vector<2x32xf32> -> vector<2x32xf32>
    %470 = vector.broadcast %99 : vector<1x32xf32> to vector<2x32xf32>
    %471 = arith.addf %469, %470 : vector<2x32xf32>
    %cst_139 = arith.constant dense<0xFF800000> : vector<2xf32>
    %472 = vector.multi_reduction <maximumf>, %471, %cst_139 [1] : vector<2x32xf32> to vector<2xf32>
    %473 = vector.shape_cast %472 : vector<2xf32> to vector<2x1xf32>
    %474 = vector.broadcast %473 : vector<2x1xf32> to vector<2x32xf32>
    %475 = arith.subf %471, %474 : vector<2x32xf32>
    %476 = math.exp %475 : vector<2x32xf32>
    %cst_140 = arith.constant dense<0.000000e+00> : vector<2xf32>
    %477 = vector.multi_reduction <add>, %476, %cst_140 [1] : vector<2x32xf32> to vector<2xf32>
    %478 = vector.shape_cast %477 : vector<2xf32> to vector<2x1xf32>
    %479 = math.log %478 : vector<2x1xf32>
    %480 = vector.broadcast %479 : vector<2x1xf32> to vector<2x32xf32>
    %481 = arith.subf %475, %480 : vector<2x32xf32>
    %c4 = arith.constant 4 : index
    %c0_141 = arith.constant 0 : index
    %c0_142 = arith.constant 0 : index
    %482 = vector.load %arg23[%c4, %c0_141, %c0_142] : memref<8x2x32xf32, #tpu.memory_space<vmem>>, vector<1x2x32xf32>
    %483 = vector.shape_cast %482 : vector<1x2x32xf32> to vector<2x32xf32>
    %484 = vector.shape_cast %481 : vector<2x32xf32> to vector<1x2x32xf32>
    tpu.vector_store %arg23[%c4, %c0_141, %c0_142], %484 {strides = array<i32>} : memref<8x2x32xf32, #tpu.memory_space<vmem>>, vector<1x2x32xf32>,
    %485 = vector.extract_strided_slice %93 {offsets = [10, 0], sizes = [2, 128], strides = [1, 1]} : vector<16x128xf32> to vector<2x128xf32>
    %cst_143 = arith.constant dense<0.000000e+00> : vector<2x128xf32>
    %486 = tpu.matmul %436, %94, %cst_143 {dimension_numbers = #tpu.dot_dimension_numbers<[1], [0], [0], [1], [0, 0, 1, 1], [], []>} : vector<2x32xf32>, vector<32x128xf32>, vector<2x128xf32> -> vector<2x128xf32>
    %487 = arith.addf %485, %486 : vector<2x128xf32>
    %488 = vector.extract_strided_slice %487 {offsets = [0, 0], sizes = [2, 32], strides = [1, 1]} : vector<2x128xf32> to vector<2x32xf32>
    %489 = arith.negf %488 : vector<2x32xf32>
    %490 = math.exp %489 : vector<2x32xf32>
    %cst_144 = arith.constant 1.000000e+00 : f32
    %491 = vector.broadcast %cst_144 : f32 to vector<2x32xf32>
    %492 = arith.addf %491, %490 : vector<2x32xf32>
    %493 = arith.divf %491, %492 : vector<2x32xf32>
    %494 = vector.extract_strided_slice %487 {offsets = [0, 32], sizes = [2, 32], strides = [1, 1]} : vector<2x128xf32> to vector<2x32xf32>
    %495 = arith.negf %494 : vector<2x32xf32>
    %496 = math.exp %495 : vector<2x32xf32>
    %cst_145 = arith.constant 1.000000e+00 : f32
    %497 = vector.broadcast %cst_145 : f32 to vector<2x32xf32>
    %498 = arith.addf %497, %496 : vector<2x32xf32>
    %499 = arith.divf %497, %498 : vector<2x32xf32>
    %500 = vector.extract_strided_slice %487 {offsets = [0, 64], sizes = [2, 32], strides = [1, 1]} : vector<2x128xf32> to vector<2x32xf32>
    %501 = math.tanh %500 : vector<2x32xf32>
    %502 = vector.extract_strided_slice %487 {offsets = [0, 96], sizes = [2, 32], strides = [1, 1]} : vector<2x128xf32> to vector<2x32xf32>
    %503 = arith.negf %502 : vector<2x32xf32>
    %504 = math.exp %503 : vector<2x32xf32>
    %cst_146 = arith.constant 1.000000e+00 : f32
    %505 = vector.broadcast %cst_146 : f32 to vector<2x32xf32>
    %506 = arith.addf %505, %504 : vector<2x32xf32>
    %507 = arith.divf %505, %506 : vector<2x32xf32>
    %508 = arith.mulf %499, %434 : vector<2x32xf32>
    %509 = arith.mulf %493, %501 : vector<2x32xf32>
    %510 = arith.addf %508, %509 : vector<2x32xf32>
    %511 = math.tanh %510 : vector<2x32xf32>
    %512 = arith.mulf %507, %511 : vector<2x32xf32>
    %513 = vector.extract_strided_slice %100 {offsets = [10, 0], sizes = [2, 32], strides = [1, 1]} : vector<16x32xf32> to vector<2x32xf32>
    %514 = arith.mulf %513, %512 : vector<2x32xf32>
    %cst_147 = arith.constant dense<0.000000e+00> : vector<2x128xf32>
    %515 = tpu.matmul %514, %95, %cst_147 {dimension_numbers = #tpu.dot_dimension_numbers<[1], [0], [0], [1], [0, 0, 1, 1], [], []>} : vector<2x32xf32>, vector<32x128xf32>, vector<2x128xf32> -> vector<2x128xf32>
    %cst_148 = arith.constant dense<0.000000e+00> : vector<2x128xf32>
    %516 = tpu.matmul %468, %96, %cst_148 {dimension_numbers = #tpu.dot_dimension_numbers<[1], [0], [0], [1], [0, 0, 1, 1], [], []>} : vector<2x32xf32>, vector<32x128xf32>, vector<2x128xf32> -> vector<2x128xf32>
    %517 = arith.addf %515, %516 : vector<2x128xf32>
    %518 = vector.broadcast %97 : vector<1x128xf32> to vector<2x128xf32>
    %519 = arith.addf %517, %518 : vector<2x128xf32>
    %520 = vector.extract_strided_slice %519 {offsets = [0, 0], sizes = [2, 32], strides = [1, 1]} : vector<2x128xf32> to vector<2x32xf32>
    %521 = arith.negf %520 : vector<2x32xf32>
    %522 = math.exp %521 : vector<2x32xf32>
    %cst_149 = arith.constant 1.000000e+00 : f32
    %523 = vector.broadcast %cst_149 : f32 to vector<2x32xf32>
    %524 = arith.addf %523, %522 : vector<2x32xf32>
    %525 = arith.divf %523, %524 : vector<2x32xf32>
    %526 = vector.extract_strided_slice %519 {offsets = [0, 32], sizes = [2, 32], strides = [1, 1]} : vector<2x128xf32> to vector<2x32xf32>
    %527 = arith.negf %526 : vector<2x32xf32>
    %528 = math.exp %527 : vector<2x32xf32>
    %cst_150 = arith.constant 1.000000e+00 : f32
    %529 = vector.broadcast %cst_150 : f32 to vector<2x32xf32>
    %530 = arith.addf %529, %528 : vector<2x32xf32>
    %531 = arith.divf %529, %530 : vector<2x32xf32>
    %532 = vector.extract_strided_slice %519 {offsets = [0, 64], sizes = [2, 32], strides = [1, 1]} : vector<2x128xf32> to vector<2x32xf32>
    %533 = math.tanh %532 : vector<2x32xf32>
    %534 = vector.extract_strided_slice %519 {offsets = [0, 96], sizes = [2, 32], strides = [1, 1]} : vector<2x128xf32> to vector<2x32xf32>
    %535 = arith.negf %534 : vector<2x32xf32>
    %536 = math.exp %535 : vector<2x32xf32>
    %cst_151 = arith.constant 1.000000e+00 : f32
    %537 = vector.broadcast %cst_151 : f32 to vector<2x32xf32>
    %538 = arith.addf %537, %536 : vector<2x32xf32>
    %539 = arith.divf %537, %538 : vector<2x32xf32>
    %540 = arith.mulf %531, %466 : vector<2x32xf32>
    %541 = arith.mulf %525, %533 : vector<2x32xf32>
    %542 = arith.addf %540, %541 : vector<2x32xf32>
    %543 = math.tanh %542 : vector<2x32xf32>
    %544 = arith.mulf %539, %543 : vector<2x32xf32>
    %cst_152 = arith.constant dense<0.000000e+00> : vector<2x32xf32>
    %545 = tpu.matmul %544, %98, %cst_152 {dimension_numbers = #tpu.dot_dimension_numbers<[1], [0], [0], [1], [0, 0, 1, 1], [], []>} : vector<2x32xf32>, vector<32x32xf32>, vector<2x32xf32> -> vector<2x32xf32>
    %546 = vector.broadcast %99 : vector<1x32xf32> to vector<2x32xf32>
    %547 = arith.addf %545, %546 : vector<2x32xf32>
    %cst_153 = arith.constant dense<0xFF800000> : vector<2xf32>
    %548 = vector.multi_reduction <maximumf>, %547, %cst_153 [1] : vector<2x32xf32> to vector<2xf32>
    %549 = vector.shape_cast %548 : vector<2xf32> to vector<2x1xf32>
    %550 = vector.broadcast %549 : vector<2x1xf32> to vector<2x32xf32>
    %551 = arith.subf %547, %550 : vector<2x32xf32>
    %552 = math.exp %551 : vector<2x32xf32>
    %cst_154 = arith.constant dense<0.000000e+00> : vector<2xf32>
    %553 = vector.multi_reduction <add>, %552, %cst_154 [1] : vector<2x32xf32> to vector<2xf32>
    %554 = vector.shape_cast %553 : vector<2xf32> to vector<2x1xf32>
    %555 = math.log %554 : vector<2x1xf32>
    %556 = vector.broadcast %555 : vector<2x1xf32> to vector<2x32xf32>
    %557 = arith.subf %551, %556 : vector<2x32xf32>
    %c5 = arith.constant 5 : index
    %c0_155 = arith.constant 0 : index
    %c0_156 = arith.constant 0 : index
    %558 = vector.load %arg23[%c5, %c0_155, %c0_156] : memref<8x2x32xf32, #tpu.memory_space<vmem>>, vector<1x2x32xf32>
    %559 = vector.shape_cast %558 : vector<1x2x32xf32> to vector<2x32xf32>
    %560 = vector.shape_cast %557 : vector<2x32xf32> to vector<1x2x32xf32>
    tpu.vector_store %arg23[%c5, %c0_155, %c0_156], %560 {strides = array<i32>} : memref<8x2x32xf32, #tpu.memory_space<vmem>>, vector<1x2x32xf32>,
    %561 = vector.extract_strided_slice %93 {offsets = [12, 0], sizes = [2, 128], strides = [1, 1]} : vector<16x128xf32> to vector<2x128xf32>
    %cst_157 = arith.constant dense<0.000000e+00> : vector<2x128xf32>
    %562 = tpu.matmul %512, %94, %cst_157 {dimension_numbers = #tpu.dot_dimension_numbers<[1], [0], [0], [1], [0, 0, 1, 1], [], []>} : vector<2x32xf32>, vector<32x128xf32>, vector<2x128xf32> -> vector<2x128xf32>
    %563 = arith.addf %561, %562 : vector<2x128xf32>
    %564 = vector.extract_strided_slice %563 {offsets = [0, 0], sizes = [2, 32], strides = [1, 1]} : vector<2x128xf32> to vector<2x32xf32>
    %565 = arith.negf %564 : vector<2x32xf32>
    %566 = math.exp %565 : vector<2x32xf32>
    %cst_158 = arith.constant 1.000000e+00 : f32
    %567 = vector.broadcast %cst_158 : f32 to vector<2x32xf32>
    %568 = arith.addf %567, %566 : vector<2x32xf32>
    %569 = arith.divf %567, %568 : vector<2x32xf32>
    %570 = vector.extract_strided_slice %563 {offsets = [0, 32], sizes = [2, 32], strides = [1, 1]} : vector<2x128xf32> to vector<2x32xf32>
    %571 = arith.negf %570 : vector<2x32xf32>
    %572 = math.exp %571 : vector<2x32xf32>
    %cst_159 = arith.constant 1.000000e+00 : f32
    %573 = vector.broadcast %cst_159 : f32 to vector<2x32xf32>
    %574 = arith.addf %573, %572 : vector<2x32xf32>
    %575 = arith.divf %573, %574 : vector<2x32xf32>
    %576 = vector.extract_strided_slice %563 {offsets = [0, 64], sizes = [2, 32], strides = [1, 1]} : vector<2x128xf32> to vector<2x32xf32>
    %577 = math.tanh %576 : vector<2x32xf32>
    %578 = vector.extract_strided_slice %563 {offsets = [0, 96], sizes = [2, 32], strides = [1, 1]} : vector<2x128xf32> to vector<2x32xf32>
    %579 = arith.negf %578 : vector<2x32xf32>
    %580 = math.exp %579 : vector<2x32xf32>
    %cst_160 = arith.constant 1.000000e+00 : f32
    %581 = vector.broadcast %cst_160 : f32 to vector<2x32xf32>
    %582 = arith.addf %581, %580 : vector<2x32xf32>
    %583 = arith.divf %581, %582 : vector<2x32xf32>
    %584 = arith.mulf %575, %510 : vector<2x32xf32>
    %585 = arith.mulf %569, %577 : vector<2x32xf32>
    %586 = arith.addf %584, %585 : vector<2x32xf32>
    %587 = math.tanh %586 : vector<2x32xf32>
    %588 = arith.mulf %583, %587 : vector<2x32xf32>
    %589 = vector.extract_strided_slice %100 {offsets = [12, 0], sizes = [2, 32], strides = [1, 1]} : vector<16x32xf32> to vector<2x32xf32>
    %590 = arith.mulf %589, %588 : vector<2x32xf32>
    %cst_161 = arith.constant dense<0.000000e+00> : vector<2x128xf32>
    %591 = tpu.matmul %590, %95, %cst_161 {dimension_numbers = #tpu.dot_dimension_numbers<[1], [0], [0], [1], [0, 0, 1, 1], [], []>} : vector<2x32xf32>, vector<32x128xf32>, vector<2x128xf32> -> vector<2x128xf32>
    %cst_162 = arith.constant dense<0.000000e+00> : vector<2x128xf32>
    %592 = tpu.matmul %544, %96, %cst_162 {dimension_numbers = #tpu.dot_dimension_numbers<[1], [0], [0], [1], [0, 0, 1, 1], [], []>} : vector<2x32xf32>, vector<32x128xf32>, vector<2x128xf32> -> vector<2x128xf32>
    %593 = arith.addf %591, %592 : vector<2x128xf32>
    %594 = vector.broadcast %97 : vector<1x128xf32> to vector<2x128xf32>
    %595 = arith.addf %593, %594 : vector<2x128xf32>
    %596 = vector.extract_strided_slice %595 {offsets = [0, 0], sizes = [2, 32], strides = [1, 1]} : vector<2x128xf32> to vector<2x32xf32>
    %597 = arith.negf %596 : vector<2x32xf32>
    %598 = math.exp %597 : vector<2x32xf32>
    %cst_163 = arith.constant 1.000000e+00 : f32
    %599 = vector.broadcast %cst_163 : f32 to vector<2x32xf32>
    %600 = arith.addf %599, %598 : vector<2x32xf32>
    %601 = arith.divf %599, %600 : vector<2x32xf32>
    %602 = vector.extract_strided_slice %595 {offsets = [0, 32], sizes = [2, 32], strides = [1, 1]} : vector<2x128xf32> to vector<2x32xf32>
    %603 = arith.negf %602 : vector<2x32xf32>
    %604 = math.exp %603 : vector<2x32xf32>
    %cst_164 = arith.constant 1.000000e+00 : f32
    %605 = vector.broadcast %cst_164 : f32 to vector<2x32xf32>
    %606 = arith.addf %605, %604 : vector<2x32xf32>
    %607 = arith.divf %605, %606 : vector<2x32xf32>
    %608 = vector.extract_strided_slice %595 {offsets = [0, 64], sizes = [2, 32], strides = [1, 1]} : vector<2x128xf32> to vector<2x32xf32>
    %609 = math.tanh %608 : vector<2x32xf32>
    %610 = vector.extract_strided_slice %595 {offsets = [0, 96], sizes = [2, 32], strides = [1, 1]} : vector<2x128xf32> to vector<2x32xf32>
    %611 = arith.negf %610 : vector<2x32xf32>
    %612 = math.exp %611 : vector<2x32xf32>
    %cst_165 = arith.constant 1.000000e+00 : f32
    %613 = vector.broadcast %cst_165 : f32 to vector<2x32xf32>
    %614 = arith.addf %613, %612 : vector<2x32xf32>
    %615 = arith.divf %613, %614 : vector<2x32xf32>
    %616 = arith.mulf %607, %542 : vector<2x32xf32>
    %617 = arith.mulf %601, %609 : vector<2x32xf32>
    %618 = arith.addf %616, %617 : vector<2x32xf32>
    %619 = math.tanh %618 : vector<2x32xf32>
    %620 = arith.mulf %615, %619 : vector<2x32xf32>
    %cst_166 = arith.constant dense<0.000000e+00> : vector<2x32xf32>
    %621 = tpu.matmul %620, %98, %cst_166 {dimension_numbers = #tpu.dot_dimension_numbers<[1], [0], [0], [1], [0, 0, 1, 1], [], []>} : vector<2x32xf32>, vector<32x32xf32>, vector<2x32xf32> -> vector<2x32xf32>
    %622 = vector.broadcast %99 : vector<1x32xf32> to vector<2x32xf32>
    %623 = arith.addf %621, %622 : vector<2x32xf32>
    %cst_167 = arith.constant dense<0xFF800000> : vector<2xf32>
    %624 = vector.multi_reduction <maximumf>, %623, %cst_167 [1] : vector<2x32xf32> to vector<2xf32>
    %625 = vector.shape_cast %624 : vector<2xf32> to vector<2x1xf32>
    %626 = vector.broadcast %625 : vector<2x1xf32> to vector<2x32xf32>
    %627 = arith.subf %623, %626 : vector<2x32xf32>
    %628 = math.exp %627 : vector<2x32xf32>
    %cst_168 = arith.constant dense<0.000000e+00> : vector<2xf32>
    %629 = vector.multi_reduction <add>, %628, %cst_168 [1] : vector<2x32xf32> to vector<2xf32>
    %630 = vector.shape_cast %629 : vector<2xf32> to vector<2x1xf32>
    %631 = math.log %630 : vector<2x1xf32>
    %632 = vector.broadcast %631 : vector<2x1xf32> to vector<2x32xf32>
    %633 = arith.subf %627, %632 : vector<2x32xf32>
    %c6 = arith.constant 6 : index
    %c0_169 = arith.constant 0 : index
    %c0_170 = arith.constant 0 : index
    %634 = vector.load %arg23[%c6, %c0_169, %c0_170] : memref<8x2x32xf32, #tpu.memory_space<vmem>>, vector<1x2x32xf32>
    %635 = vector.shape_cast %634 : vector<1x2x32xf32> to vector<2x32xf32>
    %636 = vector.shape_cast %633 : vector<2x32xf32> to vector<1x2x32xf32>
    tpu.vector_store %arg23[%c6, %c0_169, %c0_170], %636 {strides = array<i32>} : memref<8x2x32xf32, #tpu.memory_space<vmem>>, vector<1x2x32xf32>,
    %637 = vector.extract_strided_slice %93 {offsets = [14, 0], sizes = [2, 128], strides = [1, 1]} : vector<16x128xf32> to vector<2x128xf32>
    %cst_171 = arith.constant dense<0.000000e+00> : vector<2x128xf32>
    %638 = tpu.matmul %588, %94, %cst_171 {dimension_numbers = #tpu.dot_dimension_numbers<[1], [0], [0], [1], [0, 0, 1, 1], [], []>} : vector<2x32xf32>, vector<32x128xf32>, vector<2x128xf32> -> vector<2x128xf32>
    %639 = arith.addf %637, %638 : vector<2x128xf32>
    %640 = vector.extract_strided_slice %639 {offsets = [0, 0], sizes = [2, 32], strides = [1, 1]} : vector<2x128xf32> to vector<2x32xf32>
    %641 = arith.negf %640 : vector<2x32xf32>
    %642 = math.exp %641 : vector<2x32xf32>
    %cst_172 = arith.constant 1.000000e+00 : f32
    %643 = vector.broadcast %cst_172 : f32 to vector<2x32xf32>
    %644 = arith.addf %643, %642 : vector<2x32xf32>
    %645 = arith.divf %643, %644 : vector<2x32xf32>
    %646 = vector.extract_strided_slice %639 {offsets = [0, 32], sizes = [2, 32], strides = [1, 1]} : vector<2x128xf32> to vector<2x32xf32>
    %647 = arith.negf %646 : vector<2x32xf32>
    %648 = math.exp %647 : vector<2x32xf32>
    %cst_173 = arith.constant 1.000000e+00 : f32
    %649 = vector.broadcast %cst_173 : f32 to vector<2x32xf32>
    %650 = arith.addf %649, %648 : vector<2x32xf32>
    %651 = arith.divf %649, %650 : vector<2x32xf32>
    %652 = vector.extract_strided_slice %639 {offsets = [0, 64], sizes = [2, 32], strides = [1, 1]} : vector<2x128xf32> to vector<2x32xf32>
    %653 = math.tanh %652 : vector<2x32xf32>
    %654 = vector.extract_strided_slice %639 {offsets = [0, 96], sizes = [2, 32], strides = [1, 1]} : vector<2x128xf32> to vector<2x32xf32>
    %655 = arith.negf %654 : vector<2x32xf32>
    %656 = math.exp %655 : vector<2x32xf32>
    %cst_174 = arith.constant 1.000000e+00 : f32
    %657 = vector.broadcast %cst_174 : f32 to vector<2x32xf32>
    %658 = arith.addf %657, %656 : vector<2x32xf32>
    %659 = arith.divf %657, %658 : vector<2x32xf32>
    %660 = arith.mulf %651, %586 : vector<2x32xf32>
    %661 = arith.mulf %645, %653 : vector<2x32xf32>
    %662 = arith.addf %660, %661 : vector<2x32xf32>
    %663 = math.tanh %662 : vector<2x32xf32>
    %664 = arith.mulf %659, %663 : vector<2x32xf32>
    %665 = vector.extract_strided_slice %100 {offsets = [14, 0], sizes = [2, 32], strides = [1, 1]} : vector<16x32xf32> to vector<2x32xf32>
    %666 = arith.mulf %665, %664 : vector<2x32xf32>
    %cst_175 = arith.constant dense<0.000000e+00> : vector<2x128xf32>
    %667 = tpu.matmul %666, %95, %cst_175 {dimension_numbers = #tpu.dot_dimension_numbers<[1], [0], [0], [1], [0, 0, 1, 1], [], []>} : vector<2x32xf32>, vector<32x128xf32>, vector<2x128xf32> -> vector<2x128xf32>
    %cst_176 = arith.constant dense<0.000000e+00> : vector<2x128xf32>
    %668 = tpu.matmul %620, %96, %cst_176 {dimension_numbers = #tpu.dot_dimension_numbers<[1], [0], [0], [1], [0, 0, 1, 1], [], []>} : vector<2x32xf32>, vector<32x128xf32>, vector<2x128xf32> -> vector<2x128xf32>
    %669 = arith.addf %667, %668 : vector<2x128xf32>
    %670 = vector.broadcast %97 : vector<1x128xf32> to vector<2x128xf32>
    %671 = arith.addf %669, %670 : vector<2x128xf32>
    %672 = vector.extract_strided_slice %671 {offsets = [0, 0], sizes = [2, 32], strides = [1, 1]} : vector<2x128xf32> to vector<2x32xf32>
    %673 = arith.negf %672 : vector<2x32xf32>
    %674 = math.exp %673 : vector<2x32xf32>
    %cst_177 = arith.constant 1.000000e+00 : f32
    %675 = vector.broadcast %cst_177 : f32 to vector<2x32xf32>
    %676 = arith.addf %675, %674 : vector<2x32xf32>
    %677 = arith.divf %675, %676 : vector<2x32xf32>
    %678 = vector.extract_strided_slice %671 {offsets = [0, 32], sizes = [2, 32], strides = [1, 1]} : vector<2x128xf32> to vector<2x32xf32>
    %679 = arith.negf %678 : vector<2x32xf32>
    %680 = math.exp %679 : vector<2x32xf32>
    %cst_178 = arith.constant 1.000000e+00 : f32
    %681 = vector.broadcast %cst_178 : f32 to vector<2x32xf32>
    %682 = arith.addf %681, %680 : vector<2x32xf32>
    %683 = arith.divf %681, %682 : vector<2x32xf32>
    %684 = vector.extract_strided_slice %671 {offsets = [0, 64], sizes = [2, 32], strides = [1, 1]} : vector<2x128xf32> to vector<2x32xf32>
    %685 = math.tanh %684 : vector<2x32xf32>
    %686 = vector.extract_strided_slice %671 {offsets = [0, 96], sizes = [2, 32], strides = [1, 1]} : vector<2x128xf32> to vector<2x32xf32>
    %687 = arith.negf %686 : vector<2x32xf32>
    %688 = math.exp %687 : vector<2x32xf32>
    %cst_179 = arith.constant 1.000000e+00 : f32
    %689 = vector.broadcast %cst_179 : f32 to vector<2x32xf32>
    %690 = arith.addf %689, %688 : vector<2x32xf32>
    %691 = arith.divf %689, %690 : vector<2x32xf32>
    %692 = arith.mulf %683, %618 : vector<2x32xf32>
    %693 = arith.mulf %677, %685 : vector<2x32xf32>
    %694 = arith.addf %692, %693 : vector<2x32xf32>
    %695 = math.tanh %694 : vector<2x32xf32>
    %696 = arith.mulf %691, %695 : vector<2x32xf32>
    %cst_180 = arith.constant dense<0.000000e+00> : vector<2x32xf32>
    %697 = tpu.matmul %696, %98, %cst_180 {dimension_numbers = #tpu.dot_dimension_numbers<[1], [0], [0], [1], [0, 0, 1, 1], [], []>} : vector<2x32xf32>, vector<32x32xf32>, vector<2x32xf32> -> vector<2x32xf32>
    %698 = vector.broadcast %99 : vector<1x32xf32> to vector<2x32xf32>
    %699 = arith.addf %697, %698 : vector<2x32xf32>
    %cst_181 = arith.constant dense<0xFF800000> : vector<2xf32>
    %700 = vector.multi_reduction <maximumf>, %699, %cst_181 [1] : vector<2x32xf32> to vector<2xf32>
    %701 = vector.shape_cast %700 : vector<2xf32> to vector<2x1xf32>
    %702 = vector.broadcast %701 : vector<2x1xf32> to vector<2x32xf32>
    %703 = arith.subf %699, %702 : vector<2x32xf32>
    %704 = math.exp %703 : vector<2x32xf32>
    %cst_182 = arith.constant dense<0.000000e+00> : vector<2xf32>
    %705 = vector.multi_reduction <add>, %704, %cst_182 [1] : vector<2x32xf32> to vector<2xf32>
    %706 = vector.shape_cast %705 : vector<2xf32> to vector<2x1xf32>
    %707 = math.log %706 : vector<2x1xf32>
    %708 = vector.broadcast %707 : vector<2x1xf32> to vector<2x32xf32>
    %709 = arith.subf %703, %708 : vector<2x32xf32>
    %c7 = arith.constant 7 : index
    %c0_183 = arith.constant 0 : index
    %c0_184 = arith.constant 0 : index
    %710 = vector.load %arg23[%c7, %c0_183, %c0_184] : memref<8x2x32xf32, #tpu.memory_space<vmem>>, vector<1x2x32xf32>
    %711 = vector.shape_cast %710 : vector<1x2x32xf32> to vector<2x32xf32>
    %712 = vector.shape_cast %709 : vector<2x32xf32> to vector<1x2x32xf32>
    tpu.vector_store %arg23[%c7, %c0_183, %c0_184], %712 {strides = array<i32>} : memref<8x2x32xf32, #tpu.memory_space<vmem>>, vector<1x2x32xf32>,
    return
  }
}

</mosaic_0001>

<llo_original>
// kernel: tpu_custom_call.1
$region0: #{tpu_custom_call.1}
  #allocation0 [shape = 'u32[]', space=smem, size = 0x4, offset = 0x4, fixed_abs, tag = 'smem constant byte address 0x4 - core index']
  #allocation1 [shape = 'u32[72,128]{1,0:T(1,128)}', space=vmem, size = 0x9000, scoped, tag = 'internal scratch']
  %s0 = inlined_call_operand.hbm [shape: f32[16,32], index: 0, kind: input, shape index: {}]
  %s1 = inlined_call_operand.hbm [shape: f32[2,8], index: 1, kind: input, shape index: {}]
  %s2 = inlined_call_operand.vmem [shape: f32[1,32], index: 2, kind: input, shape index: {}]
  %s3 = inlined_call_operand.hbm [shape: f32[16,32], index: 3, kind: input, shape index: {}]
  %s4 = inlined_call_operand.hbm [shape: f32[16,32], index: 4, kind: input, shape index: {}]
  %s5 = inlined_call_operand.hbm [shape: f32[32,32], index: 5, kind: input, shape index: {}]
  %s6 = inlined_call_operand.hbm [shape: f32[1,32], index: 6, kind: input, shape index: {}]
  %s7 = inlined_call_operand.hbm [shape: f32[32,32], index: 7, kind: input, shape index: {}]
  %s8 = inlined_call_operand.hbm [shape: f32[1,32], index: 8, kind: input, shape index: {}]
  %s9 = inlined_call_operand.hbm [shape: f32[32,32], index: 9, kind: input, shape index: {}]
  %s10 = inlined_call_operand.vmem [shape: f32[8,32], index: 10, kind: input, shape index: {}]
  %s11 = inlined_call_operand.vmem [shape: f32[1,32], index: 11, kind: input, shape index: {}]
  %s12 = inlined_call_operand.hbm [shape: f32[32,32], index: 12, kind: input, shape index: {}]
  %s13 = inlined_call_operand.vmem [shape: f32[1,32], index: 13, kind: input, shape index: {}]
  %s14 = inlined_call_operand.hbm [shape: f32[32,32], index: 14, kind: input, shape index: {}]
  %s15 = inlined_call_operand.hbm [shape: f32[32,128], index: 15, kind: input, shape index: {}]
  %s16 = inlined_call_operand.hbm [shape: f32[32,128], index: 16, kind: input, shape index: {}]
  %s17 = inlined_call_operand.vmem [shape: f32[1,128], index: 17, kind: input, shape index: {}]
  %s18 = inlined_call_operand.hbm [shape: f32[32,128], index: 18, kind: input, shape index: {}]
  %s19 = inlined_call_operand.hbm [shape: f32[32,128], index: 19, kind: input, shape index: {}]
  %s20 = inlined_call_operand.vmem [shape: f32[1,128], index: 20, kind: input, shape index: {}]
  %s21 = inlined_call_operand.hbm [shape: f32[32,32], index: 21, kind: input, shape index: {}]
  %s22 = inlined_call_operand.vmem [shape: f32[1,32], index: 22, kind: input, shape index: {}]
  %s23 = inlined_call_operand.hbm [shape: f32[8,2,32], index: 23, kind: output, shape index: {}]
  %s24 = sld [smem:[#allocation0]]
  $region166: #{tpu_custom_call.1} parent=0
    _
  %s26 = ssub.s32 1, %s24
  %s27 = scalar_select 0, %s26, %s24
  $region1: #{tpu_custom_call.1} parent=0
    #allocation2 [shape = 'u8[8192]{0}', space=vmem, size = 0x2000, scoped, tag = 'input window, operand 0, single buffered']
    #allocation3 [shape = 's32[1]{0}', space=sflag, size = 0x4, scoped, tag = 'scoped memory for tpu_custom_call.1']
    #allocation4 [shape = 's32[1]{0}', space=sflag, size = 0x4, scoped, tag = 'scoped memory for tpu_custom_call.1']
    #allocation5 [shape = 'u8[1024]{0}', space=vmem, size = 0x400, scoped, tag = 'input window, operand 1, single buffered']
    #allocation6 [shape = 's32[1]{0}', space=sflag, size = 0x4, scoped, tag = 'scoped memory for tpu_custom_call.1']
    #allocation7 [shape = 'u8[8192]{0}', space=vmem, size = 0x2000, scoped, tag = 'input window, operand 3, single buffered']
    #allocation8 [shape = 'u8[8192]{0}', space=vmem, size = 0x2000, scoped, tag = 'input window, operand 4, single buffered']
    #allocation9 [shape = 's32[1]{0}', space=sflag, size = 0x4, scoped, tag = 'scoped memory for tpu_custom_call.1']
    #allocation10 [shape = 'u8[16384]{0}', space=vmem, size = 0x4000, scoped, tag = 'input window, operand 5, single buffered']
    #allocation11 [shape = 'u8[512]{0}', space=vmem, size = 0x400, scoped, tag = 'input window, operand 6, single buffered']
    #allocation12 [shape = 's32[1]{0}', space=sflag, size = 0x4, scoped, tag = 'scoped memory for tpu_custom_call.1']
    #allocation13 [shape = 'u8[16384]{0}', space=vmem, size = 0x4000, scoped, tag = 'input window, operand 7, single buffered']
    #allocation14 [shape = 'u8[512]{0}', space=vmem, size = 0x400, scoped, tag = 'input window, operand 8, single buffered']
    #allocation15 [shape = 's32[1]{0}', space=sflag, size = 0x4, scoped, tag = 'scoped memory for tpu_custom_call.1']
    #allocation16 [shape = 'u8[16384]{0}', space=vmem, size = 0x4000, scoped, tag = 'input window, operand 9, single buffered']
    #allocation17 [shape = 'u8[16384]{0}', space=vmem, size = 0x4000, scoped, tag = 'input window, operand 12, single buffered']
    #allocation18 [shape = 's32[1]{0}', space=sflag, size = 0x4, scoped, tag = 'scoped memory for tpu_custom_call.1']
    #allocation19 [shape = 'u8[16384]{0}', space=vmem, size = 0x4000, scoped, tag = 'input window, operand 14, single buffered']
    #allocation20 [shape = 'u8[16384]{0}', space=vmem, size = 0x4000, scoped, tag = 'input window, operand 15, single buffered']
    #allocation21 [shape = 's32[1]{0}', space=sflag, size = 0x4, scoped, tag = 'scoped memory for tpu_custom_call.1']
    #allocation22 [shape = 'u8[16384]{0}', space=vmem, size = 0x4000, scoped, tag = 'input window, operand 16, single buffered']
    #allocation23 [shape = 'u8[16384]{0}', space=vmem, size = 0x4000, scoped, tag = 'input window, operand 18, single buffered']
    #allocation24 [shape = 's32[1]{0}', space=sflag, size = 0x4, scoped, tag = 'scoped memory for tpu_custom_call.1']
    #allocation25 [shape = 'u8[16384]{0}', space=vmem, size = 0x4000, scoped, tag = 'input window, operand 19, single buffered']
    #allocation26 [shape = 'u8[16384]{0}', space=vmem, size = 0x4000, scoped, tag = 'input window, operand 21, single buffered']
    #allocation27 [shape = 's32[1]{0}', space=sflag, size = 0x4, scoped, tag = 'scoped memory for tpu_custom_call.1']
    #allocation28 [shape = 'u8[8192]{0}', space=vmem, size = 0x2000, scoped, tag = 'output window, operand 0, single buffered']
    %28 = vsyncpa [#allocation3], 0
    %29 = vsyncpa [#allocation6], 0
    %30 = vsyncpa [#allocation9], 0
    %31 = vsyncpa [#allocation12], 0
    %32 = vsyncpa [#allocation15], 0
    %33 = vsyncpa [#allocation18], 0
    %34 = vsyncpa [#allocation21], 0
    %35 = vsyncpa [#allocation24], 0
    %36 = vsyncpa [#allocation27], 0
    %37 = vsyncpa [#allocation4], 0
    // Predicated region
    $region2: #{tpu_custom_call.1} parent=1 // pred_check
      _
    $region3: #{tpu_custom_call.1} parent=1 // pred_check_branch
      %39 = sbr.rel (0) target = $region5
    $region4: #{tpu_custom_call.1} parent=1 // pred_region
      %41 = vsyncadd [#allocation3], 0
      %s42 = sshll.u32 %s0, 4
      %s43 = int_to_ptr.hbm [resolvable:$true] %s42
      %s44 = sshll.u32 [#allocation2], 4
      %s45 = int_to_ptr.vmem [resolvable:$true] %s44
      %50 = dma.hbm_to_vmem [thread:$0]  %s43, 256, %s45, [#allocation3], 128, 128, 8
    $region5: #{tpu_custom_call.1} parent=1 // pred_fallthru
      _
    // Predicated region
    $region6: #{tpu_custom_call.1} parent=1 // pred_check
      _
    $region7: #{tpu_custom_call.1} parent=1 // pred_check_branch
      %52 = sbr.rel (0) target = $region9
    $region8: #{tpu_custom_call.1} parent=1 // pred_region
      %54 = vsyncadd [#allocation6], 0
      %s56 = sshll.u32 %s1, 4
      %s57 = int_to_ptr.hbm [resolvable:$true] %s56
      %s58 = sshll.u32 [#allocation5], 4
      %s59 = int_to_ptr.vmem [resolvable:$true] %s58
      %61 = dma.hbm_to_vmem [thread:$0]  %s57, 32, %s59, [#allocation6]
    $region9: #{tpu_custom_call.1} parent=1 // pred_fallthru
      _
    // Predicated region
    $region10: #{tpu_custom_call.1} parent=1 // pred_check
      _
    $region11: #{tpu_custom_call.1} parent=1 // pred_check_branch
      %63 = sbr.rel (0) target = $region13
    $region12: #{tpu_custom_call.1} parent=1 // pred_region
      _
    $region13: #{tpu_custom_call.1} parent=1 // pred_fallthru
      _
    // Predicated region
    $region14: #{tpu_custom_call.1} parent=1 // pred_check
      _
    $region15: #{tpu_custom_call.1} parent=1 // pred_check_branch
      %65 = sbr.rel (0) target = $region17
    $region16: #{tpu_custom_call.1} parent=1 // pred_region
      %67 = vsyncadd [#allocation6], 0
      %s68 = sshll.u32 %s3, 4
      %s69 = int_to_ptr.hbm [resolvable:$true] %s68
      %s70 = sshll.u32 [#allocation7], 4
      %s71 = int_to_ptr.vmem [resolvable:$true] %s70
      %76 = dma.hbm_to_vmem [thread:$0]  %s69, 256, %s71, [#allocation6], 128, 128, 8
    $region17: #{tpu_custom_call.1} parent=1 // pred_fallthru
      _
    // Predicated region
    $region18: #{tpu_custom_call.1} parent=1 // pred_check
      _
    $region19: #{tpu_custom_call.1} parent=1 // pred_check_branch
      %78 = sbr.rel (0) target = $region21
    $region20: #{tpu_custom_call.1} parent=1 // pred_region
      %80 = vsyncadd [#allocation9], 0
      %s81 = sshll.u32 %s4, 4
      %s82 = int_to_ptr.hbm [resolvable:$true] %s81
      %s83 = sshll.u32 [#allocation8], 4
      %s84 = int_to_ptr.vmem [resolvable:$true] %s83
      %89 = dma.hbm_to_vmem [thread:$0]  %s82, 256, %s84, [#allocation9], 128, 128, 8
    $region21: #{tpu_custom_call.1} parent=1 // pred_fallthru
      _
    // Predicated region
    $region22: #{tpu_custom_call.1} parent=1 // pred_check
      _
    $region23: #{tpu_custom_call.1} parent=1 // pred_check_branch
      %91 = sbr.rel (0) target = $region25
    $region24: #{tpu_custom_call.1} parent=1 // pred_region
      %93 = vsyncadd [#allocation9], 0
      %s94 = sshll.u32 %s5, 4
      %s95 = int_to_ptr.hbm [resolvable:$true] %s94
      %s96 = sshll.u32 [#allocation10], 4
      %s97 = int_to_ptr.vmem [resolvable:$true] %s96
      %102 = dma.hbm_to_vmem [thread:$0]  %s95, 512, %s97, [#allocation9], 128, 128, 8
    $region25: #{tpu_custom_call.1} parent=1 // pred_fallthru
      _
    // Predicated region
    $region26: #{tpu_custom_call.1} parent=1 // pred_check
      _
    $region27: #{tpu_custom_call.1} parent=1 // pred_check_branch
      %104 = sbr.rel (0) target = $region29
    $region28: #{tpu_custom_call.1} parent=1 // pred_region
      %106 = vsyncadd [#allocation12], 0
      %s108 = sshll.u32 %s6, 4
      %s109 = int_to_ptr.hbm [resolvable:$true] %s108
      %s110 = sshll.u32 [#allocation11], 4
      %s111 = int_to_ptr.vmem [resolvable:$true] %s110
      %113 = dma.hbm_to_vmem [thread:$0]  %s109, 16, %s111, [#allocation12]
    $region29: #{tpu_custom_call.1} parent=1 // pred_fallthru
      _
    // Predicated region
    $region30: #{tpu_custom_call.1} parent=1 // pred_check
      _
    $region31: #{tpu_custom_call.1} parent=1 // pred_check_branch
      %115 = sbr.rel (0) target = $region33
    $region32: #{tpu_custom_call.1} parent=1 // pred_region
      %117 = vsyncadd [#allocation12], 0
      %s118 = sshll.u32 %s7, 4
      %s119 = int_to_ptr.hbm [resolvable:$true] %s118
      %s120 = sshll.u32 [#allocation13], 4
      %s121 = int_to_ptr.vmem [resolvable:$true] %s120
      %126 = dma.hbm_to_vmem [thread:$0]  %s119, 512, %s121, [#allocation12], 128, 128, 8
    $region33: #{tpu_custom_call.1} parent=1 // pred_fallthru
      _
    // Predicated region
    $region34: #{tpu_custom_call.1} parent=1 // pred_check
      _
    $region35: #{tpu_custom_call.1} parent=1 // pred_check_branch
      %128 = sbr.rel (0) target = $region37
    $region36: #{tpu_custom_call.1} parent=1 // pred_region
      %130 = vsyncadd [#allocation15], 0
      %s132 = sshll.u32 %s8, 4
      %s133 = int_to_ptr.hbm [resolvable:$true] %s132
      %s134 = sshll.u32 [#allocation14], 4
      %s135 = int_to_ptr.vmem [resolvable:$true] %s134
      %137 = dma.hbm_to_vmem [thread:$0]  %s133, 16, %s135, [#allocation15]
    $region37: #{tpu_custom_call.1} parent=1 // pred_fallthru
      _
    // Predicated region
    $region38: #{tpu_custom_call.1} parent=1 // pred_check
      _
    $region39: #{tpu_custom_call.1} parent=1 // pred_check_branch
      %139 = sbr.rel (0) target = $region41
    $region40: #{tpu_custom_call.1} parent=1 // pred_region
      %141 = vsyncadd [#allocation15], 0
      %s142 = sshll.u32 %s9, 4
      %s143 = int_to_ptr.hbm [resolvable:$true] %s142
      %s144 = sshll.u32 [#allocation16], 4
      %s145 = int_to_ptr.vmem [resolvable:$true] %s144
      %150 = dma.hbm_to_vmem [thread:$0]  %s143, 512, %s145, [#allocation15], 128, 128, 8
    $region41: #{tpu_custom_call.1} parent=1 // pred_fallthru
      _
    // Predicated region
    $region42: #{tpu_custom_call.1} parent=1 // pred_check
      _
    $region43: #{tpu_custom_call.1} parent=1 // pred_check_branch
      %152 = sbr.rel (0) target = $region45
    $region44: #{tpu_custom_call.1} parent=1 // pred_region
      _
    $region45: #{tpu_custom_call.1} parent=1 // pred_fallthru
      _
    // Predicated region
    $region46: #{tpu_custom_call.1} parent=1 // pred_check
      _
    $region47: #{tpu_custom_call.1} parent=1 // pred_check_branch
      %154 = sbr.rel (0) target = $region49
    $region48: #{tpu_custom_call.1} parent=1 // pred_region
      _
    $region49: #{tpu_custom_call.1} parent=1 // pred_fallthru
      _
    // Predicated region
    $region50: #{tpu_custom_call.1} parent=1 // pred_check
      _
    $region51: #{tpu_custom_call.1} parent=1 // pred_check_branch
      %156 = sbr.rel (0) target = $region53
    $region52: #{tpu_custom_call.1} parent=1 // pred_region
      %158 = vsyncadd [#allocation18], 0
      %s159 = sshll.u32 %s12, 4
      %s160 = int_to_ptr.hbm [resolvable:$true] %s159
      %s161 = sshll.u32 [#allocation17], 4
      %s162 = int_to_ptr.vmem [resolvable:$true] %s161
      %167 = dma.hbm_to_vmem [thread:$0]  %s160, 512, %s162, [#allocation18], 128, 128, 8
    $region53: #{tpu_custom_call.1} parent=1 // pred_fallthru
      _
    // Predicated region
    $region54: #{tpu_custom_call.1} parent=1 // pred_check
      _
    $region55: #{tpu_custom_call.1} parent=1 // pred_check_branch
      %169 = sbr.rel (0) target = $region57
    $region56: #{tpu_custom_call.1} parent=1 // pred_region
      _
    $region57: #{tpu_custom_call.1} parent=1 // pred_fallthru
      _
    // Predicated region
    $region58: #{tpu_custom_call.1} parent=1 // pred_check
      _
    $region59: #{tpu_custom_call.1} parent=1 // pred_check_branch
      %171 = sbr.rel (0) target = $region61
    $region60: #{tpu_custom_call.1} parent=1 // pred_region
      %173 = vsyncadd [#allocation18], 0
      %s174 = sshll.u32 %s14, 4
      %s175 = int_to_ptr.hbm [resolvable:$true] %s174
      %s176 = sshll.u32 [#allocation19], 4
      %s177 = int_to_ptr.vmem [resolvable:$true] %s176
      %182 = dma.hbm_to_vmem [thread:$0]  %s175, 512, %s177, [#allocation18], 128, 128, 8
    $region61: #{tpu_custom_call.1} parent=1 // pred_fallthru
      _
    // Predicated region
    $region62: #{tpu_custom_call.1} parent=1 // pred_check
      _
    $region63: #{tpu_custom_call.1} parent=1 // pred_check_branch
      %184 = sbr.rel (0) target = $region65
    $region64: #{tpu_custom_call.1} parent=1 // pred_region
      %186 = vsyncadd [#allocation21], 0
      %s187 = sshll.u32 %s15, 4
      %s188 = int_to_ptr.hbm [resolvable:$true] %s187
      %s189 = sshll.u32 [#allocation20], 4
      %s190 = int_to_ptr.vmem [resolvable:$true] %s189
      %195 = dma.hbm_to_vmem [thread:$0]  %s188, 512, %s190, [#allocation21], 128, 128, 8
    $region65: #{tpu_custom_call.1} parent=1 // pred_fallthru
      _
    // Predicated region
    $region66: #{tpu_custom_call.1} parent=1 // pred_check
      _
    $region67: #{tpu_custom_call.1} parent=1 // pred_check_branch
      %197 = sbr.rel (0) target = $region69
    $region68: #{tpu_custom_call.1} parent=1 // pred_region
      %199 = vsyncadd [#allocation21], 0
      %s200 = sshll.u32 %s16, 4
      %s201 = int_to_ptr.hbm [resolvable:$true] %s200
      %s202 = sshll.u32 [#allocation22], 4
      %s203 = int_to_ptr.vmem [resolvable:$true] %s202
      %208 = dma.hbm_to_vmem [thread:$0]  %s201, 512, %s203, [#allocation21], 128, 128, 8
    $region69: #{tpu_custom_call.1} parent=1 // pred_fallthru
      _
    // Predicated region
    $region70: #{tpu_custom_call.1} parent=1 // pred_check
      _
    $region71: #{tpu_custom_call.1} parent=1 // pred_check_branch
      %210 = sbr.rel (0) target = $region73
    $region72: #{tpu_custom_call.1} parent=1 // pred_region
      _
    $region73: #{tpu_custom_call.1} parent=1 // pred_fallthru
      _
    // Predicated region
    $region74: #{tpu_custom_call.1} parent=1 // pred_check
      _
    $region75: #{tpu_custom_call.1} parent=1 // pred_check_branch
      %212 = sbr.rel (0) target = $region77
    $region76: #{tpu_custom_call.1} parent=1 // pred_region
      %214 = vsyncadd [#allocation24], 0
      %s215 = sshll.u32 %s18, 4
      %s216 = int_to_ptr.hbm [resolvable:$true] %s215
      %s217 = sshll.u32 [#allocation23], 4
      %s218 = int_to_ptr.vmem [resolvable:$true] %s217
      %223 = dma.hbm_to_vmem [thread:$0]  %s216, 512, %s218, [#allocation24], 128, 128, 8
    $region77: #{tpu_custom_call.1} parent=1 // pred_fallthru
      _
    // Predicated region
    $region78: #{tpu_custom_call.1} parent=1 // pred_check
      _
    $region79: #{tpu_custom_call.1} parent=1 // pred_check_branch
      %225 = sbr.rel (0) target = $region81
    $region80: #{tpu_custom_call.1} parent=1 // pred_region
      %227 = vsyncadd [#allocation24], 0
      %s228 = sshll.u32 %s19, 4
      %s229 = int_to_ptr.hbm [resolvable:$true] %s228
      %s230 = sshll.u32 [#allocation25], 4
      %s231 = int_to_ptr.vmem [resolvable:$true] %s230
      %236 = dma.hbm_to_vmem [thread:$0]  %s229, 512, %s231, [#allocation24], 128, 128, 8
    $region81: #{tpu_custom_call.1} parent=1 // pred_fallthru
      _
    // Predicated region
    $region82: #{tpu_custom_call.1} parent=1 // pred_check
      _
    $region83: #{tpu_custom_call.1} parent=1 // pred_check_branch
      %238 = sbr.rel (0) target = $region85
    $region84: #{tpu_custom_call.1} parent=1 // pred_region
      _
    $region85: #{tpu_custom_call.1} parent=1 // pred_fallthru
      _
    // Predicated region
    $region86: #{tpu_custom_call.1} parent=1 // pred_check
      _
    $region87: #{tpu_custom_call.1} parent=1 // pred_check_branch
      %240 = sbr.rel (0) target = $region89
    $region88: #{tpu_custom_call.1} parent=1 // pred_region
      %242 = vsyncadd [#allocation27], 0
      %s243 = sshll.u32 %s21, 4
      %s244 = int_to_ptr.hbm [resolvable:$true] %s243
      %s245 = sshll.u32 [#allocation26], 4
      %s246 = int_to_ptr.vmem [resolvable:$true] %s245
      %251 = dma.hbm_to_vmem [thread:$0]  %s244, 512, %s246, [#allocation27], 128, 128, 8
    $region89: #{tpu_custom_call.1} parent=1 // pred_fallthru
      _
    // Predicated region
    $region90: #{tpu_custom_call.1} parent=1 // pred_check
      _
    $region91: #{tpu_custom_call.1} parent=1 // pred_check_branch
      %253 = sbr.rel (0) target = $region93
    $region92: #{tpu_custom_call.1} parent=1 // pred_region
      _
    $region93: #{tpu_custom_call.1} parent=1 // pred_fallthru
      _
    // Predicated region
    $region94: #{tpu_custom_call.1} parent=1 // pred_check
      _
    $region95: #{tpu_custom_call.1} parent=1 // pred_check_branch
      %255 = sbr.rel (0) target = $region97
    $region96: #{tpu_custom_call.1} parent=1 // pred_region
      %257 = dma.done [#allocation3], 256
    $region97: #{tpu_custom_call.1} parent=1 // pred_fallthru
      _
    // Predicated region
    $region98: #{tpu_custom_call.1} parent=1 // pred_check
      _
    $region99: #{tpu_custom_call.1} parent=1 // pred_check_branch
      %259 = sbr.rel (0) target = $region101
    $region100: #{tpu_custom_call.1} parent=1 // pred_region
      %261 = dma.done [#allocation6], 32
    $region101: #{tpu_custom_call.1} parent=1 // pred_fallthru
      _
    // Predicated region
    $region102: #{tpu_custom_call.1} parent=1 // pred_check
      _
    $region103: #{tpu_custom_call.1} parent=1 // pred_check_branch
      %263 = sbr.rel (0) target = $region105
    $region104: #{tpu_custom_call.1} parent=1 // pred_region
      %265 = dma.done [#allocation6], 256
    $region105: #{tpu_custom_call.1} parent=1 // pred_fallthru
      _
    // Predicated region
    $region106: #{tpu_custom_call.1} parent=1 // pred_check
      _
    $region107: #{tpu_custom_call.1} parent=1 // pred_check_branch
      %267 = sbr.rel (0) target = $region109
    $region108: #{tpu_custom_call.1} parent=1 // pred_region
      %269 = dma.done [#allocation9], 256
    $region109: #{tpu_custom_call.1} parent=1 // pred_fallthru
      _
    // Predicated region
    $region110: #{tpu_custom_call.1} parent=1 // pred_check
      _
    $region111: #{tpu_custom_call.1} parent=1 // pred_check_branch
      %271 = sbr.rel (0) target = $region113
    $region112: #{tpu_custom_call.1} parent=1 // pred_region
      %273 = dma.done [#allocation9], 512
    $region113: #{tpu_custom_call.1} parent=1 // pred_fallthru
      _
    // Predicated region
    $region114: #{tpu_custom_call.1} parent=1 // pred_check
      _
    $region115: #{tpu_custom_call.1} parent=1 // pred_check_branch
      %275 = sbr.rel (0) target = $region117
    $region116: #{tpu_custom_call.1} parent=1 // pred_region
      %277 = dma.done [#allocation12], 16
    $region117: #{tpu_custom_call.1} parent=1 // pred_fallthru
      _
    // Predicated region
    $region118: #{tpu_custom_call.1} parent=1 // pred_check
      _
    $region119: #{tpu_custom_call.1} parent=1 // pred_check_branch
      %279 = sbr.rel (0) target = $region121
    $region120: #{tpu_custom_call.1} parent=1 // pred_region
      %281 = dma.done [#allocation12], 512
    $region121: #{tpu_custom_call.1} parent=1 // pred_fallthru
      _
    // Predicated region
    $region122: #{tpu_custom_call.1} parent=1 // pred_check
      _
    $region123: #{tpu_custom_call.1} parent=1 // pred_check_branch
      %283 = sbr.rel (0) target = $region125
    $region124: #{tpu_custom_call.1} parent=1 // pred_region
      %285 = dma.done [#allocation15], 16
    $region125: #{tpu_custom_call.1} parent=1 // pred_fallthru
      _
    // Predicated region
    $region126: #{tpu_custom_call.1} parent=1 // pred_check
      _
    $region127: #{tpu_custom_call.1} parent=1 // pred_check_branch
      %287 = sbr.rel (0) target = $region129
    $region128: #{tpu_custom_call.1} parent=1 // pred_region
      %289 = dma.done [#allocation15], 512
    $region129: #{tpu_custom_call.1} parent=1 // pred_fallthru
      _
    // Predicated region
    $region130: #{tpu_custom_call.1} parent=1 // pred_check
      _
    $region131: #{tpu_custom_call.1} parent=1 // pred_check_branch
      %291 = sbr.rel (0) target = $region133
    $region132: #{tpu_custom_call.1} parent=1 // pred_region
      %293 = dma.done [#allocation18], 512
    $region133: #{tpu_custom_call.1} parent=1 // pred_fallthru
      _
    // Predicated region
    $region134: #{tpu_custom_call.1} parent=1 // pred_check
      _
    $region135: #{tpu_custom_call.1} parent=1 // pred_check_branch
      %295 = sbr.rel (0) target = $region137
    $region136: #{tpu_custom_call.1} parent=1 // pred_region
      %297 = dma.done [#allocation18], 512
    $region137: #{tpu_custom_call.1} parent=1 // pred_fallthru
      _
    // Predicated region
    $region138: #{tpu_custom_call.1} parent=1 // pred_check
      _
    $region139: #{tpu_custom_call.1} parent=1 // pred_check_branch
      %299 = sbr.rel (0) target = $region141
    $region140: #{tpu_custom_call.1} parent=1 // pred_region
      %301 = dma.done [#allocation21], 512
    $region141: #{tpu_custom_call.1} parent=1 // pred_fallthru
      _
    // Predicated region
    $region142: #{tpu_custom_call.1} parent=1 // pred_check
      _
    $region143: #{tpu_custom_call.1} parent=1 // pred_check_branch
      %303 = sbr.rel (0) target = $region145
    $region144: #{tpu_custom_call.1} parent=1 // pred_region
      %305 = dma.done [#allocation21], 512
    $region145: #{tpu_custom_call.1} parent=1 // pred_fallthru
      _
    // Predicated region
    $region146: #{tpu_custom_call.1} parent=1 // pred_check
      _
    $region147: #{tpu_custom_call.1} parent=1 // pred_check_branch
      %307 = sbr.rel (0) target = $region149
    $region148: #{tpu_custom_call.1} parent=1 // pred_region
      %309 = dma.done [#allocation24], 512
    $region149: #{tpu_custom_call.1} parent=1 // pred_fallthru
      _
    // Predicated region
    $region150: #{tpu_custom_call.1} parent=1 // pred_check
      _
    $region151: #{tpu_custom_call.1} parent=1 // pred_check_branch
      %311 = sbr.rel (0) target = $region153
    $region152: #{tpu_custom_call.1} parent=1 // pred_region
      %313 = dma.done [#allocation24], 512
    $region153: #{tpu_custom_call.1} parent=1 // pred_fallthru
      _
    // Predicated region
    $region154: #{tpu_custom_call.1} parent=1 // pred_check
      _
    $region155: #{tpu_custom_call.1} parent=1 // pred_check_branch
      %315 = sbr.rel (0) target = $region157
    $region156: #{tpu_custom_call.1} parent=1 // pred_region
      %317 = dma.done [#allocation27], 512
    $region157: #{tpu_custom_call.1} parent=1 // pred_fallthru
      _
    %v318 = vld [vmem:[#allocation2] sm:$0xff]
    %v319 = vld [vmem:[#allocation2 + $0x8] sm:$0xff]
    %v320 = vld [vmem:[#allocation10] sm:$0xff]
    %v321 = vld [vmem:[#allocation10 + $0x8] sm:$0xff]
    %v322 = vld [vmem:[#allocation10 + $0x10] sm:$0xff]
    %v323 = vld [vmem:[#allocation10 + $0x18] sm:$0xff]
    %v324 = vld [vmem:[#allocation11] sm:$0x1]
    %v325 = vld [vmem:[#allocation13] sm:$0xff]
    %v326 = vld [vmem:[#allocation13 + $0x8] sm:$0xff]
    %v327 = vld [vmem:[#allocation13 + $0x10] sm:$0xff]
    %v328 = vld [vmem:[#allocation13 + $0x18] sm:$0xff]
    %v329 = vld [vmem:[#allocation14] sm:$0x1]
    %v330 = vld [vmem:[#allocation16] sm:$0xff]
    %v331 = vld [vmem:[#allocation16 + $0x8] sm:$0xff]
    %v332 = vld [vmem:[#allocation16 + $0x10] sm:$0xff]
    %v333 = vld [vmem:[#allocation16 + $0x18] sm:$0xff]
    %v335 = vperm.slane %v324, 0
    %vm337 = vcmask 261120
    %v339 = vsel %vm337, %v318, 0
    %v342 = vsel %vm337, %v319, 0
    %344 = vmatpush.msra.mxu0 0.0
    %345 = vmatpush.msra.mxu0 0.0
    %346 = vmatpush.msra.mxu0 0.0
    %347 = vmatpush.msra.mxu0 0.0
    %348 = vmatpush.msra.mxu0 0.0
    %349 = vmatpush.msra.mxu0 0.0
    %350 = vmatpush.msra.mxu0 0.0
    %351 = vmatpush.msra.mxu0 0.0
    %352 = vmatpush.msra.mxu0 0.0
    %353 = vmatpush.msra.mxu0 0.0
    %354 = vmatpush.msra.mxu0 0.0
    %355 = vmatpush.msra.mxu0 0.0
    %356 = vmatpush.msra.mxu0 %v323
    %357 = vmatpush.msra.mxu0 %v322
    %358 = vmatpush.msra.mxu0 %v321
    %359 = vmatpush.msra.mxu0 %v320
    %360 = vmatmul.f32.gmra.mxu0 %v339
    %v361 = vpop.f32.mrf.mxu0
    %v362 = vadd.f32 %v335, %v361
    %363 = vmatmul.f32.gmra.mxu0 %v342
    %v364 = vpop.f32.mrf.mxu0
    %v365 = vadd.f32 %v335, %v364
    %366 = vdwg.mxu0
    %v367 = vmax.f32 %v362, 0.0
    %v368 = vmax.f32 %v365, 0.0
    %v370 = vperm.slane %v329, 0
    %v373 = vsel %vm337, %v367, 0
    %v376 = vsel %vm337, %v368, 0
    %378 = vmatpush.msra.mxu0 0.0
    %379 = vmatpush.msra.mxu0 0.0
    %380 = vmatpush.msra.mxu0 0.0
    %381 = vmatpush.msra.mxu0 0.0
    %382 = vmatpush.msra.mxu0 0.0
    %383 = vmatpush.msra.mxu0 0.0
    %384 = vmatpush.msra.mxu0 0.0
    %385 = vmatpush.msra.mxu0 0.0
    %386 = vmatpush.msra.mxu0 0.0
    %387 = vmatpush.msra.mxu0 0.0
    %388 = vmatpush.msra.mxu0 0.0
    %389 = vmatpush.msra.mxu0 0.0
    %390 = vmatpush.msra.mxu0 %v328
    %391 = vmatpush.msra.mxu0 %v327
    %392 = vmatpush.msra.mxu0 %v326
    %393 = vmatpush.msra.mxu0 %v325
    %394 = vmatmul.f32.gmra.mxu0 %v373
    %v395 = vpop.f32.mrf.mxu0
    %v396 = vadd.f32 %v370, %v395
    %397 = vmatmul.f32.gmra.mxu0 %v376
    %v398 = vpop.f32.mrf.mxu0
    %v399 = vadd.f32 %v370, %v398
    %400 = vdwg.mxu0
    %v401 = vmax.f32 %v396, 0.0
    %v402 = vmax.f32 %v399, 0.0
    %v404 = vsel %vm337, %v401, 0
    %v407 = vsel %vm337, %v402, 0
    %409 = vmatpush.msra.mxu0 0.0
    %410 = vmatpush.msra.mxu0 0.0
    %411 = vmatpush.msra.mxu0 0.0
    %412 = vmatpush.msra.mxu0 0.0
    %413 = vmatpush.msra.mxu0 0.0
    %414 = vmatpush.msra.mxu0 0.0
    %415 = vmatpush.msra.mxu0 0.0
    %416 = vmatpush.msra.mxu0 0.0
    %417 = vmatpush.msra.mxu0 0.0
    %418 = vmatpush.msra.mxu0 0.0
    %419 = vmatpush.msra.mxu0 0.0
    %420 = vmatpush.msra.mxu0 0.0
    %421 = vmatpush.msra.mxu0 %v333
    %422 = vmatpush.msra.mxu0 %v332
    %423 = vmatpush.msra.mxu0 %v331
    %424 = vmatpush.msra.mxu0 %v330
    %425 = vmatmul.f32.gmra.mxu0 %v404
    %v426 = vpop.f32.mrf.mxu0
    %v427 = vadd.f32 0.0, %v426
    %428 = vmatmul.f32.gmra.mxu0 %v407
    %v429 = vpop.f32.mrf.mxu0
    %v430 = vadd.f32 0.0, %v429
    %431 = vdwg.mxu0
    %v432 = vld [vmem:[#allocation5] sm:$0x3]
    %v433 = vld [vmem:[%s10] sm:$0xff]
    %v434 = vld [vmem:[%s11] sm:$0x1]
    %v435 = vld [vmem:[#allocation17] sm:$0xff]
    %v436 = vld [vmem:[#allocation17 + $0x8] sm:$0xff]
    %v437 = vld [vmem:[#allocation17 + $0x10] sm:$0xff]
    %v438 = vld [vmem:[#allocation17 + $0x18] sm:$0xff]
    %v439 = vld [vmem:[%s13] sm:$0x1]
    %v440 = vld [vmem:[#allocation19] sm:$0xff]
    %v441 = vld [vmem:[#allocation19 + $0x8] sm:$0xff]
    %v442 = vld [vmem:[#allocation19 + $0x10] sm:$0xff]
    %v443 = vld [vmem:[#allocation19 + $0x18] sm:$0xff]
    %v445 = vperm.slane %v434, 0
    %vm447 = vcmask 64512
    %v449 = vsel %vm447, %v432, 0
    %451 = vmatpush.msra.mxu0 0.0
    %452 = vmatpush.msra.mxu0 0.0
    %453 = vmatpush.msra.mxu0 0.0
    %454 = vmatpush.msra.mxu0 0.0
    %455 = vmatpush.msra.mxu0 0.0
    %456 = vmatpush.msra.mxu0 0.0
    %457 = vmatpush.msra.mxu0 0.0
    %458 = vmatpush.msra.mxu0 0.0
    %459 = vmatpush.msra.mxu0 0.0
    %460 = vmatpush.msra.mxu0 0.0
    %461 = vmatpush.msra.mxu0 0.0
    %462 = vmatpush.msra.mxu0 0.0
    %463 = vmatpush.msra.mxu0 0.0
    %464 = vmatpush.msra.mxu0 0.0
    %465 = vmatpush.msra.mxu0 0.0
    %466 = vmatpush.msra.mxu0 %v433
    %467 = vmatmul.f32.gmra.mxu0 %v449
    %v468 = vpop.f32.mrf.mxu0
    %v469 = vadd.f32 %v445, %v468
    %470 = vdwg.mxu0
    %v471 = vmax.f32 %v469, 0.0
    %v473 = vperm.slane %v439, 0
    %v476 = vsel %vm337, %v471, 0
    %478 = vmatpush.msra.mxu0 0.0
    %479 = vmatpush.msra.mxu0 0.0
    %480 = vmatpush.msra.mxu0 0.0
    %481 = vmatpush.msra.mxu0 0.0
    %482 = vmatpush.msra.mxu0 0.0
    %483 = vmatpush.msra.mxu0 0.0
    %484 = vmatpush.msra.mxu0 0.0
    %485 = vmatpush.msra.mxu0 0.0
    %486 = vmatpush.msra.mxu0 0.0
    %487 = vmatpush.msra.mxu0 0.0
    %488 = vmatpush.msra.mxu0 0.0
    %489 = vmatpush.msra.mxu0 0.0
    %490 = vmatpush.msra.mxu0 %v438
    %491 = vmatpush.msra.mxu0 %v437
    %492 = vmatpush.msra.mxu0 %v436
    %493 = vmatpush.msra.mxu0 %v435
    %494 = vmatmul.f32.gmra.mxu0 %v476
    %v495 = vpop.f32.mrf.mxu0
    %v496 = vadd.f32 %v473, %v495
    %497 = vdwg.mxu0
    %v498 = vmax.f32 %v496, 0.0
    %v500 = vsel %vm337, %v498, 0
    %502 = vmatpush.msra.mxu0 0.0
    %503 = vmatpush.msra.mxu0 0.0
    %504 = vmatpush.msra.mxu0 0.0
    %505 = vmatpush.msra.mxu0 0.0
    %506 = vmatpush.msra.mxu0 0.0
    %507 = vmatpush.msra.mxu0 0.0
    %508 = vmatpush.msra.mxu0 0.0
    %509 = vmatpush.msra.mxu0 0.0
    %510 = vmatpush.msra.mxu0 0.0
    %511 = vmatpush.msra.mxu0 0.0
    %512 = vmatpush.msra.mxu0 0.0
    %513 = vmatpush.msra.mxu0 0.0
    %514 = vmatpush.msra.mxu0 %v443
    %515 = vmatpush.msra.mxu0 %v442
    %516 = vmatpush.msra.mxu0 %v441
    %517 = vmatpush.msra.mxu0 %v440
    %518 = vmatmul.f32.gmra.mxu0 %v500
    %v519 = vpop.f32.mrf.mxu0
    %v520 = vadd.f32 0.0, %v519
    %521 = vdwg.mxu0
    %v522 = vlaneseq
    %v523 = vshrl.u32 %v522, 7
    %v524 = vadd.s32 %v523, 8
    %vm525 = vcmp.lt.s32.totalorder %v523, 2
    %vm526 = vcmp.lt.s32.totalorder %v524, 2
    %v527 = vld [vmem:[%s2] sm:$0x1]
    %v529 = vperm.slane %v527, 0
    %v531 = vsel %vm525, %v529, %v427
    %v532 = vsel %vm526, %v529, %v430
    %vm533 = vcmp.lt.s32.totalorder %v523, 0
    %v534 = vsub.s32 0, %v523
    %v535 = vsel %vm533, %v534, %v523
    %v536 = vshrl.u32 %v535, 1
    %v537 = vand.u32 %v535, 1
    %v538 = vsub.s32 0, %v537
    %v539 = vsel %vm533, %v538, %v537
    %vm540 = vcmp.lt.s32.totalorder %v524, 0
    %v541 = vsub.s32 0, %v524
    %v542 = vsel %vm540, %v541, %v524
    %v543 = vshrl.u32 %v542, 1
    %v544 = vand.u32 %v542, 1
    %v545 = vsub.s32 0, %v544
    %v546 = vsel %vm540, %v545, %v544
    %vm547 = vcmp.ne.s32.totalorder %v539, 0
    %vm548 = vcmp.ne.s32.totalorder %v546, 0
    %vm549 = vcmp.lt.s32.totalorder %v539, 0
    %vm550 = vcmp.lt.s32.totalorder %v546, 0
    %vm551 = vmand %vm549, %vm547
    %vm552 = vmand %vm550, %vm548
    %v553 = vadd.s32 %v539, 2
    %v554 = vadd.s32 %v546, 2
    %v555 = vsel %vm551, %v553, %v539
    %v556 = vsel %vm552, %v554, %v546
    %vm557 = vcmp.eq.s32.totalorder %v555, 0
    %vm558 = vcmp.eq.s32.totalorder %v556, 0
    %v559 = vperm.slane %v520, 0
    %v560 = vsel %vm557, %v559, 0.0
    %v561 = vsel %vm558, %v559, 0.0
    %vm562 = vcmp.eq.s32.totalorder %v555, 1
    %vm563 = vcmp.eq.s32.totalorder %v556, 1
    %v564 = vperm.slane %v520, 1
    %v565 = vsel %vm562, %v564, %v560
    %v566 = vsel %vm563, %v564, %v561
    %v567 = vld [vmem:[#allocation7] sm:$0xff]
    %v568 = vld [vmem:[#allocation7 + $0x8] sm:$0xff]
    %v569 = vadd.f32 %v565, %v531
    %v570 = vadd.f32 %v566, %v532
    %v571 = vmul.f32 %v567, %v569
    %v572 = vmul.f32 %v568, %v570
    %v573 = vld [vmem:[#allocation20] sm:$0xff]
    %v574 = vld [vmem:[#allocation20 + $0x8] sm:$0xff]
    %v575 = vld [vmem:[#allocation20 + $0x10] sm:$0xff]
    %v576 = vld [vmem:[#allocation20 + $0x18] sm:$0xff]
    %v577 = vld [vmem:[%s17] sm:$0x1]
    %v579 = vperm.slane %v577, 0
    %v582 = vsel %vm337, %v571, 0
    %v585 = vsel %vm337, %v572, 0
    %587 = vmatpush.msra.mxu0 0.0
    %588 = vmatpush.msra.mxu0 0.0
    %589 = vmatpush.msra.mxu0 0.0
    %590 = vmatpush.msra.mxu0 0.0
    %591 = vmatpush.msra.mxu0 0.0
    %592 = vmatpush.msra.mxu0 0.0
    %593 = vmatpush.msra.mxu0 0.0
    %594 = vmatpush.msra.mxu0 0.0
    %595 = vmatpush.msra.mxu0 0.0
    %596 = vmatpush.msra.mxu0 0.0
    %597 = vmatpush.msra.mxu0 0.0
    %598 = vmatpush.msra.mxu0 0.0
    %599 = vmatpush.msra.mxu0 %v576
    %600 = vmatpush.msra.mxu0 %v575
    %601 = vmatpush.msra.mxu0 %v574
    %602 = vmatpush.msra.mxu0 %v573
    %603 = vmatmul.f32.gmra.mxu0 %v582
    %v604 = vpop.f32.mrf.mxu0
    %v605 = vadd.f32 %v579, %v604
    %606 = vmatmul.f32.gmra.mxu0 %v585
    %v607 = vpop.f32.mrf.mxu0
    %v608 = vadd.f32 %v579, %v607
    %609 = vdwg.mxu0
    %v610 = vld [vmem:[#allocation22] sm:$0xff]
    %v611 = vld [vmem:[#allocation22 + $0x8] sm:$0xff]
    %v612 = vld [vmem:[#allocation22 + $0x10] sm:$0xff]
    %v613 = vld [vmem:[#allocation22 + $0x18] sm:$0xff]
    %v614 = vld [vmem:[#allocation23] sm:$0xff]
    %v615 = vld [vmem:[#allocation23 + $0x8] sm:$0xff]
    %v616 = vld [vmem:[#allocation23 + $0x10] sm:$0xff]
    %v617 = vld [vmem:[#allocation23 + $0x18] sm:$0xff]
    %v618 = vld [vmem:[#allocation25] sm:$0xff]
    %v619 = vld [vmem:[#allocation25 + $0x8] sm:$0xff]
    %v620 = vld [vmem:[#allocation25 + $0x10] sm:$0xff]
    %v621 = vld [vmem:[#allocation25 + $0x18] sm:$0xff]
    %v622 = vld [vmem:[%s20] sm:$0x1]
    %v623 = vld [vmem:[#allocation26] sm:$0xff]
    %v624 = vld [vmem:[#allocation26 + $0x8] sm:$0xff]
    %v625 = vld [vmem:[#allocation26 + $0x10] sm:$0xff]
    %v626 = vld [vmem:[#allocation26 + $0x18] sm:$0xff]
    %v627 = vld [vmem:[%s22] sm:$0x1]
    %v628 = vld [vmem:[#allocation8] sm:$0xff]
    %v629 = vld [vmem:[#allocation8 + $0x8] sm:$0xff]
    %v631 = vsel %vm337, 0.0, 0
    %633 = vmatpush.msra.mxu0 0.0
    %634 = vmatpush.msra.mxu0 0.0
    %635 = vmatpush.msra.mxu0 0.0
    %636 = vmatpush.msra.mxu0 0.0
    %637 = vmatpush.msra.mxu0 0.0
    %638 = vmatpush.msra.mxu0 0.0
    %639 = vmatpush.msra.mxu0 0.0
    %640 = vmatpush.msra.mxu0 0.0
    %641 = vmatpush.msra.mxu0 0.0
    %642 = vmatpush.msra.mxu0 0.0
    %643 = vmatpush.msra.mxu0 0.0
    %644 = vmatpush.msra.mxu0 0.0
    %645 = vmatpush.msra.mxu0 %v613
    %646 = vmatpush.msra.mxu0 %v612
    %647 = vmatpush.msra.mxu0 %v611
    %648 = vmatpush.msra.mxu0 %v610
    %649 = vmatmul.f32.gmra.mxu0 %v631
    %v650 = vpop.f32.mrf.mxu0
    %v651 = vadd.f32 0.0, %v650
    %652 = vdwg.mxu0
    %v653 = vadd.f32 %v605, %v651
    %v654 = vxor.u32 %v653, 2147483648
    %v655 = vmul.f32 %v654, 1.442695
    %v656 = vpow.pop %v655
    %v657 = vadd.f32 %v656, 1.0
    %v658 = vrcp.pop %v657
    %v659 = vmul.f32 %v657, %v658
    %v660 = vsub.f32 1.0, %v659
    %v661 = vmul.f32 %v658, %v660
    %v662 = vadd.f32 %v658, %v661
    %vm663 = vweird.f32 %v657
    %vm664 = vweird.f32 %v658
    %vm665 = vmor %vm663, %vm664
    %v666 = vsel %vm665, %v658, %v662
    %v667 = vand.u32 2147483647, %v657
    %vm668 = vcmp.eq.f32.partialorder %v667, 8.507059e+37
    %v669 = vand.u32 %v657, 2147483648
    %v670 = vor.u32 1.1754944e-38, %v669
    %v671 = vsel %vm668, %v670, %v666
    %v672 = vmul.f32 1.0, %v671
    %v673 = vtanh.pop %v653
    %v674 = vmul.f32 %v672, 0.0
    %676 = vrot.lane.b32.xlu0 %v673, 64
    %v677 = vpop.permute.xlu0 %676
    %v679 = vmul.f32 %v672, %v677
    %681 = vrot.lane.b32.xlu0 %v679, 32
    %v682 = vpop.permute.xlu0 %681
    %v684 = vadd.f32 %v674, %v682
    %v685 = vtanh.pop %v684
    %687 = vrot.lane.b32.xlu0 %v685, 64
    %v688 = vpop.permute.xlu0 %687
    %v690 = vmul.f32 %v672, %v688
    %692 = vrot.lane.b32.xlu0 %v690, 32
    %v693 = vpop.permute.xlu0 %692
    %v695 = vmul.f32 %v628, %v693
    %696 = vmatpush.msra.mxu0 0.0
    %697 = vmatpush.msra.mxu0 0.0
    %698 = vmatpush.msra.mxu0 0.0
    %699 = vmatpush.msra.mxu0 0.0
    %700 = vmatpush.msra.mxu0 0.0
    %701 = vmatpush.msra.mxu0 0.0
    %702 = vmatpush.msra.mxu0 0.0
    %703 = vmatpush.msra.mxu0 0.0
    %704 = vmatpush.msra.mxu0 0.0
    %705 = vmatpush.msra.mxu0 0.0
    %706 = vmatpush.msra.mxu0 0.0
    %707 = vmatpush.msra.mxu0 0.0
    %708 = vmatpush.msra.mxu0 %v621
    %709 = vmatpush.msra.mxu0 %v620
    %710 = vmatpush.msra.mxu0 %v619
    %711 = vmatpush.msra.mxu0 %v618
    %712 = vmatmul.f32.gmra.mxu0 %v631
    %v713 = vpop.f32.mrf.mxu0
    %v714 = vadd.f32 0.0, %v713
    %715 = vdwg.mxu0
    %v717 = vsel %vm337, %v695, 0
    %719 = vmatpush.msra.mxu0 0.0
    %720 = vmatpush.msra.mxu0 0.0
    %721 = vmatpush.msra.mxu0 0.0
    %722 = vmatpush.msra.mxu0 0.0
    %723 = vmatpush.msra.mxu0 0.0
    %724 = vmatpush.msra.mxu0 0.0
    %725 = vmatpush.msra.mxu0 0.0
    %726 = vmatpush.msra.mxu0 0.0
    %727 = vmatpush.msra.mxu0 0.0
    %728 = vmatpush.msra.mxu0 0.0
    %729 = vmatpush.msra.mxu0 0.0
    %730 = vmatpush.msra.mxu0 0.0
    %731 = vmatpush.msra.mxu0 %v617
    %732 = vmatpush.msra.mxu0 %v616
    %733 = vmatpush.msra.mxu0 %v615
    %734 = vmatpush.msra.mxu0 %v614
    %735 = vmatmul.f32.gmra.mxu0 %v717
    %v736 = vpop.f32.mrf.mxu0
    %v737 = vadd.f32 %v714, %v736
    %738 = vdwg.mxu0
    %v740 = vperm.slane %v622, 0
    %v742 = vadd.f32 %v737, %v740
    %v743 = vxor.u32 %v742, 2147483648
    %v744 = vmul.f32 %v743, 1.442695
    %v745 = vpow.pop %v744
    %v746 = vadd.f32 %v745, 1.0
    %v747 = vrcp.pop %v746
    %v748 = vmul.f32 %v746, %v747
    %v749 = vsub.f32 1.0, %v748
    %v750 = vmul.f32 %v747, %v749
    %v751 = vadd.f32 %v747, %v750
    %vm752 = vweird.f32 %v746
    %vm753 = vweird.f32 %v747
    %vm754 = vmor %vm752, %vm753
    %v755 = vsel %vm754, %v747, %v751
    %v756 = vand.u32 2147483647, %v746
    %vm757 = vcmp.eq.f32.partialorder %v756, 8.507059e+37
    %v758 = vand.u32 %v746, 2147483648
    %v759 = vor.u32 1.1754944e-38, %v758
    %v760 = vsel %vm757, %v759, %v755
    %v761 = vmul.f32 1.0, %v760
    %v762 = vtanh.pop %v742
    %v763 = vmul.f32 %v761, 0.0
    %765 = vrot.lane.b32.xlu0 %v762, 64
    %v766 = vpop.permute.xlu0 %765
    %v768 = vmul.f32 %v761, %v766
    %770 = vrot.lane.b32.xlu0 %v768, 32
    %v771 = vpop.permute.xlu0 %770
    %v773 = vadd.f32 %v763, %v771
    %v774 = vtanh.pop %v773
    %776 = vrot.lane.b32.xlu0 %v774, 64
    %v777 = vpop.permute.xlu0 %776
    %v779 = vmul.f32 %v761, %v777
    %v781 = vperm.slane %v627, 0
    %784 = vrot.lane.b32.xlu0 %v779, 32
    %v785 = vpop.permute.xlu0 %784
    %v786 = vsel %vm337, %v785, 0
    %788 = vmatpush.msra.mxu0 0.0
    %789 = vmatpush.msra.mxu0 0.0
    %790 = vmatpush.msra.mxu0 0.0
    %791 = vmatpush.msra.mxu0 0.0
    %792 = vmatpush.msra.mxu0 0.0
    %793 = vmatpush.msra.mxu0 0.0
    %794 = vmatpush.msra.mxu0 0.0
    %795 = vmatpush.msra.mxu0 0.0
    %796 = vmatpush.msra.mxu0 0.0
    %797 = vmatpush.msra.mxu0 0.0
    %798 = vmatpush.msra.mxu0 0.0
    %799 = vmatpush.msra.mxu0 0.0
    %800 = vmatpush.msra.mxu0 %v626
    %801 = vmatpush.msra.mxu0 %v625
    %802 = vmatpush.msra.mxu0 %v624
    %803 = vmatpush.msra.mxu0 %v623
    %804 = vmatmul.f32.gmra.mxu0 %v786
    %v805 = vpop.f32.mrf.mxu0
    %v806 = vadd.f32 %v781, %v805
    %807 = vdwg.mxu0
    %vm808 = vcmask 254976
    %v809 = vsel %vm808, %v806, -inf
    %810 = vmax.xlane.f32.xlu0 %v809
    %v811 = vpop.xlane.xlu0 %810
    %v812 = vsub.f32 %v806, %v811
    %v813 = vmul.f32 %v812, 1.442695
    %v814 = vpow.pop %v813
    %v815 = vsel %vm808, %v814, 0.0
    %816 = vadd.xlane.f32.xlu0 %v815
    %v817 = vpop.xlane.xlu0 %816
    %v818 = vlog2.pop %v817
    %v819 = vmul.f32 %v818, 0.6931472
    %v820 = vsub.f32 %v812, %v819
    %821 = vst.msk [vmem:[#allocation28] sm:$0x3] %vm808, %v820
    %v822 = vsel %vm337, %v693, 0
    %824 = vmatpush.msra.mxu0 0.0
    %825 = vmatpush.msra.mxu0 0.0
    %826 = vmatpush.msra.mxu0 0.0
    %827 = vmatpush.msra.mxu0 0.0
    %828 = vmatpush.msra.mxu0 0.0
    %829 = vmatpush.msra.mxu0 0.0
    %830 = vmatpush.msra.mxu0 0.0
    %831 = vmatpush.msra.mxu0 0.0
    %832 = vmatpush.msra.mxu0 0.0
    %833 = vmatpush.msra.mxu0 0.0
    %834 = vmatpush.msra.mxu0 0.0
    %835 = vmatpush.msra.mxu0 0.0
    %836 = vmatpush.msra.mxu0 %v613
    %837 = vmatpush.msra.mxu0 %v612
    %838 = vmatpush.msra.mxu0 %v611
    %839 = vmatpush.msra.mxu0 %v610
    %840 = vmatmul.f32.gmra.mxu0 %v822
    %v841 = vpop.f32.mrf.mxu0
    %v842 = vadd.f32 0.0, %v841
    %843 = vdwg.mxu0
    %v845 = vrot.slane %v842, 6
    %v847 = vadd.f32 %v605, %v845
    %v848 = vxor.u32 %v847, 2147483648
    %v849 = vmul.f32 %v848, 1.442695
    %v850 = vpow.pop %v849
    %v851 = vadd.f32 %v850, 1.0
    %v852 = vrcp.pop %v851
    %v853 = vmul.f32 %v851, %v852
    %v854 = vsub.f32 1.0, %v853
    %v855 = vmul.f32 %v852, %v854
    %v856 = vadd.f32 %v852, %v855
    %vm857 = vweird.f32 %v851
    %vm858 = vweird.f32 %v852
    %vm859 = vmor %vm857, %vm858
    %v860 = vsel %vm859, %v852, %v856
    %v861 = vand.u32 2147483647, %v851
    %vm862 = vcmp.eq.f32.partialorder %v861, 8.507059e+37
    %v863 = vand.u32 %v851, 2147483648
    %v864 = vor.u32 1.1754944e-38, %v863
    %v865 = vsel %vm862, %v864, %v860
    %v866 = vmul.f32 1.0, %v865
    %v867 = vtanh.pop %v847
    %v869 = vrot.slane %v684, 6
    %v871 = vmul.f32 %v866, %v869
    %873 = vrot.lane.b32.xlu0 %v867, 64
    %v874 = vpop.permute.xlu0 %873
    %v876 = vmul.f32 %v866, %v874
    %878 = vrot.lane.b32.xlu0 %v876, 32
    %v879 = vpop.permute.xlu0 %878
    %v881 = vadd.f32 %v871, %v879
    %v882 = vtanh.pop %v881
    %884 = vrot.lane.b32.xlu0 %v882, 64
    %v885 = vpop.permute.xlu0 %884
    %v887 = vmul.f32 %v866, %v885
    %889 = vrot.lane.b32.xlu0 %v887, 32
    %v890 = vpop.permute.xlu0 %889
    %v892 = vmul.f32 %v628, %v890
    %893 = vmatpush.msra.mxu0 0.0
    %894 = vmatpush.msra.mxu0 0.0
    %895 = vmatpush.msra.mxu0 0.0
    %896 = vmatpush.msra.mxu0 0.0
    %897 = vmatpush.msra.mxu0 0.0
    %898 = vmatpush.msra.mxu0 0.0
    %899 = vmatpush.msra.mxu0 0.0
    %900 = vmatpush.msra.mxu0 0.0
    %901 = vmatpush.msra.mxu0 0.0
    %902 = vmatpush.msra.mxu0 0.0
    %903 = vmatpush.msra.mxu0 0.0
    %904 = vmatpush.msra.mxu0 0.0
    %905 = vmatpush.msra.mxu0 %v621
    %906 = vmatpush.msra.mxu0 %v620
    %907 = vmatpush.msra.mxu0 %v619
    %908 = vmatpush.msra.mxu0 %v618
    %909 = vmatmul.f32.gmra.mxu0 %v786
    %v910 = vpop.f32.mrf.mxu0
    %v911 = vadd.f32 0.0, %v910
    %912 = vdwg.mxu0
    %v914 = vrot.slane %v892, 2
    %v915 = vsel %vm337, %v914, 0
    %917 = vmatpush.msra.mxu0 0.0
    %918 = vmatpush.msra.mxu0 0.0
    %919 = vmatpush.msra.mxu0 0.0
    %920 = vmatpush.msra.mxu0 0.0
    %921 = vmatpush.msra.mxu0 0.0
    %922 = vmatpush.msra.mxu0 0.0
    %923 = vmatpush.msra.mxu0 0.0
    %924 = vmatpush.msra.mxu0 0.0
    %925 = vmatpush.msra.mxu0 0.0
    %926 = vmatpush.msra.mxu0 0.0
    %927 = vmatpush.msra.mxu0 0.0
    %928 = vmatpush.msra.mxu0 0.0
    %929 = vmatpush.msra.mxu0 %v617
    %930 = vmatpush.msra.mxu0 %v616
    %931 = vmatpush.msra.mxu0 %v615
    %932 = vmatpush.msra.mxu0 %v614
    %933 = vmatmul.f32.gmra.mxu0 %v915
    %v934 = vpop.f32.mrf.mxu0
    %v935 = vadd.f32 %v911, %v934
    %936 = vdwg.mxu0
    %v937 = vadd.f32 %v935, %v740
    %v938 = vxor.u32 %v937, 2147483648
    %v939 = vmul.f32 %v938, 1.442695
    %v940 = vpow.pop %v939
    %v941 = vadd.f32 %v940, 1.0
    %v942 = vrcp.pop %v941
    %v943 = vmul.f32 %v941, %v942
    %v944 = vsub.f32 1.0, %v943
    %v945 = vmul.f32 %v942, %v944
    %v946 = vadd.f32 %v942, %v945
    %vm947 = vweird.f32 %v941
    %vm948 = vweird.f32 %v942
    %vm949 = vmor %vm947, %vm948
    %v950 = vsel %vm949, %v942, %v946
    %v951 = vand.u32 2147483647, %v941
    %vm952 = vcmp.eq.f32.partialorder %v951, 8.507059e+37
    %v953 = vand.u32 %v941, 2147483648
    %v954 = vor.u32 1.1754944e-38, %v953
    %v955 = vsel %vm952, %v954, %v950
    %v956 = vmul.f32 1.0, %v955
    %v957 = vtanh.pop %v937
    %v958 = vmul.f32 %v956, %v773
    %960 = vrot.lane.b32.xlu0 %v957, 64
    %v961 = vpop.permute.xlu0 %960
    %v963 = vmul.f32 %v956, %v961
    %965 = vrot.lane.b32.xlu0 %v963, 32
    %v966 = vpop.permute.xlu0 %965
    %v968 = vadd.f32 %v958, %v966
    %v969 = vtanh.pop %v968
    %971 = vrot.lane.b32.xlu0 %v969, 64
    %v972 = vpop.permute.xlu0 %971
    %v974 = vmul.f32 %v956, %v972
    %976 = vrot.lane.b32.xlu0 %v974, 32
    %v977 = vpop.permute.xlu0 %976
    %v978 = vsel %vm337, %v977, 0
    %980 = vmatpush.msra.mxu0 0.0
    %981 = vmatpush.msra.mxu0 0.0
    %982 = vmatpush.msra.mxu0 0.0
    %983 = vmatpush.msra.mxu0 0.0
    %984 = vmatpush.msra.mxu0 0.0
    %985 = vmatpush.msra.mxu0 0.0
    %986 = vmatpush.msra.mxu0 0.0
    %987 = vmatpush.msra.mxu0 0.0
    %988 = vmatpush.msra.mxu0 0.0
    %989 = vmatpush.msra.mxu0 0.0
    %990 = vmatpush.msra.mxu0 0.0
    %991 = vmatpush.msra.mxu0 0.0
    %992 = vmatpush.msra.mxu0 %v626
    %993 = vmatpush.msra.mxu0 %v625
    %994 = vmatpush.msra.mxu0 %v624
    %995 = vmatpush.msra.mxu0 %v623
    %996 = vmatmul.f32.gmra.mxu0 %v978
    %v997 = vpop.f32.mrf.mxu0
    %v998 = vadd.f32 %v781, %v997
    %999 = vdwg.mxu0
    %v1000 = vsel %vm808, %v998, -inf
    %1001 = vmax.xlane.f32.xlu0 %v1000
    %v1002 = vpop.xlane.xlu0 %1001
    %v1003 = vsub.f32 %v998, %v1002
    %v1004 = vmul.f32 %v1003, 1.442695
    %v1005 = vpow.pop %v1004
    %v1006 = vsel %vm808, %v1005, 0.0
    %1007 = vadd.xlane.f32.xlu0 %v1006
    %v1008 = vpop.xlane.xlu0 %1007
    %v1009 = vlog2.pop %v1008
    %v1010 = vmul.f32 %v1009, 0.6931472
    %v1011 = vsub.f32 %v1003, %v1010
    %s1012 = scalar_lea.vmem [#allocation28], 2
    %1013 = vst.msk [vmem:[%s1012] sm:$0x3] %vm808, %v1011
    %v1014 = vrot.slane %v887, 2
    %1015 = vrot.lane.b32.xlu0 %v1014, 32
    %v1016 = vpop.permute.xlu0 %1015
    %v1017 = vsel %vm337, %v1016, 0
    %1019 = vmatpush.msra.mxu0 0.0
    %1020 = vmatpush.msra.mxu0 0.0
    %1021 = vmatpush.msra.mxu0 0.0
    %1022 = vmatpush.msra.mxu0 0.0
    %1023 = vmatpush.msra.mxu0 0.0
    %1024 = vmatpush.msra.mxu0 0.0
    %1025 = vmatpush.msra.mxu0 0.0
    %1026 = vmatpush.msra.mxu0 0.0
    %1027 = vmatpush.msra.mxu0 0.0
    %1028 = vmatpush.msra.mxu0 0.0
    %1029 = vmatpush.msra.mxu0 0.0
    %1030 = vmatpush.msra.mxu0 0.0
    %1031 = vmatpush.msra.mxu0 %v613
    %1032 = vmatpush.msra.mxu0 %v612
    %1033 = vmatpush.msra.mxu0 %v611
    %1034 = vmatpush.msra.mxu0 %v610
    %1035 = vmatmul.f32.gmra.mxu0 %v1017
    %v1036 = vpop.f32.mrf.mxu0
    %v1037 = vadd.f32 0.0, %v1036
    %1038 = vdwg.mxu0
    %v1040 = vrot.slane %v1037, 4
    %v1042 = vadd.f32 %v605, %v1040
    %v1043 = vxor.u32 %v1042, 2147483648
    %v1044 = vmul.f32 %v1043, 1.442695
    %v1045 = vpow.pop %v1044
    %v1046 = vadd.f32 %v1045, 1.0
    %v1047 = vrcp.pop %v1046
    %v1048 = vmul.f32 %v1046, %v1047
    %v1049 = vsub.f32 1.0, %v1048
    %v1050 = vmul.f32 %v1047, %v1049
    %v1051 = vadd.f32 %v1047, %v1050
    %vm1052 = vweird.f32 %v1046
    %vm1053 = vweird.f32 %v1047
    %vm1054 = vmor %vm1052, %vm1053
    %v1055 = vsel %vm1054, %v1047, %v1051
    %v1056 = vand.u32 2147483647, %v1046
    %vm1057 = vcmp.eq.f32.partialorder %v1056, 8.507059e+37
    %v1058 = vand.u32 %v1046, 2147483648
    %v1059 = vor.u32 1.1754944e-38, %v1058
    %v1060 = vsel %vm1057, %v1059, %v1055
    %v1061 = vmul.f32 1.0, %v1060
    %v1062 = vtanh.pop %v1042
    %v1064 = vrot.slane %v881, 6
    %v1066 = vmul.f32 %v1061, %v1064
    %1068 = vrot.lane.b32.xlu0 %v1062, 64
    %v1069 = vpop.permute.xlu0 %1068
    %v1071 = vmul.f32 %v1061, %v1069
    %1073 = vrot.lane.b32.xlu0 %v1071, 32
    %v1074 = vpop.permute.xlu0 %1073
    %v1076 = vadd.f32 %v1066, %v1074
    %v1077 = vtanh.pop %v1076
    %1079 = vrot.lane.b32.xlu0 %v1077, 64
    %v1080 = vpop.permute.xlu0 %1079
    %v1082 = vmul.f32 %v1061, %v1080
    %1084 = vrot.lane.b32.xlu0 %v1082, 32
    %v1085 = vpop.permute.xlu0 %1084
    %v1087 = vmul.f32 %v628, %v1085
    %1088 = vmatpush.msra.mxu0 0.0
    %1089 = vmatpush.msra.mxu0 0.0
    %1090 = vmatpush.msra.mxu0 0.0
    %1091 = vmatpush.msra.mxu0 0.0
    %1092 = vmatpush.msra.mxu0 0.0
    %1093 = vmatpush.msra.mxu0 0.0
    %1094 = vmatpush.msra.mxu0 0.0
    %1095 = vmatpush.msra.mxu0 0.0
    %1096 = vmatpush.msra.mxu0 0.0
    %1097 = vmatpush.msra.mxu0 0.0
    %1098 = vmatpush.msra.mxu0 0.0
    %1099 = vmatpush.msra.mxu0 0.0
    %1100 = vmatpush.msra.mxu0 %v621
    %1101 = vmatpush.msra.mxu0 %v620
    %1102 = vmatpush.msra.mxu0 %v619
    %1103 = vmatpush.msra.mxu0 %v618
    %1104 = vmatmul.f32.gmra.mxu0 %v978
    %v1105 = vpop.f32.mrf.mxu0
    %v1106 = vadd.f32 0.0, %v1105
    %1107 = vdwg.mxu0
    %v1109 = vrot.slane %v1087, 4
    %v1110 = vsel %vm337, %v1109, 0
    %1112 = vmatpush.msra.mxu0 0.0
    %1113 = vmatpush.msra.mxu0 0.0
    %1114 = vmatpush.msra.mxu0 0.0
    %1115 = vmatpush.msra.mxu0 0.0
    %1116 = vmatpush.msra.mxu0 0.0
    %1117 = vmatpush.msra.mxu0 0.0
    %1118 = vmatpush.msra.mxu0 0.0
    %1119 = vmatpush.msra.mxu0 0.0
    %1120 = vmatpush.msra.mxu0 0.0
    %1121 = vmatpush.msra.mxu0 0.0
    %1122 = vmatpush.msra.mxu0 0.0
    %1123 = vmatpush.msra.mxu0 0.0
    %1124 = vmatpush.msra.mxu0 %v617
    %1125 = vmatpush.msra.mxu0 %v616
    %1126 = vmatpush.msra.mxu0 %v615
    %1127 = vmatpush.msra.mxu0 %v614
    %1128 = vmatmul.f32.gmra.mxu0 %v1110
    %v1129 = vpop.f32.mrf.mxu0
    %v1130 = vadd.f32 %v1106, %v1129
    %1131 = vdwg.mxu0
    %v1132 = vadd.f32 %v1130, %v740
    %v1133 = vxor.u32 %v1132, 2147483648
    %v1134 = vmul.f32 %v1133, 1.442695
    %v1135 = vpow.pop %v1134
    %v1136 = vadd.f32 %v1135, 1.0
    %v1137 = vrcp.pop %v1136
    %v1138 = vmul.f32 %v1136, %v1137
    %v1139 = vsub.f32 1.0, %v1138
    %v1140 = vmul.f32 %v1137, %v1139
    %v1141 = vadd.f32 %v1137, %v1140
    %vm1142 = vweird.f32 %v1136
    %vm1143 = vweird.f32 %v1137
    %vm1144 = vmor %vm1142, %vm1143
    %v1145 = vsel %vm1144, %v1137, %v1141
    %v1146 = vand.u32 2147483647, %v1136
    %vm1147 = vcmp.eq.f32.partialorder %v1146, 8.507059e+37
    %v1148 = vand.u32 %v1136, 2147483648
    %v1149 = vor.u32 1.1754944e-38, %v1148
    %v1150 = vsel %vm1147, %v1149, %v1145
    %v1151 = vmul.f32 1.0, %v1150
    %v1152 = vtanh.pop %v1132
    %v1153 = vmul.f32 %v1151, %v968
    %1155 = vrot.lane.b32.xlu0 %v1152, 64
    %v1156 = vpop.permute.xlu0 %1155
    %v1158 = vmul.f32 %v1151, %v1156
    %1160 = vrot.lane.b32.xlu0 %v1158, 32
    %v1161 = vpop.permute.xlu0 %1160
    %v1163 = vadd.f32 %v1153, %v1161
    %v1164 = vtanh.pop %v1163
    %1166 = vrot.lane.b32.xlu0 %v1164, 64
    %v1167 = vpop.permute.xlu0 %1166
    %v1169 = vmul.f32 %v1151, %v1167
    %1171 = vrot.lane.b32.xlu0 %v1169, 32
    %v1172 = vpop.permute.xlu0 %1171
    %v1173 = vsel %vm337, %v1172, 0
    %1175 = vmatpush.msra.mxu0 0.0
    %1176 = vmatpush.msra.mxu0 0.0
    %1177 = vmatpush.msra.mxu0 0.0
    %1178 = vmatpush.msra.mxu0 0.0
    %1179 = vmatpush.msra.mxu0 0.0
    %1180 = vmatpush.msra.mxu0 0.0
    %1181 = vmatpush.msra.mxu0 0.0
    %1182 = vmatpush.msra.mxu0 0.0
    %1183 = vmatpush.msra.mxu0 0.0
    %1184 = vmatpush.msra.mxu0 0.0
    %1185 = vmatpush.msra.mxu0 0.0
    %1186 = vmatpush.msra.mxu0 0.0
    %1187 = vmatpush.msra.mxu0 %v626
    %1188 = vmatpush.msra.mxu0 %v625
    %1189 = vmatpush.msra.mxu0 %v624
    %1190 = vmatpush.msra.mxu0 %v623
    %1191 = vmatmul.f32.gmra.mxu0 %v1173
    %v1192 = vpop.f32.mrf.mxu0
    %v1193 = vadd.f32 %v781, %v1192
    %1194 = vdwg.mxu0
    %v1195 = vsel %vm808, %v1193, -inf
    %1196 = vmax.xlane.f32.xlu0 %v1195
    %v1197 = vpop.xlane.xlu0 %1196
    %v1198 = vsub.f32 %v1193, %v1197
    %v1199 = vmul.f32 %v1198, 1.442695
    %v1200 = vpow.pop %v1199
    %v1201 = vsel %vm808, %v1200, 0.0
    %1202 = vadd.xlane.f32.xlu0 %v1201
    %v1203 = vpop.xlane.xlu0 %1202
    %v1204 = vlog2.pop %v1203
    %v1205 = vmul.f32 %v1204, 0.6931472
    %v1206 = vsub.f32 %v1198, %v1205
    %s1207 = scalar_lea.vmem [#allocation28], 4
    %1208 = vst.msk [vmem:[%s1207] sm:$0x3] %vm808, %v1206
    %v1209 = vrot.slane %v1082, 4
    %1210 = vrot.lane.b32.xlu0 %v1209, 32
    %v1211 = vpop.permute.xlu0 %1210
    %v1212 = vsel %vm337, %v1211, 0
    %1214 = vmatpush.msra.mxu0 0.0
    %1215 = vmatpush.msra.mxu0 0.0
    %1216 = vmatpush.msra.mxu0 0.0
    %1217 = vmatpush.msra.mxu0 0.0
    %1218 = vmatpush.msra.mxu0 0.0
    %1219 = vmatpush.msra.mxu0 0.0
    %1220 = vmatpush.msra.mxu0 0.0
    %1221 = vmatpush.msra.mxu0 0.0
    %1222 = vmatpush.msra.mxu0 0.0
    %1223 = vmatpush.msra.mxu0 0.0
    %1224 = vmatpush.msra.mxu0 0.0
    %1225 = vmatpush.msra.mxu0 0.0
    %1226 = vmatpush.msra.mxu0 %v613
    %1227 = vmatpush.msra.mxu0 %v612
    %1228 = vmatpush.msra.mxu0 %v611
    %1229 = vmatpush.msra.mxu0 %v610
    %1230 = vmatmul.f32.gmra.mxu0 %v1212
    %v1231 = vpop.f32.mrf.mxu0
    %v1232 = vadd.f32 0.0, %v1231
    %1233 = vdwg.mxu0
    %v1235 = vrot.slane %v1232, 2
    %v1237 = vadd.f32 %v605, %v1235
    %v1238 = vxor.u32 %v1237, 2147483648
    %v1239 = vmul.f32 %v1238, 1.442695
    %v1240 = vpow.pop %v1239
    %v1241 = vadd.f32 %v1240, 1.0
    %v1242 = vrcp.pop %v1241
    %v1243 = vmul.f32 %v1241, %v1242
    %v1244 = vsub.f32 1.0, %v1243
    %v1245 = vmul.f32 %v1242, %v1244
    %v1246 = vadd.f32 %v1242, %v1245
    %vm1247 = vweird.f32 %v1241
    %vm1248 = vweird.f32 %v1242
    %vm1249 = vmor %vm1247, %vm1248
    %v1250 = vsel %vm1249, %v1242, %v1246
    %v1251 = vand.u32 2147483647, %v1241
    %vm1252 = vcmp.eq.f32.partialorder %v1251, 8.507059e+37
    %v1253 = vand.u32 %v1241, 2147483648
    %v1254 = vor.u32 1.1754944e-38, %v1253
    %v1255 = vsel %vm1252, %v1254, %v1250
    %v1256 = vmul.f32 1.0, %v1255
    %v1257 = vtanh.pop %v1237
    %v1259 = vrot.slane %v1076, 6
    %v1261 = vmul.f32 %v1256, %v1259
    %1263 = vrot.lane.b32.xlu0 %v1257, 64
    %v1264 = vpop.permute.xlu0 %1263
    %v1266 = vmul.f32 %v1256, %v1264
    %1268 = vrot.lane.b32.xlu0 %v1266, 32
    %v1269 = vpop.permute.xlu0 %1268
    %v1271 = vadd.f32 %v1261, %v1269
    %v1272 = vtanh.pop %v1271
    %1274 = vrot.lane.b32.xlu0 %v1272, 64
    %v1275 = vpop.permute.xlu0 %1274
    %v1277 = vmul.f32 %v1256, %v1275
    %1279 = vrot.lane.b32.xlu0 %v1277, 32
    %v1280 = vpop.permute.xlu0 %1279
    %v1282 = vmul.f32 %v628, %v1280
    %1283 = vmatpush.msra.mxu0 0.0
    %1284 = vmatpush.msra.mxu0 0.0
    %1285 = vmatpush.msra.mxu0 0.0
    %1286 = vmatpush.msra.mxu0 0.0
    %1287 = vmatpush.msra.mxu0 0.0
    %1288 = vmatpush.msra.mxu0 0.0
    %1289 = vmatpush.msra.mxu0 0.0
    %1290 = vmatpush.msra.mxu0 0.0
    %1291 = vmatpush.msra.mxu0 0.0
    %1292 = vmatpush.msra.mxu0 0.0
    %1293 = vmatpush.msra.mxu0 0.0
    %1294 = vmatpush.msra.mxu0 0.0
    %1295 = vmatpush.msra.mxu0 %v621
    %1296 = vmatpush.msra.mxu0 %v620
    %1297 = vmatpush.msra.mxu0 %v619
    %1298 = vmatpush.msra.mxu0 %v618
    %1299 = vmatmul.f32.gmra.mxu0 %v1173
    %v1300 = vpop.f32.mrf.mxu0
    %v1301 = vadd.f32 0.0, %v1300
    %1302 = vdwg.mxu0
    %v1304 = vrot.slane %v1282, 6
    %v1305 = vsel %vm337, %v1304, 0
    %1307 = vmatpush.msra.mxu0 0.0
    %1308 = vmatpush.msra.mxu0 0.0
    %1309 = vmatpush.msra.mxu0 0.0
    %1310 = vmatpush.msra.mxu0 0.0
    %1311 = vmatpush.msra.mxu0 0.0
    %1312 = vmatpush.msra.mxu0 0.0
    %1313 = vmatpush.msra.mxu0 0.0
    %1314 = vmatpush.msra.mxu0 0.0
    %1315 = vmatpush.msra.mxu0 0.0
    %1316 = vmatpush.msra.mxu0 0.0
    %1317 = vmatpush.msra.mxu0 0.0
    %1318 = vmatpush.msra.mxu0 0.0
    %1319 = vmatpush.msra.mxu0 %v617
    %1320 = vmatpush.msra.mxu0 %v616
    %1321 = vmatpush.msra.mxu0 %v615
    %1322 = vmatpush.msra.mxu0 %v614
    %1323 = vmatmul.f32.gmra.mxu0 %v1305
    %v1324 = vpop.f32.mrf.mxu0
    %v1325 = vadd.f32 %v1301, %v1324
    %1326 = vdwg.mxu0
    %v1327 = vadd.f32 %v1325, %v740
    %v1328 = vxor.u32 %v1327, 2147483648
    %v1329 = vmul.f32 %v1328, 1.442695
    %v1330 = vpow.pop %v1329
    %v1331 = vadd.f32 %v1330, 1.0
    %v1332 = vrcp.pop %v1331
    %v1333 = vmul.f32 %v1331, %v1332
    %v1334 = vsub.f32 1.0, %v1333
    %v1335 = vmul.f32 %v1332, %v1334
    %v1336 = vadd.f32 %v1332, %v1335
    %vm1337 = vweird.f32 %v1331
    %vm1338 = vweird.f32 %v1332
    %vm1339 = vmor %vm1337, %vm1338
    %v1340 = vsel %vm1339, %v1332, %v1336
    %v1341 = vand.u32 2147483647, %v1331
    %vm1342 = vcmp.eq.f32.partialorder %v1341, 8.507059e+37
    %v1343 = vand.u32 %v1331, 2147483648
    %v1344 = vor.u32 1.1754944e-38, %v1343
    %v1345 = vsel %vm1342, %v1344, %v1340
    %v1346 = vmul.f32 1.0, %v1345
    %v1347 = vtanh.pop %v1327
    %v1348 = vmul.f32 %v1346, %v1163
    %1350 = vrot.lane.b32.xlu0 %v1347, 64
    %v1351 = vpop.permute.xlu0 %1350
    %v1353 = vmul.f32 %v1346, %v1351
    %1355 = vrot.lane.b32.xlu0 %v1353, 32
    %v1356 = vpop.permute.xlu0 %1355
    %v1358 = vadd.f32 %v1348, %v1356
    %v1359 = vtanh.pop %v1358
    %1361 = vrot.lane.b32.xlu0 %v1359, 64
    %v1362 = vpop.permute.xlu0 %1361
    %v1364 = vmul.f32 %v1346, %v1362
    %1366 = vrot.lane.b32.xlu0 %v1364, 32
    %v1367 = vpop.permute.xlu0 %1366
    %v1368 = vsel %vm337, %v1367, 0
    %1370 = vmatpush.msra.mxu0 0.0
    %1371 = vmatpush.msra.mxu0 0.0
    %1372 = vmatpush.msra.mxu0 0.0
    %1373 = vmatpush.msra.mxu0 0.0
    %1374 = vmatpush.msra.mxu0 0.0
    %1375 = vmatpush.msra.mxu0 0.0
    %1376 = vmatpush.msra.mxu0 0.0
    %1377 = vmatpush.msra.mxu0 0.0
    %1378 = vmatpush.msra.mxu0 0.0
    %1379 = vmatpush.msra.mxu0 0.0
    %1380 = vmatpush.msra.mxu0 0.0
    %1381 = vmatpush.msra.mxu0 0.0
    %1382 = vmatpush.msra.mxu0 %v626
    %1383 = vmatpush.msra.mxu0 %v625
    %1384 = vmatpush.msra.mxu0 %v624
    %1385 = vmatpush.msra.mxu0 %v623
    %1386 = vmatmul.f32.gmra.mxu0 %v1368
    %v1387 = vpop.f32.mrf.mxu0
    %v1388 = vadd.f32 %v781, %v1387
    %1389 = vdwg.mxu0
    %v1390 = vsel %vm808, %v1388, -inf
    %1391 = vmax.xlane.f32.xlu0 %v1390
    %v1392 = vpop.xlane.xlu0 %1391
    %v1393 = vsub.f32 %v1388, %v1392
    %v1394 = vmul.f32 %v1393, 1.442695
    %v1395 = vpow.pop %v1394
    %v1396 = vsel %vm808, %v1395, 0.0
    %1397 = vadd.xlane.f32.xlu0 %v1396
    %v1398 = vpop.xlane.xlu0 %1397
    %v1399 = vlog2.pop %v1398
    %v1400 = vmul.f32 %v1399, 0.6931472
    %v1401 = vsub.f32 %v1393, %v1400
    %s1402 = scalar_lea.vmem [#allocation28], 6
    %1403 = vst.msk [vmem:[%s1402] sm:$0x3] %vm808, %v1401
    %v1404 = vrot.slane %v1277, 6
    %1405 = vrot.lane.b32.xlu0 %v1404, 32
    %v1406 = vpop.permute.xlu0 %1405
    %v1407 = vsel %vm337, %v1406, 0
    %1409 = vmatpush.msra.mxu0 0.0
    %1410 = vmatpush.msra.mxu0 0.0
    %1411 = vmatpush.msra.mxu0 0.0
    %1412 = vmatpush.msra.mxu0 0.0
    %1413 = vmatpush.msra.mxu0 0.0
    %1414 = vmatpush.msra.mxu0 0.0
    %1415 = vmatpush.msra.mxu0 0.0
    %1416 = vmatpush.msra.mxu0 0.0
    %1417 = vmatpush.msra.mxu0 0.0
    %1418 = vmatpush.msra.mxu0 0.0
    %1419 = vmatpush.msra.mxu0 0.0
    %1420 = vmatpush.msra.mxu0 0.0
    %1421 = vmatpush.msra.mxu0 %v613
    %1422 = vmatpush.msra.mxu0 %v612
    %1423 = vmatpush.msra.mxu0 %v611
    %1424 = vmatpush.msra.mxu0 %v610
    %1425 = vmatmul.f32.gmra.mxu0 %v1407
    %v1426 = vpop.f32.mrf.mxu0
    %v1427 = vadd.f32 0.0, %v1426
    %1428 = vdwg.mxu0
    %v1429 = vadd.f32 %v608, %v1427
    %v1430 = vxor.u32 %v1429, 2147483648
    %v1431 = vmul.f32 %v1430, 1.442695
    %v1432 = vpow.pop %v1431
    %v1433 = vadd.f32 %v1432, 1.0
    %v1434 = vrcp.pop %v1433
    %v1435 = vmul.f32 %v1433, %v1434
    %v1436 = vsub.f32 1.0, %v1435
    %v1437 = vmul.f32 %v1434, %v1436
    %v1438 = vadd.f32 %v1434, %v1437
    %vm1439 = vweird.f32 %v1433
    %vm1440 = vweird.f32 %v1434
    %vm1441 = vmor %vm1439, %vm1440
    %v1442 = vsel %vm1441, %v1434, %v1438
    %v1443 = vand.u32 2147483647, %v1433
    %vm1444 = vcmp.eq.f32.partialorder %v1443, 8.507059e+37
    %v1445 = vand.u32 %v1433, 2147483648
    %v1446 = vor.u32 1.1754944e-38, %v1445
    %v1447 = vsel %vm1444, %v1446, %v1442
    %v1448 = vmul.f32 1.0, %v1447
    %v1449 = vtanh.pop %v1429
    %v1451 = vrot.slane %v1271, 6
    %v1453 = vmul.f32 %v1448, %v1451
    %1455 = vrot.lane.b32.xlu0 %v1449, 64
    %v1456 = vpop.permute.xlu0 %1455
    %v1458 = vmul.f32 %v1448, %v1456
    %1460 = vrot.lane.b32.xlu0 %v1458, 32
    %v1461 = vpop.permute.xlu0 %1460
    %v1463 = vadd.f32 %v1453, %v1461
    %v1464 = vtanh.pop %v1463
    %1466 = vrot.lane.b32.xlu0 %v1464, 64
    %v1467 = vpop.permute.xlu0 %1466
    %v1469 = vmul.f32 %v1448, %v1467
    %1471 = vrot.lane.b32.xlu0 %v1469, 32
    %v1472 = vpop.permute.xlu0 %1471
    %v1474 = vmul.f32 %v629, %v1472
    %1475 = vmatpush.msra.mxu0 0.0
    %1476 = vmatpush.msra.mxu0 0.0
    %1477 = vmatpush.msra.mxu0 0.0
    %1478 = vmatpush.msra.mxu0 0.0
    %1479 = vmatpush.msra.mxu0 0.0
    %1480 = vmatpush.msra.mxu0 0.0
    %1481 = vmatpush.msra.mxu0 0.0
    %1482 = vmatpush.msra.mxu0 0.0
    %1483 = vmatpush.msra.mxu0 0.0
    %1484 = vmatpush.msra.mxu0 0.0
    %1485 = vmatpush.msra.mxu0 0.0
    %1486 = vmatpush.msra.mxu0 0.0
    %1487 = vmatpush.msra.mxu0 %v621
    %1488 = vmatpush.msra.mxu0 %v620
    %1489 = vmatpush.msra.mxu0 %v619
    %1490 = vmatpush.msra.mxu0 %v618
    %1491 = vmatmul.f32.gmra.mxu0 %v1368
    %v1492 = vpop.f32.mrf.mxu0
    %v1493 = vadd.f32 0.0, %v1492
    %1494 = vdwg.mxu0
    %v1496 = vsel %vm337, %v1474, 0
    %1498 = vmatpush.msra.mxu0 0.0
    %1499 = vmatpush.msra.mxu0 0.0
    %1500 = vmatpush.msra.mxu0 0.0
    %1501 = vmatpush.msra.mxu0 0.0
    %1502 = vmatpush.msra.mxu0 0.0
    %1503 = vmatpush.msra.mxu0 0.0
    %1504 = vmatpush.msra.mxu0 0.0
    %1505 = vmatpush.msra.mxu0 0.0
    %1506 = vmatpush.msra.mxu0 0.0
    %1507 = vmatpush.msra.mxu0 0.0
    %1508 = vmatpush.msra.mxu0 0.0
    %1509 = vmatpush.msra.mxu0 0.0
    %1510 = vmatpush.msra.mxu0 %v617
    %1511 = vmatpush.msra.mxu0 %v616
    %1512 = vmatpush.msra.mxu0 %v615
    %1513 = vmatpush.msra.mxu0 %v614
    %1514 = vmatmul.f32.gmra.mxu0 %v1496
    %v1515 = vpop.f32.mrf.mxu0
    %v1516 = vadd.f32 %v1493, %v1515
    %1517 = vdwg.mxu0
    %v1518 = vadd.f32 %v1516, %v740
    %v1519 = vxor.u32 %v1518, 2147483648
    %v1520 = vmul.f32 %v1519, 1.442695
    %v1521 = vpow.pop %v1520
    %v1522 = vadd.f32 %v1521, 1.0
    %v1523 = vrcp.pop %v1522
    %v1524 = vmul.f32 %v1522, %v1523
    %v1525 = vsub.f32 1.0, %v1524
    %v1526 = vmul.f32 %v1523, %v1525
    %v1527 = vadd.f32 %v1523, %v1526
    %vm1528 = vweird.f32 %v1522
    %vm1529 = vweird.f32 %v1523
    %vm1530 = vmor %vm1528, %vm1529
    %v1531 = vsel %vm1530, %v1523, %v1527
    %v1532 = vand.u32 2147483647, %v1522
    %vm1533 = vcmp.eq.f32.partialorder %v1532, 8.507059e+37
    %v1534 = vand.u32 %v1522, 2147483648
    %v1535 = vor.u32 1.1754944e-38, %v1534
    %v1536 = vsel %vm1533, %v1535, %v1531
    %v1537 = vmul.f32 1.0, %v1536
    %v1538 = vtanh.pop %v1518
    %v1539 = vmul.f32 %v1537, %v1358
    %1541 = vrot.lane.b32.xlu0 %v1538, 64
    %v1542 = vpop.permute.xlu0 %1541
    %v1544 = vmul.f32 %v1537, %v1542
    %1546 = vrot.lane.b32.xlu0 %v1544, 32
    %v1547 = vpop.permute.xlu0 %1546
    %v1549 = vadd.f32 %v1539, %v1547
    %v1550 = vtanh.pop %v1549
    %1552 = vrot.lane.b32.xlu0 %v1550, 64
    %v1553 = vpop.permute.xlu0 %1552
    %v1555 = vmul.f32 %v1537, %v1553
    %1557 = vrot.lane.b32.xlu0 %v1555, 32
    %v1558 = vpop.permute.xlu0 %1557
    %v1559 = vsel %vm337, %v1558, 0
    %1561 = vmatpush.msra.mxu0 0.0
    %1562 = vmatpush.msra.mxu0 0.0
    %1563 = vmatpush.msra.mxu0 0.0
    %1564 = vmatpush.msra.mxu0 0.0
    %1565 = vmatpush.msra.mxu0 0.0
    %1566 = vmatpush.msra.mxu0 0.0
    %1567 = vmatpush.msra.mxu0 0.0
    %1568 = vmatpush.msra.mxu0 0.0
    %1569 = vmatpush.msra.mxu0 0.0
    %1570 = vmatpush.msra.mxu0 0.0
    %1571 = vmatpush.msra.mxu0 0.0
    %1572 = vmatpush.msra.mxu0 0.0
    %1573 = vmatpush.msra.mxu0 %v626
    %1574 = vmatpush.msra.mxu0 %v625
    %1575 = vmatpush.msra.mxu0 %v624
    %1576 = vmatpush.msra.mxu0 %v623
    %1577 = vmatmul.f32.gmra.mxu0 %v1559
    %v1578 = vpop.f32.mrf.mxu0
    %v1579 = vadd.f32 %v781, %v1578
    %1580 = vdwg.mxu0
    %v1581 = vsel %vm808, %v1579, -inf
    %1582 = vmax.xlane.f32.xlu0 %v1581
    %v1583 = vpop.xlane.xlu0 %1582
    %v1584 = vsub.f32 %v1579, %v1583
    %v1585 = vmul.f32 %v1584, 1.442695
    %v1586 = vpow.pop %v1585
    %v1587 = vsel %vm808, %v1586, 0.0
    %1588 = vadd.xlane.f32.xlu0 %v1587
    %v1589 = vpop.xlane.xlu0 %1588
    %v1590 = vlog2.pop %v1589
    %v1591 = vmul.f32 %v1590, 0.6931472
    %v1592 = vsub.f32 %v1584, %v1591
    %s1593 = scalar_lea.vmem [#allocation28], 8
    %1594 = vst.msk [vmem:[%s1593] sm:$0x3] %vm808, %v1592
    %v1595 = vsel %vm337, %v1472, 0
    %1597 = vmatpush.msra.mxu0 0.0
    %1598 = vmatpush.msra.mxu0 0.0
    %1599 = vmatpush.msra.mxu0 0.0
    %1600 = vmatpush.msra.mxu0 0.0
    %1601 = vmatpush.msra.mxu0 0.0
    %1602 = vmatpush.msra.mxu0 0.0
    %1603 = vmatpush.msra.mxu0 0.0
    %1604 = vmatpush.msra.mxu0 0.0
    %1605 = vmatpush.msra.mxu0 0.0
    %1606 = vmatpush.msra.mxu0 0.0
    %1607 = vmatpush.msra.mxu0 0.0
    %1608 = vmatpush.msra.mxu0 0.0
    %1609 = vmatpush.msra.mxu0 %v613
    %1610 = vmatpush.msra.mxu0 %v612
    %1611 = vmatpush.msra.mxu0 %v611
    %1612 = vmatpush.msra.mxu0 %v610
    %1613 = vmatmul.f32.gmra.mxu0 %v1595
    %v1614 = vpop.f32.mrf.mxu0
    %v1615 = vadd.f32 0.0, %v1614
    %1616 = vdwg.mxu0
    %v1618 = vrot.slane %v1615, 6
    %v1620 = vadd.f32 %v608, %v1618
    %v1621 = vxor.u32 %v1620, 2147483648
    %v1622 = vmul.f32 %v1621, 1.442695
    %v1623 = vpow.pop %v1622
    %v1624 = vadd.f32 %v1623, 1.0
    %v1625 = vrcp.pop %v1624
    %v1626 = vmul.f32 %v1624, %v1625
    %v1627 = vsub.f32 1.0, %v1626
    %v1628 = vmul.f32 %v1625, %v1627
    %v1629 = vadd.f32 %v1625, %v1628
    %vm1630 = vweird.f32 %v1624
    %vm1631 = vweird.f32 %v1625
    %vm1632 = vmor %vm1630, %vm1631
    %v1633 = vsel %vm1632, %v1625, %v1629
    %v1634 = vand.u32 2147483647, %v1624
    %vm1635 = vcmp.eq.f32.partialorder %v1634, 8.507059e+37
    %v1636 = vand.u32 %v1624, 2147483648
    %v1637 = vor.u32 1.1754944e-38, %v1636
    %v1638 = vsel %vm1635, %v1637, %v1633
    %v1639 = vmul.f32 1.0, %v1638
    %v1640 = vtanh.pop %v1620
    %v1642 = vrot.slane %v1463, 6
    %v1644 = vmul.f32 %v1639, %v1642
    %1646 = vrot.lane.b32.xlu0 %v1640, 64
    %v1647 = vpop.permute.xlu0 %1646
    %v1649 = vmul.f32 %v1639, %v1647
    %1651 = vrot.lane.b32.xlu0 %v1649, 32
    %v1652 = vpop.permute.xlu0 %1651
    %v1654 = vadd.f32 %v1644, %v1652
    %v1655 = vtanh.pop %v1654
    %1657 = vrot.lane.b32.xlu0 %v1655, 64
    %v1658 = vpop.permute.xlu0 %1657
    %v1660 = vmul.f32 %v1639, %v1658
    %1662 = vrot.lane.b32.xlu0 %v1660, 32
    %v1663 = vpop.permute.xlu0 %1662
    %v1665 = vmul.f32 %v629, %v1663
    %1666 = vmatpush.msra.mxu0 0.0
    %1667 = vmatpush.msra.mxu0 0.0
    %1668 = vmatpush.msra.mxu0 0.0
    %1669 = vmatpush.msra.mxu0 0.0
    %1670 = vmatpush.msra.mxu0 0.0
    %1671 = vmatpush.msra.mxu0 0.0
    %1672 = vmatpush.msra.mxu0 0.0
    %1673 = vmatpush.msra.mxu0 0.0
    %1674 = vmatpush.msra.mxu0 0.0
    %1675 = vmatpush.msra.mxu0 0.0
    %1676 = vmatpush.msra.mxu0 0.0
    %1677 = vmatpush.msra.mxu0 0.0
    %1678 = vmatpush.msra.mxu0 %v621
    %1679 = vmatpush.msra.mxu0 %v620
    %1680 = vmatpush.msra.mxu0 %v619
    %1681 = vmatpush.msra.mxu0 %v618
    %1682 = vmatmul.f32.gmra.mxu0 %v1559
    %v1683 = vpop.f32.mrf.mxu0
    %v1684 = vadd.f32 0.0, %v1683
    %1685 = vdwg.mxu0
    %v1687 = vrot.slane %v1665, 2
    %v1688 = vsel %vm337, %v1687, 0
    %1690 = vmatpush.msra.mxu0 0.0
    %1691 = vmatpush.msra.mxu0 0.0
    %1692 = vmatpush.msra.mxu0 0.0
    %1693 = vmatpush.msra.mxu0 0.0
    %1694 = vmatpush.msra.mxu0 0.0
    %1695 = vmatpush.msra.mxu0 0.0
    %1696 = vmatpush.msra.mxu0 0.0
    %1697 = vmatpush.msra.mxu0 0.0
    %1698 = vmatpush.msra.mxu0 0.0
    %1699 = vmatpush.msra.mxu0 0.0
    %1700 = vmatpush.msra.mxu0 0.0
    %1701 = vmatpush.msra.mxu0 0.0
    %1702 = vmatpush.msra.mxu0 %v617
    %1703 = vmatpush.msra.mxu0 %v616
    %1704 = vmatpush.msra.mxu0 %v615
    %1705 = vmatpush.msra.mxu0 %v614
    %1706 = vmatmul.f32.gmra.mxu0 %v1688
    %v1707 = vpop.f32.mrf.mxu0
    %v1708 = vadd.f32 %v1684, %v1707
    %1709 = vdwg.mxu0
    %v1710 = vadd.f32 %v1708, %v740
    %v1711 = vxor.u32 %v1710, 2147483648
    %v1712 = vmul.f32 %v1711, 1.442695
    %v1713 = vpow.pop %v1712
    %v1714 = vadd.f32 %v1713, 1.0
    %v1715 = vrcp.pop %v1714
    %v1716 = vmul.f32 %v1714, %v1715
    %v1717 = vsub.f32 1.0, %v1716
    %v1718 = vmul.f32 %v1715, %v1717
    %v1719 = vadd.f32 %v1715, %v1718
    %vm1720 = vweird.f32 %v1714
    %vm1721 = vweird.f32 %v1715
    %vm1722 = vmor %vm1720, %vm1721
    %v1723 = vsel %vm1722, %v1715, %v1719
    %v1724 = vand.u32 2147483647, %v1714
    %vm1725 = vcmp.eq.f32.partialorder %v1724, 8.507059e+37
    %v1726 = vand.u32 %v1714, 2147483648
    %v1727 = vor.u32 1.1754944e-38, %v1726
    %v1728 = vsel %vm1725, %v1727, %v1723
    %v1729 = vmul.f32 1.0, %v1728
    %v1730 = vtanh.pop %v1710
    %v1731 = vmul.f32 %v1729, %v1549
    %1733 = vrot.lane.b32.xlu0 %v1730, 64
    %v1734 = vpop.permute.xlu0 %1733
    %v1736 = vmul.f32 %v1729, %v1734
    %1738 = vrot.lane.b32.xlu0 %v1736, 32
    %v1739 = vpop.permute.xlu0 %1738
    %v1741 = vadd.f32 %v1731, %v1739
    %v1742 = vtanh.pop %v1741
    %1744 = vrot.lane.b32.xlu0 %v1742, 64
    %v1745 = vpop.permute.xlu0 %1744
    %v1747 = vmul.f32 %v1729, %v1745
    %1749 = vrot.lane.b32.xlu0 %v1747, 32
    %v1750 = vpop.permute.xlu0 %1749
    %v1751 = vsel %vm337, %v1750, 0
    %1753 = vmatpush.msra.mxu0 0.0
    %1754 = vmatpush.msra.mxu0 0.0
    %1755 = vmatpush.msra.mxu0 0.0
    %1756 = vmatpush.msra.mxu0 0.0
    %1757 = vmatpush.msra.mxu0 0.0
    %1758 = vmatpush.msra.mxu0 0.0
    %1759 = vmatpush.msra.mxu0 0.0
    %1760 = vmatpush.msra.mxu0 0.0
    %1761 = vmatpush.msra.mxu0 0.0
    %1762 = vmatpush.msra.mxu0 0.0
    %1763 = vmatpush.msra.mxu0 0.0
    %1764 = vmatpush.msra.mxu0 0.0
    %1765 = vmatpush.msra.mxu0 %v626
    %1766 = vmatpush.msra.mxu0 %v625
    %1767 = vmatpush.msra.mxu0 %v624
    %1768 = vmatpush.msra.mxu0 %v623
    %1769 = vmatmul.f32.gmra.mxu0 %v1751
    %v1770 = vpop.f32.mrf.mxu0
    %v1771 = vadd.f32 %v781, %v1770
    %1772 = vdwg.mxu0
    %v1773 = vsel %vm808, %v1771, -inf
    %1774 = vmax.xlane.f32.xlu0 %v1773
    %v1775 = vpop.xlane.xlu0 %1774
    %v1776 = vsub.f32 %v1771, %v1775
    %v1777 = vmul.f32 %v1776, 1.442695
    %v1778 = vpow.pop %v1777
    %v1779 = vsel %vm808, %v1778, 0.0
    %1780 = vadd.xlane.f32.xlu0 %v1779
    %v1781 = vpop.xlane.xlu0 %1780
    %v1782 = vlog2.pop %v1781
    %v1783 = vmul.f32 %v1782, 0.6931472
    %v1784 = vsub.f32 %v1776, %v1783
    %s1785 = scalar_lea.vmem [#allocation28], 10
    %1786 = vst.msk [vmem:[%s1785] sm:$0x3] %vm808, %v1784
    %v1787 = vrot.slane %v1660, 2
    %1788 = vrot.lane.b32.xlu0 %v1787, 32
    %v1789 = vpop.permute.xlu0 %1788
    %v1790 = vsel %vm337, %v1789, 0
    %1792 = vmatpush.msra.mxu0 0.0
    %1793 = vmatpush.msra.mxu0 0.0
    %1794 = vmatpush.msra.mxu0 0.0
    %1795 = vmatpush.msra.mxu0 0.0
    %1796 = vmatpush.msra.mxu0 0.0
    %1797 = vmatpush.msra.mxu0 0.0
    %1798 = vmatpush.msra.mxu0 0.0
    %1799 = vmatpush.msra.mxu0 0.0
    %1800 = vmatpush.msra.mxu0 0.0
    %1801 = vmatpush.msra.mxu0 0.0
    %1802 = vmatpush.msra.mxu0 0.0
    %1803 = vmatpush.msra.mxu0 0.0
    %1804 = vmatpush.msra.mxu0 %v613
    %1805 = vmatpush.msra.mxu0 %v612
    %1806 = vmatpush.msra.mxu0 %v611
    %1807 = vmatpush.msra.mxu0 %v610
    %1808 = vmatmul.f32.gmra.mxu0 %v1790
    %v1809 = vpop.f32.mrf.mxu0
    %v1810 = vadd.f32 0.0, %v1809
    %1811 = vdwg.mxu0
    %v1813 = vrot.slane %v1810, 4
    %v1815 = vadd.f32 %v608, %v1813
    %v1816 = vxor.u32 %v1815, 2147483648
    %v1817 = vmul.f32 %v1816, 1.442695
    %v1818 = vpow.pop %v1817
    %v1819 = vadd.f32 %v1818, 1.0
    %v1820 = vrcp.pop %v1819
    %v1821 = vmul.f32 %v1819, %v1820
    %v1822 = vsub.f32 1.0, %v1821
    %v1823 = vmul.f32 %v1820, %v1822
    %v1824 = vadd.f32 %v1820, %v1823
    %vm1825 = vweird.f32 %v1819
    %vm1826 = vweird.f32 %v1820
    %vm1827 = vmor %vm1825, %vm1826
    %v1828 = vsel %vm1827, %v1820, %v1824
    %v1829 = vand.u32 2147483647, %v1819
    %vm1830 = vcmp.eq.f32.partialorder %v1829, 8.507059e+37
    %v1831 = vand.u32 %v1819, 2147483648
    %v1832 = vor.u32 1.1754944e-38, %v1831
    %v1833 = vsel %vm1830, %v1832, %v1828
    %v1834 = vmul.f32 1.0, %v1833
    %v1835 = vtanh.pop %v1815
    %v1837 = vrot.slane %v1654, 6
    %v1839 = vmul.f32 %v1834, %v1837
    %1841 = vrot.lane.b32.xlu0 %v1835, 64
    %v1842 = vpop.permute.xlu0 %1841
    %v1844 = vmul.f32 %v1834, %v1842
    %1846 = vrot.lane.b32.xlu0 %v1844, 32
    %v1847 = vpop.permute.xlu0 %1846
    %v1849 = vadd.f32 %v1839, %v1847
    %v1850 = vtanh.pop %v1849
    %1852 = vrot.lane.b32.xlu0 %v1850, 64
    %v1853 = vpop.permute.xlu0 %1852
    %v1855 = vmul.f32 %v1834, %v1853
    %1857 = vrot.lane.b32.xlu0 %v1855, 32
    %v1858 = vpop.permute.xlu0 %1857
    %v1860 = vmul.f32 %v629, %v1858
    %1861 = vmatpush.msra.mxu0 0.0
    %1862 = vmatpush.msra.mxu0 0.0
    %1863 = vmatpush.msra.mxu0 0.0
    %1864 = vmatpush.msra.mxu0 0.0
    %1865 = vmatpush.msra.mxu0 0.0
    %1866 = vmatpush.msra.mxu0 0.0
    %1867 = vmatpush.msra.mxu0 0.0
    %1868 = vmatpush.msra.mxu0 0.0
    %1869 = vmatpush.msra.mxu0 0.0
    %1870 = vmatpush.msra.mxu0 0.0
    %1871 = vmatpush.msra.mxu0 0.0
    %1872 = vmatpush.msra.mxu0 0.0
    %1873 = vmatpush.msra.mxu0 %v621
    %1874 = vmatpush.msra.mxu0 %v620
    %1875 = vmatpush.msra.mxu0 %v619
    %1876 = vmatpush.msra.mxu0 %v618
    %1877 = vmatmul.f32.gmra.mxu0 %v1751
    %v1878 = vpop.f32.mrf.mxu0
    %v1879 = vadd.f32 0.0, %v1878
    %1880 = vdwg.mxu0
    %v1882 = vrot.slane %v1860, 4
    %v1883 = vsel %vm337, %v1882, 0
    %1885 = vmatpush.msra.mxu0 0.0
    %1886 = vmatpush.msra.mxu0 0.0
    %1887 = vmatpush.msra.mxu0 0.0
    %1888 = vmatpush.msra.mxu0 0.0
    %1889 = vmatpush.msra.mxu0 0.0
    %1890 = vmatpush.msra.mxu0 0.0
    %1891 = vmatpush.msra.mxu0 0.0
    %1892 = vmatpush.msra.mxu0 0.0
    %1893 = vmatpush.msra.mxu0 0.0
    %1894 = vmatpush.msra.mxu0 0.0
    %1895 = vmatpush.msra.mxu0 0.0
    %1896 = vmatpush.msra.mxu0 0.0
    %1897 = vmatpush.msra.mxu0 %v617
    %1898 = vmatpush.msra.mxu0 %v616
    %1899 = vmatpush.msra.mxu0 %v615
    %1900 = vmatpush.msra.mxu0 %v614
    %1901 = vmatmul.f32.gmra.mxu0 %v1883
    %v1902 = vpop.f32.mrf.mxu0
    %v1903 = vadd.f32 %v1879, %v1902
    %1904 = vdwg.mxu0
    %v1905 = vadd.f32 %v1903, %v740
    %v1906 = vxor.u32 %v1905, 2147483648
    %v1907 = vmul.f32 %v1906, 1.442695
    %v1908 = vpow.pop %v1907
    %v1909 = vadd.f32 %v1908, 1.0
    %v1910 = vrcp.pop %v1909
    %v1911 = vmul.f32 %v1909, %v1910
    %v1912 = vsub.f32 1.0, %v1911
    %v1913 = vmul.f32 %v1910, %v1912
    %v1914 = vadd.f32 %v1910, %v1913
    %vm1915 = vweird.f32 %v1909
    %vm1916 = vweird.f32 %v1910
    %vm1917 = vmor %vm1915, %vm1916
    %v1918 = vsel %vm1917, %v1910, %v1914
    %v1919 = vand.u32 2147483647, %v1909
    %vm1920 = vcmp.eq.f32.partialorder %v1919, 8.507059e+37
    %v1921 = vand.u32 %v1909, 2147483648
    %v1922 = vor.u32 1.1754944e-38, %v1921
    %v1923 = vsel %vm1920, %v1922, %v1918
    %v1924 = vmul.f32 1.0, %v1923
    %v1925 = vtanh.pop %v1905
    %v1926 = vmul.f32 %v1924, %v1741
    %1928 = vrot.lane.b32.xlu0 %v1925, 64
    %v1929 = vpop.permute.xlu0 %1928
    %v1931 = vmul.f32 %v1924, %v1929
    %1933 = vrot.lane.b32.xlu0 %v1931, 32
    %v1934 = vpop.permute.xlu0 %1933
    %v1936 = vadd.f32 %v1926, %v1934
    %v1937 = vtanh.pop %v1936
    %1939 = vrot.lane.b32.xlu0 %v1937, 64
    %v1940 = vpop.permute.xlu0 %1939
    %v1942 = vmul.f32 %v1924, %v1940
    %1944 = vrot.lane.b32.xlu0 %v1942, 32
    %v1945 = vpop.permute.xlu0 %1944
    %v1946 = vsel %vm337, %v1945, 0
    %1948 = vmatpush.msra.mxu0 0.0
    %1949 = vmatpush.msra.mxu0 0.0
    %1950 = vmatpush.msra.mxu0 0.0
    %1951 = vmatpush.msra.mxu0 0.0
    %1952 = vmatpush.msra.mxu0 0.0
    %1953 = vmatpush.msra.mxu0 0.0
    %1954 = vmatpush.msra.mxu0 0.0
    %1955 = vmatpush.msra.mxu0 0.0
    %1956 = vmatpush.msra.mxu0 0.0
    %1957 = vmatpush.msra.mxu0 0.0
    %1958 = vmatpush.msra.mxu0 0.0
    %1959 = vmatpush.msra.mxu0 0.0
    %1960 = vmatpush.msra.mxu0 %v626
    %1961 = vmatpush.msra.mxu0 %v625
    %1962 = vmatpush.msra.mxu0 %v624
    %1963 = vmatpush.msra.mxu0 %v623
    %1964 = vmatmul.f32.gmra.mxu0 %v1946
    %v1965 = vpop.f32.mrf.mxu0
    %v1966 = vadd.f32 %v781, %v1965
    %1967 = vdwg.mxu0
    %v1968 = vsel %vm808, %v1966, -inf
    %1969 = vmax.xlane.f32.xlu0 %v1968
    %v1970 = vpop.xlane.xlu0 %1969
    %v1971 = vsub.f32 %v1966, %v1970
    %v1972 = vmul.f32 %v1971, 1.442695
    %v1973 = vpow.pop %v1972
    %v1974 = vsel %vm808, %v1973, 0.0
    %1975 = vadd.xlane.f32.xlu0 %v1974
    %v1976 = vpop.xlane.xlu0 %1975
    %v1977 = vlog2.pop %v1976
    %v1978 = vmul.f32 %v1977, 0.6931472
    %v1979 = vsub.f32 %v1971, %v1978
    %s1980 = scalar_lea.vmem [#allocation28], 12
    %1981 = vst.msk [vmem:[%s1980] sm:$0x3] %vm808, %v1979
    %v1982 = vrot.slane %v1855, 4
    %1983 = vrot.lane.b32.xlu0 %v1982, 32
    %v1984 = vpop.permute.xlu0 %1983
    %v1985 = vsel %vm337, %v1984, 0
    %1987 = vmatpush.msra.mxu0 0.0
    %1988 = vmatpush.msra.mxu0 0.0
    %1989 = vmatpush.msra.mxu0 0.0
    %1990 = vmatpush.msra.mxu0 0.0
    %1991 = vmatpush.msra.mxu0 0.0
    %1992 = vmatpush.msra.mxu0 0.0
    %1993 = vmatpush.msra.mxu0 0.0
    %1994 = vmatpush.msra.mxu0 0.0
    %1995 = vmatpush.msra.mxu0 0.0
    %1996 = vmatpush.msra.mxu0 0.0
    %1997 = vmatpush.msra.mxu0 0.0
    %1998 = vmatpush.msra.mxu0 0.0
    %1999 = vmatpush.msra.mxu0 %v613
    %2000 = vmatpush.msra.mxu0 %v612
    %2001 = vmatpush.msra.mxu0 %v611
    %2002 = vmatpush.msra.mxu0 %v610
    %2003 = vmatmul.f32.gmra.mxu0 %v1985
    %v2004 = vpop.f32.mrf.mxu0
    %v2005 = vadd.f32 0.0, %v2004
    %2006 = vdwg.mxu0
    %v2008 = vrot.slane %v2005, 2
    %v2010 = vadd.f32 %v608, %v2008
    %v2011 = vxor.u32 %v2010, 2147483648
    %v2012 = vmul.f32 %v2011, 1.442695
    %v2013 = vpow.pop %v2012
    %v2014 = vadd.f32 %v2013, 1.0
    %v2015 = vrcp.pop %v2014
    %v2016 = vmul.f32 %v2014, %v2015
    %v2017 = vsub.f32 1.0, %v2016
    %v2018 = vmul.f32 %v2015, %v2017
    %v2019 = vadd.f32 %v2015, %v2018
    %vm2020 = vweird.f32 %v2014
    %vm2021 = vweird.f32 %v2015
    %vm2022 = vmor %vm2020, %vm2021
    %v2023 = vsel %vm2022, %v2015, %v2019
    %v2024 = vand.u32 2147483647, %v2014
    %vm2025 = vcmp.eq.f32.partialorder %v2024, 8.507059e+37
    %v2026 = vand.u32 %v2014, 2147483648
    %v2027 = vor.u32 1.1754944e-38, %v2026
    %v2028 = vsel %vm2025, %v2027, %v2023
    %v2029 = vmul.f32 1.0, %v2028
    %v2030 = vtanh.pop %v2010
    %v2032 = vrot.slane %v1849, 6
    %v2034 = vmul.f32 %v2029, %v2032
    %2036 = vrot.lane.b32.xlu0 %v2030, 64
    %v2037 = vpop.permute.xlu0 %2036
    %v2039 = vmul.f32 %v2029, %v2037
    %2041 = vrot.lane.b32.xlu0 %v2039, 32
    %v2042 = vpop.permute.xlu0 %2041
    %v2044 = vadd.f32 %v2034, %v2042
    %v2045 = vtanh.pop %v2044
    %2047 = vrot.lane.b32.xlu0 %v2045, 64
    %v2048 = vpop.permute.xlu0 %2047
    %v2050 = vmul.f32 %v2029, %v2048
    %2052 = vrot.lane.b32.xlu0 %v2050, 32
    %v2053 = vpop.permute.xlu0 %2052
    %v2055 = vmul.f32 %v629, %v2053
    %2056 = vmatpush.msra.mxu0 0.0
    %2057 = vmatpush.msra.mxu0 0.0
    %2058 = vmatpush.msra.mxu0 0.0
    %2059 = vmatpush.msra.mxu0 0.0
    %2060 = vmatpush.msra.mxu0 0.0
    %2061 = vmatpush.msra.mxu0 0.0
    %2062 = vmatpush.msra.mxu0 0.0
    %2063 = vmatpush.msra.mxu0 0.0
    %2064 = vmatpush.msra.mxu0 0.0
    %2065 = vmatpush.msra.mxu0 0.0
    %2066 = vmatpush.msra.mxu0 0.0
    %2067 = vmatpush.msra.mxu0 0.0
    %2068 = vmatpush.msra.mxu0 %v621
    %2069 = vmatpush.msra.mxu0 %v620
    %2070 = vmatpush.msra.mxu0 %v619
    %2071 = vmatpush.msra.mxu0 %v618
    %2072 = vmatmul.f32.gmra.mxu0 %v1946
    %v2073 = vpop.f32.mrf.mxu0
    %v2074 = vadd.f32 0.0, %v2073
    %2075 = vdwg.mxu0
    %v2077 = vrot.slane %v2055, 6
    %v2078 = vsel %vm337, %v2077, 0
    %2080 = vmatpush.msra.mxu0 0.0
    %2081 = vmatpush.msra.mxu0 0.0
    %2082 = vmatpush.msra.mxu0 0.0
    %2083 = vmatpush.msra.mxu0 0.0
    %2084 = vmatpush.msra.mxu0 0.0
    %2085 = vmatpush.msra.mxu0 0.0
    %2086 = vmatpush.msra.mxu0 0.0
    %2087 = vmatpush.msra.mxu0 0.0
    %2088 = vmatpush.msra.mxu0 0.0
    %2089 = vmatpush.msra.mxu0 0.0
    %2090 = vmatpush.msra.mxu0 0.0
    %2091 = vmatpush.msra.mxu0 0.0
    %2092 = vmatpush.msra.mxu0 %v617
    %2093 = vmatpush.msra.mxu0 %v616
    %2094 = vmatpush.msra.mxu0 %v615
    %2095 = vmatpush.msra.mxu0 %v614
    %2096 = vmatmul.f32.gmra.mxu0 %v2078
    %v2097 = vpop.f32.mrf.mxu0
    %v2098 = vadd.f32 %v2074, %v2097
    %2099 = vdwg.mxu0
    %v2100 = vadd.f32 %v2098, %v740
    %v2101 = vxor.u32 %v2100, 2147483648
    %v2102 = vmul.f32 %v2101, 1.442695
    %v2103 = vpow.pop %v2102
    %v2104 = vadd.f32 %v2103, 1.0
    %v2105 = vrcp.pop %v2104
    %v2106 = vmul.f32 %v2104, %v2105
    %v2107 = vsub.f32 1.0, %v2106
    %v2108 = vmul.f32 %v2105, %v2107
    %v2109 = vadd.f32 %v2105, %v2108
    %vm2110 = vweird.f32 %v2104
    %vm2111 = vweird.f32 %v2105
    %vm2112 = vmor %vm2110, %vm2111
    %v2113 = vsel %vm2112, %v2105, %v2109
    %v2114 = vand.u32 2147483647, %v2104
    %vm2115 = vcmp.eq.f32.partialorder %v2114, 8.507059e+37
    %v2116 = vand.u32 %v2104, 2147483648
    %v2117 = vor.u32 1.1754944e-38, %v2116
    %v2118 = vsel %vm2115, %v2117, %v2113
    %v2119 = vmul.f32 1.0, %v2118
    %v2120 = vtanh.pop %v2100
    %v2121 = vmul.f32 %v2119, %v1936
    %2123 = vrot.lane.b32.xlu0 %v2120, 64
    %v2124 = vpop.permute.xlu0 %2123
    %v2126 = vmul.f32 %v2119, %v2124
    %2128 = vrot.lane.b32.xlu0 %v2126, 32
    %v2129 = vpop.permute.xlu0 %2128
    %v2131 = vadd.f32 %v2121, %v2129
    %v2132 = vtanh.pop %v2131
    %2134 = vrot.lane.b32.xlu0 %v2132, 64
    %v2135 = vpop.permute.xlu0 %2134
    %v2137 = vmul.f32 %v2119, %v2135
    %2139 = vrot.lane.b32.xlu0 %v2137, 32
    %v2140 = vpop.permute.xlu0 %2139
    %v2141 = vsel %vm337, %v2140, 0
    %2143 = vmatpush.msra.mxu0 0.0
    %2144 = vmatpush.msra.mxu0 0.0
    %2145 = vmatpush.msra.mxu0 0.0
    %2146 = vmatpush.msra.mxu0 0.0
    %2147 = vmatpush.msra.mxu0 0.0
    %2148 = vmatpush.msra.mxu0 0.0
    %2149 = vmatpush.msra.mxu0 0.0
    %2150 = vmatpush.msra.mxu0 0.0
    %2151 = vmatpush.msra.mxu0 0.0
    %2152 = vmatpush.msra.mxu0 0.0
    %2153 = vmatpush.msra.mxu0 0.0
    %2154 = vmatpush.msra.mxu0 0.0
    %2155 = vmatpush.msra.mxu0 %v626
    %2156 = vmatpush.msra.mxu0 %v625
    %2157 = vmatpush.msra.mxu0 %v624
    %2158 = vmatpush.msra.mxu0 %v623
    %2159 = vmatmul.f32.gmra.mxu0 %v2141
    %v2160 = vpop.f32.mrf.mxu0
    %v2161 = vadd.f32 %v781, %v2160
    %2162 = vdwg.mxu0
    %v2163 = vsel %vm808, %v2161, -inf
    %2164 = vmax.xlane.f32.xlu0 %v2163
    %v2165 = vpop.xlane.xlu0 %2164
    %v2166 = vsub.f32 %v2161, %v2165
    %v2167 = vmul.f32 %v2166, 1.442695
    %v2168 = vpow.pop %v2167
    %v2169 = vsel %vm808, %v2168, 0.0
    %2170 = vadd.xlane.f32.xlu0 %v2169
    %v2171 = vpop.xlane.xlu0 %2170
    %v2172 = vlog2.pop %v2171
    %v2173 = vmul.f32 %v2172, 0.6931472
    %v2174 = vsub.f32 %v2166, %v2173
    %s2175 = scalar_lea.vmem [#allocation28], 14
    %2176 = vst.msk [vmem:[%s2175] sm:$0x3] %vm808, %v2174
    // Predicated region
    $region158: #{tpu_custom_call.1} parent=1 // pred_check
      _
    $region159: #{tpu_custom_call.1} parent=1 // pred_check_branch
      %2178 = sbr.rel (0) target = $region161
    $region160: #{tpu_custom_call.1} parent=1 // pred_region
      %2180 = vsyncadd [#allocation4], 0
      %s2181 = sshll.u32 [#allocation28], 4
      %s2182 = int_to_ptr.vmem [resolvable:$true] %s2181
      %s2183 = sshll.u32 %s23, 4
      %s2184 = int_to_ptr.hbm [resolvable:$true] %s2183
      %2189 = dma.vmem_to_hbm [thread:$0]  %s2182, 256, %s2184, [#allocation4], 32, 32, 2
    $region161: #{tpu_custom_call.1} parent=1 // pred_fallthru
      _
    // Predicated region
    $region162: #{tpu_custom_call.1} parent=1 // pred_check
      _
    $region163: #{tpu_custom_call.1} parent=1 // pred_check_branch
      %2191 = sbr.rel (0) target = $region165
    $region164: #{tpu_custom_call.1} parent=1 // pred_region
      %2193 = dma.done [#allocation4], 256
    $region165: #{tpu_custom_call.1} parent=1 // pred_fallthru
      _
    %2194 = vsyncpa [#allocation3], 1
    %2195 = vsyncpa [#allocation6], 1
    %2196 = vsyncpa [#allocation9], 1
    %2197 = vsyncpa [#allocation12], 1
    %2198 = vsyncpa [#allocation15], 1
    %2199 = vsyncpa [#allocation18], 1
    %2200 = vsyncpa [#allocation21], 1
    %2201 = vsyncpa [#allocation24], 1
    %2202 = vsyncpa [#allocation27], 1
    %2203 = vsyncpa [#allocation4], 1

</llo_original>
